<compile_context>
chip_gen: v6e
topology: v6e:2x2x1
jax: 0.10.0
libtpu: 0.0.40
codegen_flags: <defaults>
</compile_context>

<pallas_src>
import functools

import jax
import jax.numpy as jnp
from jax import lax
from jax.experimental import pallas as pl
from jax.experimental.pallas import tpu as pltpu

H1 = 10          # lstm1 hidden size
H2 = 20          # lstm2 hidden size
GP = 128         # per-gate lane padding (f32 lane width)
NG = 4 * GP      # packed gate width (i | f | o | g)


# ----------------------------------------------------------------------------
# Kernel
# ----------------------------------------------------------------------------
def lstm_kernel(x_ref,        # (T, BP, 1)   f32  padded input, time-major
                whh1_ref,     # (GP, NG)     f32  layer-1 recurrent weight
                w2_hbm,       # (2*GP, NG)   f32  [wih2 ; whh2] stacked (HBM)
                v_ref,        # (8, NG)      f32  small vectors (see pack_params)
                out_ref,      # (BP, GP)     f32  every lane = prediction
                w2_vmem,      # scratch (2*GP, NG) f32
                dma_sem,      # DMA semaphore
                *, n_valid):  # static: real batch size
    T = x_ref.shape[0]
    BP = x_ref.shape[1]

    # Kick off the layer-2 weight DMA; it overlaps with the first two
    # layer-1 cell steps (first needed at the t=0 layer-2 cell).
    w2_copy = pltpu.make_async_copy(w2_hbm, w2_vmem, dma_sem)
    w2_copy.start()

    whh1 = whh1_ref[...]                 # (GP, NG)
    wih1 = v_ref[0:1, :]                 # (1, NG)
    b1 = v_ref[1:2, :]                   # (1, NG)
    b2 = v_ref[2:3, :]                   # (1, NG)
    gamma = v_ref[3:4, :GP]              # (1, GP)  (zero-padded past H2)
    beta = v_ref[4:5, :GP]               # (1, GP)
    wfc = v_ref[5:6, :GP]                # (1, GP)  fc weight row
    bfc = v_ref[6:7, :GP]                # (1, GP)  fc bias broadcast to lanes

    def act(gates, c):
        # gates laid out as [i | f | o | g], each block GP lanes wide.
        ifo = jax.nn.sigmoid(gates[:, :3 * GP])      # one EUP pass for i,f,o
        g = jnp.tanh(gates[:, 3 * GP:])
        c_new = ifo[:, GP:2 * GP] * c + ifo[:, :GP] * g
        h_new = ifo[:, 2 * GP:3 * GP] * jnp.tanh(c_new)
        return h_new, c_new

    def cell1(t, h, c):
        # input projection inlined: (BP,1) * (1,NG) broadcast + bias
        gates = (x_ref[t] * wih1 + b1
                 + jnp.dot(h, whh1, preferred_element_type=jnp.float32))
        return act(gates, c)

    def cell2(h1_t, h, c, w2):
        # single K=256 matmul on [h1_t | h2_{t-1}] against [wih2 ; whh2]
        lhs = jnp.concatenate([h1_t, h], axis=1)      # (BP, 2*GP)
        gates = jnp.dot(lhs, w2, preferred_element_type=jnp.float32) + b2
        return act(gates, c)

    zeros = jnp.zeros((BP, GP), jnp.float32)

    # --- fused / interleaved recurrences (fully unrolled) --------------------
    h1, c1 = cell1(0, zeros, zeros)      # layer-1 step 0
    h2, c2 = zeros, zeros
    w2 = None
    for t in range(T):
        h1_t, c1_t = h1, c1
        if t + 1 < T:                    # layer-1 step t+1 (independent chain)
            h1, c1 = cell1(t + 1, h1_t, c1_t)
        if t == 0:                       # weights needed only from here on
            w2_copy.wait()
            w2 = w2_vmem[...]
        h2, c2 = cell2(h1_t, h2, c2, w2)  # layer-2 step t

    # --- BatchNorm1d(20) training mode over the REAL batch rows only ---------
    # (padded rows carry a nonzero zero-input LSTM response -> must mask)
    row = lax.broadcasted_iota(jnp.int32, (BP, 1), 0)
    mask = (row < n_valid).astype(jnp.float32)                  # (BP, 1)
    inv_b = 1.0 / float(n_valid)
    mean = jnp.sum(h2 * mask, axis=0, keepdims=True) * inv_b    # (1, GP)
    diff = (h2 - mean) * mask
    var = jnp.sum(diff * diff, axis=0, keepdims=True) * inv_b   # biased var
    xhat = (h2 - mean) * lax.rsqrt(var + 1e-5)
    y = jnp.maximum(gamma * xhat + beta, 0.0)                   # ReLU

    # --- Linear(20 -> 1): lane multiply + cross-lane reduce (no MXU pass) ----
    pred = jnp.sum(y * wfc, axis=-1, keepdims=True)             # (BP, 1)
    out_ref[...] = pred + bfc            # lane-dense (BP, GP) full-tile store


# ----------------------------------------------------------------------------
# Parameter packing (PyTorch layout -> padded, gate-reordered kernel layout)
# Packing padding must stay strictly zero (padded lanes rely on it).
# ----------------------------------------------------------------------------
def _pack_w(w, h):
    """w: PyTorch (4*h, in_dim), gate order (i,f,g,o).
    Returns (GP, NG) with gate order (i,f,o,g), each gate padded to GP lanes,
    input dim padded to GP rows; padding is zero."""
    in_dim = w.shape[1]
    out = jnp.zeros((GP, NG), jnp.float32)
    for k, s in enumerate((0, 1, 3, 2)):          # target i,f,o,g <- src i,f,g,o
        out = out.at[:in_dim, k * GP:k * GP + h].set(w[s * h:(s + 1) * h, :].T)
    return out


def _pack_b(b_ih, b_hh, h):
    b = b_ih + b_hh
    out = jnp.zeros((NG,), jnp.float32)
    for k, s in enumerate((0, 1, 3, 2)):
        out = out.at[k * GP:k * GP + h].set(b[s * h:(s + 1) * h])
    return out


def pack_params(raw):
    W1 = _pack_w(raw["w_hh1"], H1)                               # (GP, NG)
    W2 = jnp.concatenate([_pack_w(raw["w_ih2"], H2),             # rows :GP
                          _pack_w(raw["w_hh2"], H2)], axis=0)    # rows GP:2GP
    V = jnp.zeros((8, NG), jnp.float32)
    V = V.at[0].set(_pack_w(raw["w_ih1"], H1)[0])                # wih1 row
    V = V.at[1].set(_pack_b(raw["b_ih1"], raw["b_hh1"], H1))     # b1
    V = V.at[2].set(_pack_b(raw["b_ih2"], raw["b_hh2"], H2))     # b2
    V = V.at[3, :H2].set(raw["gamma"])                           # gamma
    V = V.at[4, :H2].set(raw["beta"])                            # beta
    V = V.at[5, :H2].set(raw["w_fc"][0, :])                      # fc weight row
    V = V.at[6, :GP].set(jnp.full((GP,), raw["b_fc"][0], jnp.float32))  # fc bias
    return W1, W2, V


# ----------------------------------------------------------------------------
# Public wrapper (jitted; packed params are prepared once by the caller)
# ----------------------------------------------------------------------------
@jax.jit
def battery_lstm_forward(x_btf, W1, W2, V):
    """x_btf: (B, T, 1) float32 — PyTorch batch_first convention."""
    B, T, F = x_btf.shape
    BP = max(8, ((B + 7) // 8) * 8)                  # pad batch to f32 sublane

    x_tbf = jnp.transpose(x_btf, (1, 0, 2)).astype(jnp.float32)   # (T, B, 1)
    x_pad = jnp.zeros((T, BP, 1), jnp.float32).at[:, :B, :].set(x_tbf)

    kernel = functools.partial(lstm_kernel, n_valid=B)
    vmem = pl.BlockSpec(memory_space=pltpu.MemorySpace.VMEM)

    out_pad = pl.pallas_call(
        kernel,
        out_shape=jax.ShapeDtypeStruct((BP, GP), jnp.float32),
        in_specs=[vmem,                                   # x
                  vmem,                                   # whh1
                  pl.BlockSpec(memory_space=pl.ANY),      # [wih2; whh2] (HBM)
                  vmem],                                  # small vectors
        out_specs=vmem,
        scratch_shapes=[
            pltpu.VMEM((2 * GP, NG), jnp.float32),        # w2 landing buffer
            pltpu.SemaphoreType.DMA,                      # its DMA semaphore
        ],
    )(x_pad, W1, W2, V)
    return out_pad[:B, 0:1]


# ----------------------------------------------------------------------------
# Deterministic PyTorch-shaped parameter init + pure-JAX reference
# ----------------------------------------------------------------------------
def init_params(key):
    ks = jax.random.split(key, 10)

    def u(k, shape, fan):
        s = 1.0 / jnp.sqrt(fan)
        return jax.random.uniform(k, shape, jnp.float32, -s, s)

    return dict(
        w_ih1=u(ks[0], (4 * H1, 1), H1),      # lstm1.weight_ih_l0
        w_hh1=u(ks[1], (4 * H1, H1), H1),     # lstm1.weight_hh_l0
        b_ih1=u(ks[2], (4 * H1,), H1),
        b_hh1=u(ks[3], (4 * H1,), H1),
        w_ih2=u(ks[4], (4 * H2, H1), H2),     # lstm2.weight_ih_l0
        w_hh2=u(ks[5], (4 * H2, H2), H2),     # lstm2.weight_hh_l0
        b_ih2=u(ks[6], (4 * H2,), H2),
        b_hh2=u(ks[7], (4 * H2,), H2),
        gamma=jnp.ones((H2,), jnp.float32),   # bn2.weight
        beta=jnp.zeros((H2,), jnp.float32),   # bn2.bias
        w_fc=u(ks[8], (1, H2), H2),           # fc.weight
        b_fc=u(ks[9], (1,), H2),              # fc.bias
    )


def reference_forward(x_btf, p):
    """Pure-JAX reference with PyTorch semantics (gate order i,f,g,o)."""
    B, T, _ = x_btf.shape

    def cell(x_t, h, c, w_ih, w_hh, b_ih, b_hh, hs):
        g = x_t @ w_ih.T + h @ w_hh.T + b_ih + b_hh
        i = jax.nn.sigmoid(g[:, :hs])
        f = jax.nn.sigmoid(g[:, hs:2 * hs])
        gg = jnp.tanh(g[:, 2 * hs:3 * hs])
        o = jax.nn.sigmoid(g[:, 3 * hs:])
        c = f * c + i * gg
        return o * jnp.tanh(c), c

    h1s = jnp.zeros((B, H1)); c1s = jnp.zeros((B, H1))
    h2s = jnp.zeros((B, H2)); c2s = jnp.zeros((B, H2))
    for t in range(T):
        h1s, c1s = cell(x_btf[:, t, :], h1s, c1s,
                        p["w_ih1"], p["w_hh1"], p["b_ih1"], p["b_hh1"], H1)
        h2s, c2s = cell(h1s, h2s, c2s,
                        p["w_ih2"], p["w_hh2"], p["b_ih2"], p["b_hh2"], H2)
    m = h2s.mean(0, keepdims=True)
    v = ((h2s - m) ** 2).mean(0, keepdims=True)
    y = p["gamma"] * (h2s - m) / jnp.sqrt(v + 1e-5) + p["beta"]
    y = jnp.maximum(y, 0.0)
    return y @ p["w_fc"].T + p["b_fc"]


if __name__ == "__main__":
    B, T = 2, 8
    key = jax.random.PRNGKey(0)
    k_x, k_p = jax.random.split(key)
    x = jax.random.normal(k_x, (B, T, 1), jnp.float32)   # (batch, seq, feat=1)
    params = init_params(k_p)

    W1, W2, V = pack_params(params)            # packed once, reused per call
    out = battery_lstm_forward(x, W1, W2, V)
    out = jax.block_until_ready(out)

    ref = reference_forward(x, params)
    assert out.shape == (B, 1)
    assert jnp.allclose(out, ref, atol=1e-4, rtol=1e-4), (out, ref)
    print("KERNEL_OK")
</pallas_src>

<mosaic_0001>
module attributes {stable_mosaic.version = 11 : i64} {
  func.func @lstm_kernel(%arg0: memref<8x8x1xf32, #tpu.memory_space<vmem>>, %arg1: memref<128x512xf32, #tpu.memory_space<vmem>>, %arg2: memref<256x512xf32, #tpu.memory_space<any>>, %arg3: memref<8x512xf32, #tpu.memory_space<vmem>>, %arg4: memref<8x128xf32, #tpu.memory_space<vmem>>, %arg5: memref<256x512xf32, #tpu.memory_space<vmem>>, %arg6: memref<!tpu.dma_semaphore, #tpu.memory_space<semaphore_mem>>) attributes {dimension_semantics = [], scalar_prefetch = 0 : i64, scratch_operands = 2 : i64, tpu.core_type = #tpu.core_type<tc>} {
    tpu.enqueue_dma source(%arg2 : memref<256x512xf32, #tpu.memory_space<any>>) target(%arg5 : memref<256x512xf32, #tpu.memory_space<vmem>>) target_semaphore(%arg6 : memref<!tpu.dma_semaphore, #tpu.memory_space<semaphore_mem>>)
    %c0 = arith.constant 0 : index
    %c0_0 = arith.constant 0 : index
    %0 = vector.load %arg1[%c0, %c0_0] : memref<128x512xf32, #tpu.memory_space<vmem>>, vector<128x512xf32>
    %c0_1 = arith.constant 0 : index
    %c0_2 = arith.constant 0 : index
    %1 = vector.load %arg3[%c0_1, %c0_2] : memref<8x512xf32, #tpu.memory_space<vmem>>, vector<1x512xf32>
    %c1 = arith.constant 1 : index
    %c0_3 = arith.constant 0 : index
    %2 = vector.load %arg3[%c1, %c0_3] : memref<8x512xf32, #tpu.memory_space<vmem>>, vector<1x512xf32>
    %c2 = arith.constant 2 : index
    %c0_4 = arith.constant 0 : index
    %3 = vector.load %arg3[%c2, %c0_4] : memref<8x512xf32, #tpu.memory_space<vmem>>, vector<1x512xf32>
    %c3 = arith.constant 3 : index
    %c0_5 = arith.constant 0 : index
    %4 = vector.load %arg3[%c3, %c0_5] : memref<8x512xf32, #tpu.memory_space<vmem>>, vector<1x128xf32>
    %c4 = arith.constant 4 : index
    %c0_6 = arith.constant 0 : index
    %5 = vector.load %arg3[%c4, %c0_6] : memref<8x512xf32, #tpu.memory_space<vmem>>, vector<1x128xf32>
    %c5 = arith.constant 5 : index
    %c0_7 = arith.constant 0 : index
    %6 = vector.load %arg3[%c5, %c0_7] : memref<8x512xf32, #tpu.memory_space<vmem>>, vector<1x128xf32>
    %c6 = arith.constant 6 : index
    %c0_8 = arith.constant 0 : index
    %7 = vector.load %arg3[%c6, %c0_8] : memref<8x512xf32, #tpu.memory_space<vmem>>, vector<1x128xf32>
    %cst = arith.constant 0.000000e+00 : f32
    %8 = vector.broadcast %cst : f32 to vector<8x128xf32>
    %c0_9 = arith.constant 0 : index
    %c0_10 = arith.constant 0 : index
    %c0_11 = arith.constant 0 : index
    %9 = vector.load %arg0[%c0_9, %c0_10, %c0_11] : memref<8x8x1xf32, #tpu.memory_space<vmem>>, vector<1x8x1xf32>
    %10 = vector.shape_cast %9 : vector<1x8x1xf32> to vector<8x1xf32>
    %11 = vector.broadcast %10 : vector<8x1xf32> to vector<8x512xf32>
    %12 = vector.broadcast %1 : vector<1x512xf32> to vector<8x512xf32>
    %13 = arith.mulf %11, %12 : vector<8x512xf32>
    %14 = vector.broadcast %2 : vector<1x512xf32> to vector<8x512xf32>
    %15 = arith.addf %13, %14 : vector<8x512xf32>
    %cst_12 = arith.constant dense<0.000000e+00> : vector<8x512xf32>
    %16 = tpu.matmul %8, %0, %cst_12 {dimension_numbers = #tpu.dot_dimension_numbers<[1], [0], [0], [1], [0, 0, 1, 1], [], []>} : vector<8x128xf32>, vector<128x512xf32>, vector<8x512xf32> -> vector<8x512xf32>
    %17 = arith.addf %15, %16 : vector<8x512xf32>
    %18 = vector.extract_strided_slice %17 {offsets = [0, 0], sizes = [8, 384], strides = [1, 1]} : vector<8x512xf32> to vector<8x384xf32>
    %19 = arith.negf %18 : vector<8x384xf32>
    %20 = math.exp %19 : vector<8x384xf32>
    %cst_13 = arith.constant 1.000000e+00 : f32
    %21 = vector.broadcast %cst_13 : f32 to vector<8x384xf32>
    %22 = arith.addf %21, %20 : vector<8x384xf32>
    %23 = arith.divf %21, %22 : vector<8x384xf32>
    %24 = vector.extract_strided_slice %17 {offsets = [0, 384], sizes = [8, 128], strides = [1, 1]} : vector<8x512xf32> to vector<8x128xf32>
    %25 = math.tanh %24 : vector<8x128xf32>
    %26 = vector.extract_strided_slice %23 {offsets = [0, 128], sizes = [8, 128], strides = [1, 1]} : vector<8x384xf32> to vector<8x128xf32>
    %27 = arith.mulf %26, %8 : vector<8x128xf32>
    %28 = vector.extract_strided_slice %23 {offsets = [0, 0], sizes = [8, 128], strides = [1, 1]} : vector<8x384xf32> to vector<8x128xf32>
    %29 = arith.mulf %28, %25 : vector<8x128xf32>
    %30 = arith.addf %27, %29 : vector<8x128xf32>
    %31 = vector.extract_strided_slice %23 {offsets = [0, 256], sizes = [8, 128], strides = [1, 1]} : vector<8x384xf32> to vector<8x128xf32>
    %32 = math.tanh %30 : vector<8x128xf32>
    %33 = arith.mulf %31, %32 : vector<8x128xf32>
    %c1_14 = arith.constant 1 : index
    %c0_15 = arith.constant 0 : index
    %c0_16 = arith.constant 0 : index
    %34 = vector.load %arg0[%c1_14, %c0_15, %c0_16] : memref<8x8x1xf32, #tpu.memory_space<vmem>>, vector<1x8x1xf32>
    %35 = vector.shape_cast %34 : vector<1x8x1xf32> to vector<8x1xf32>
    %36 = vector.broadcast %35 : vector<8x1xf32> to vector<8x512xf32>
    %37 = vector.broadcast %1 : vector<1x512xf32> to vector<8x512xf32>
    %38 = arith.mulf %36, %37 : vector<8x512xf32>
    %39 = vector.broadcast %2 : vector<1x512xf32> to vector<8x512xf32>
    %40 = arith.addf %38, %39 : vector<8x512xf32>
    %cst_17 = arith.constant dense<0.000000e+00> : vector<8x512xf32>
    %41 = tpu.matmul %33, %0, %cst_17 {dimension_numbers = #tpu.dot_dimension_numbers<[1], [0], [0], [1], [0, 0, 1, 1], [], []>} : vector<8x128xf32>, vector<128x512xf32>, vector<8x512xf32> -> vector<8x512xf32>
    %42 = arith.addf %40, %41 : vector<8x512xf32>
    %43 = vector.extract_strided_slice %42 {offsets = [0, 0], sizes = [8, 384], strides = [1, 1]} : vector<8x512xf32> to vector<8x384xf32>
    %44 = arith.negf %43 : vector<8x384xf32>
    %45 = math.exp %44 : vector<8x384xf32>
    %cst_18 = arith.constant 1.000000e+00 : f32
    %46 = vector.broadcast %cst_18 : f32 to vector<8x384xf32>
    %47 = arith.addf %46, %45 : vector<8x384xf32>
    %48 = arith.divf %46, %47 : vector<8x384xf32>
    %49 = vector.extract_strided_slice %42 {offsets = [0, 384], sizes = [8, 128], strides = [1, 1]} : vector<8x512xf32> to vector<8x128xf32>
    %50 = math.tanh %49 : vector<8x128xf32>
    %51 = vector.extract_strided_slice %48 {offsets = [0, 128], sizes = [8, 128], strides = [1, 1]} : vector<8x384xf32> to vector<8x128xf32>
    %52 = arith.mulf %51, %30 : vector<8x128xf32>
    %53 = vector.extract_strided_slice %48 {offsets = [0, 0], sizes = [8, 128], strides = [1, 1]} : vector<8x384xf32> to vector<8x128xf32>
    %54 = arith.mulf %53, %50 : vector<8x128xf32>
    %55 = arith.addf %52, %54 : vector<8x128xf32>
    %56 = vector.extract_strided_slice %48 {offsets = [0, 256], sizes = [8, 128], strides = [1, 1]} : vector<8x384xf32> to vector<8x128xf32>
    %57 = math.tanh %55 : vector<8x128xf32>
    %58 = arith.mulf %56, %57 : vector<8x128xf32>
    tpu.wait_dma2 semaphore(%arg6 : memref<!tpu.dma_semaphore, #tpu.memory_space<semaphore_mem>>) src(%arg2 : memref<256x512xf32, #tpu.memory_space<any>>) dst(%arg5 : memref<256x512xf32, #tpu.memory_space<vmem>>)
    %c0_19 = arith.constant 0 : index
    %c0_20 = arith.constant 0 : index
    %59 = vector.load %arg5[%c0_19, %c0_20] : memref<256x512xf32, #tpu.memory_space<vmem>>, vector<256x512xf32>
    %60 = tpu.concatenate %33, %8 in 1 : vector<8x128xf32>, vector<8x128xf32> -> vector<8x256xf32>
    %cst_21 = arith.constant dense<0.000000e+00> : vector<8x512xf32>
    %61 = tpu.matmul %60, %59, %cst_21 {dimension_numbers = #tpu.dot_dimension_numbers<[1], [0], [0], [1], [0, 0, 1, 1], [], []>} : vector<8x256xf32>, vector<256x512xf32>, vector<8x512xf32> -> vector<8x512xf32>
    %62 = vector.broadcast %3 : vector<1x512xf32> to vector<8x512xf32>
    %63 = arith.addf %61, %62 : vector<8x512xf32>
    %64 = vector.extract_strided_slice %63 {offsets = [0, 0], sizes = [8, 384], strides = [1, 1]} : vector<8x512xf32> to vector<8x384xf32>
    %65 = arith.negf %64 : vector<8x384xf32>
    %66 = math.exp %65 : vector<8x384xf32>
    %cst_22 = arith.constant 1.000000e+00 : f32
    %67 = vector.broadcast %cst_22 : f32 to vector<8x384xf32>
    %68 = arith.addf %67, %66 : vector<8x384xf32>
    %69 = arith.divf %67, %68 : vector<8x384xf32>
    %70 = vector.extract_strided_slice %63 {offsets = [0, 384], sizes = [8, 128], strides = [1, 1]} : vector<8x512xf32> to vector<8x128xf32>
    %71 = math.tanh %70 : vector<8x128xf32>
    %72 = vector.extract_strided_slice %69 {offsets = [0, 128], sizes = [8, 128], strides = [1, 1]} : vector<8x384xf32> to vector<8x128xf32>
    %73 = arith.mulf %72, %8 : vector<8x128xf32>
    %74 = vector.extract_strided_slice %69 {offsets = [0, 0], sizes = [8, 128], strides = [1, 1]} : vector<8x384xf32> to vector<8x128xf32>
    %75 = arith.mulf %74, %71 : vector<8x128xf32>
    %76 = arith.addf %73, %75 : vector<8x128xf32>
    %77 = vector.extract_strided_slice %69 {offsets = [0, 256], sizes = [8, 128], strides = [1, 1]} : vector<8x384xf32> to vector<8x128xf32>
    %78 = math.tanh %76 : vector<8x128xf32>
    %79 = arith.mulf %77, %78 : vector<8x128xf32>
    %c2_23 = arith.constant 2 : index
    %c0_24 = arith.constant 0 : index
    %c0_25 = arith.constant 0 : index
    %80 = vector.load %arg0[%c2_23, %c0_24, %c0_25] : memref<8x8x1xf32, #tpu.memory_space<vmem>>, vector<1x8x1xf32>
    %81 = vector.shape_cast %80 : vector<1x8x1xf32> to vector<8x1xf32>
    %82 = vector.broadcast %81 : vector<8x1xf32> to vector<8x512xf32>
    %83 = vector.broadcast %1 : vector<1x512xf32> to vector<8x512xf32>
    %84 = arith.mulf %82, %83 : vector<8x512xf32>
    %85 = vector.broadcast %2 : vector<1x512xf32> to vector<8x512xf32>
    %86 = arith.addf %84, %85 : vector<8x512xf32>
    %cst_26 = arith.constant dense<0.000000e+00> : vector<8x512xf32>
    %87 = tpu.matmul %58, %0, %cst_26 {dimension_numbers = #tpu.dot_dimension_numbers<[1], [0], [0], [1], [0, 0, 1, 1], [], []>} : vector<8x128xf32>, vector<128x512xf32>, vector<8x512xf32> -> vector<8x512xf32>
    %88 = arith.addf %86, %87 : vector<8x512xf32>
    %89 = vector.extract_strided_slice %88 {offsets = [0, 0], sizes = [8, 384], strides = [1, 1]} : vector<8x512xf32> to vector<8x384xf32>
    %90 = arith.negf %89 : vector<8x384xf32>
    %91 = math.exp %90 : vector<8x384xf32>
    %cst_27 = arith.constant 1.000000e+00 : f32
    %92 = vector.broadcast %cst_27 : f32 to vector<8x384xf32>
    %93 = arith.addf %92, %91 : vector<8x384xf32>
    %94 = arith.divf %92, %93 : vector<8x384xf32>
    %95 = vector.extract_strided_slice %88 {offsets = [0, 384], sizes = [8, 128], strides = [1, 1]} : vector<8x512xf32> to vector<8x128xf32>
    %96 = math.tanh %95 : vector<8x128xf32>
    %97 = vector.extract_strided_slice %94 {offsets = [0, 128], sizes = [8, 128], strides = [1, 1]} : vector<8x384xf32> to vector<8x128xf32>
    %98 = arith.mulf %97, %55 : vector<8x128xf32>
    %99 = vector.extract_strided_slice %94 {offsets = [0, 0], sizes = [8, 128], strides = [1, 1]} : vector<8x384xf32> to vector<8x128xf32>
    %100 = arith.mulf %99, %96 : vector<8x128xf32>
    %101 = arith.addf %98, %100 : vector<8x128xf32>
    %102 = vector.extract_strided_slice %94 {offsets = [0, 256], sizes = [8, 128], strides = [1, 1]} : vector<8x384xf32> to vector<8x128xf32>
    %103 = math.tanh %101 : vector<8x128xf32>
    %104 = arith.mulf %102, %103 : vector<8x128xf32>
    %105 = tpu.concatenate %58, %79 in 1 : vector<8x128xf32>, vector<8x128xf32> -> vector<8x256xf32>
    %cst_28 = arith.constant dense<0.000000e+00> : vector<8x512xf32>
    %106 = tpu.matmul %105, %59, %cst_28 {dimension_numbers = #tpu.dot_dimension_numbers<[1], [0], [0], [1], [0, 0, 1, 1], [], []>} : vector<8x256xf32>, vector<256x512xf32>, vector<8x512xf32> -> vector<8x512xf32>
    %107 = vector.broadcast %3 : vector<1x512xf32> to vector<8x512xf32>
    %108 = arith.addf %106, %107 : vector<8x512xf32>
    %109 = vector.extract_strided_slice %108 {offsets = [0, 0], sizes = [8, 384], strides = [1, 1]} : vector<8x512xf32> to vector<8x384xf32>
    %110 = arith.negf %109 : vector<8x384xf32>
    %111 = math.exp %110 : vector<8x384xf32>
    %cst_29 = arith.constant 1.000000e+00 : f32
    %112 = vector.broadcast %cst_29 : f32 to vector<8x384xf32>
    %113 = arith.addf %112, %111 : vector<8x384xf32>
    %114 = arith.divf %112, %113 : vector<8x384xf32>
    %115 = vector.extract_strided_slice %108 {offsets = [0, 384], sizes = [8, 128], strides = [1, 1]} : vector<8x512xf32> to vector<8x128xf32>
    %116 = math.tanh %115 : vector<8x128xf32>
    %117 = vector.extract_strided_slice %114 {offsets = [0, 128], sizes = [8, 128], strides = [1, 1]} : vector<8x384xf32> to vector<8x128xf32>
    %118 = arith.mulf %117, %76 : vector<8x128xf32>
    %119 = vector.extract_strided_slice %114 {offsets = [0, 0], sizes = [8, 128], strides = [1, 1]} : vector<8x384xf32> to vector<8x128xf32>
    %120 = arith.mulf %119, %116 : vector<8x128xf32>
    %121 = arith.addf %118, %120 : vector<8x128xf32>
    %122 = vector.extract_strided_slice %114 {offsets = [0, 256], sizes = [8, 128], strides = [1, 1]} : vector<8x384xf32> to vector<8x128xf32>
    %123 = math.tanh %121 : vector<8x128xf32>
    %124 = arith.mulf %122, %123 : vector<8x128xf32>
    %c3_30 = arith.constant 3 : index
    %c0_31 = arith.constant 0 : index
    %c0_32 = arith.constant 0 : index
    %125 = vector.load %arg0[%c3_30, %c0_31, %c0_32] : memref<8x8x1xf32, #tpu.memory_space<vmem>>, vector<1x8x1xf32>
    %126 = vector.shape_cast %125 : vector<1x8x1xf32> to vector<8x1xf32>
    %127 = vector.broadcast %126 : vector<8x1xf32> to vector<8x512xf32>
    %128 = vector.broadcast %1 : vector<1x512xf32> to vector<8x512xf32>
    %129 = arith.mulf %127, %128 : vector<8x512xf32>
    %130 = vector.broadcast %2 : vector<1x512xf32> to vector<8x512xf32>
    %131 = arith.addf %129, %130 : vector<8x512xf32>
    %cst_33 = arith.constant dense<0.000000e+00> : vector<8x512xf32>
    %132 = tpu.matmul %104, %0, %cst_33 {dimension_numbers = #tpu.dot_dimension_numbers<[1], [0], [0], [1], [0, 0, 1, 1], [], []>} : vector<8x128xf32>, vector<128x512xf32>, vector<8x512xf32> -> vector<8x512xf32>
    %133 = arith.addf %131, %132 : vector<8x512xf32>
    %134 = vector.extract_strided_slice %133 {offsets = [0, 0], sizes = [8, 384], strides = [1, 1]} : vector<8x512xf32> to vector<8x384xf32>
    %135 = arith.negf %134 : vector<8x384xf32>
    %136 = math.exp %135 : vector<8x384xf32>
    %cst_34 = arith.constant 1.000000e+00 : f32
    %137 = vector.broadcast %cst_34 : f32 to vector<8x384xf32>
    %138 = arith.addf %137, %136 : vector<8x384xf32>
    %139 = arith.divf %137, %138 : vector<8x384xf32>
    %140 = vector.extract_strided_slice %133 {offsets = [0, 384], sizes = [8, 128], strides = [1, 1]} : vector<8x512xf32> to vector<8x128xf32>
    %141 = math.tanh %140 : vector<8x128xf32>
    %142 = vector.extract_strided_slice %139 {offsets = [0, 128], sizes = [8, 128], strides = [1, 1]} : vector<8x384xf32> to vector<8x128xf32>
    %143 = arith.mulf %142, %101 : vector<8x128xf32>
    %144 = vector.extract_strided_slice %139 {offsets = [0, 0], sizes = [8, 128], strides = [1, 1]} : vector<8x384xf32> to vector<8x128xf32>
    %145 = arith.mulf %144, %141 : vector<8x128xf32>
    %146 = arith.addf %143, %145 : vector<8x128xf32>
    %147 = vector.extract_strided_slice %139 {offsets = [0, 256], sizes = [8, 128], strides = [1, 1]} : vector<8x384xf32> to vector<8x128xf32>
    %148 = math.tanh %146 : vector<8x128xf32>
    %149 = arith.mulf %147, %148 : vector<8x128xf32>
    %150 = tpu.concatenate %104, %124 in 1 : vector<8x128xf32>, vector<8x128xf32> -> vector<8x256xf32>
    %cst_35 = arith.constant dense<0.000000e+00> : vector<8x512xf32>
    %151 = tpu.matmul %150, %59, %cst_35 {dimension_numbers = #tpu.dot_dimension_numbers<[1], [0], [0], [1], [0, 0, 1, 1], [], []>} : vector<8x256xf32>, vector<256x512xf32>, vector<8x512xf32> -> vector<8x512xf32>
    %152 = vector.broadcast %3 : vector<1x512xf32> to vector<8x512xf32>
    %153 = arith.addf %151, %152 : vector<8x512xf32>
    %154 = vector.extract_strided_slice %153 {offsets = [0, 0], sizes = [8, 384], strides = [1, 1]} : vector<8x512xf32> to vector<8x384xf32>
    %155 = arith.negf %154 : vector<8x384xf32>
    %156 = math.exp %155 : vector<8x384xf32>
    %cst_36 = arith.constant 1.000000e+00 : f32
    %157 = vector.broadcast %cst_36 : f32 to vector<8x384xf32>
    %158 = arith.addf %157, %156 : vector<8x384xf32>
    %159 = arith.divf %157, %158 : vector<8x384xf32>
    %160 = vector.extract_strided_slice %153 {offsets = [0, 384], sizes = [8, 128], strides = [1, 1]} : vector<8x512xf32> to vector<8x128xf32>
    %161 = math.tanh %160 : vector<8x128xf32>
    %162 = vector.extract_strided_slice %159 {offsets = [0, 128], sizes = [8, 128], strides = [1, 1]} : vector<8x384xf32> to vector<8x128xf32>
    %163 = arith.mulf %162, %121 : vector<8x128xf32>
    %164 = vector.extract_strided_slice %159 {offsets = [0, 0], sizes = [8, 128], strides = [1, 1]} : vector<8x384xf32> to vector<8x128xf32>
    %165 = arith.mulf %164, %161 : vector<8x128xf32>
    %166 = arith.addf %163, %165 : vector<8x128xf32>
    %167 = vector.extract_strided_slice %159 {offsets = [0, 256], sizes = [8, 128], strides = [1, 1]} : vector<8x384xf32> to vector<8x128xf32>
    %168 = math.tanh %166 : vector<8x128xf32>
    %169 = arith.mulf %167, %168 : vector<8x128xf32>
    %c4_37 = arith.constant 4 : index
    %c0_38 = arith.constant 0 : index
    %c0_39 = arith.constant 0 : index
    %170 = vector.load %arg0[%c4_37, %c0_38, %c0_39] : memref<8x8x1xf32, #tpu.memory_space<vmem>>, vector<1x8x1xf32>
    %171 = vector.shape_cast %170 : vector<1x8x1xf32> to vector<8x1xf32>
    %172 = vector.broadcast %171 : vector<8x1xf32> to vector<8x512xf32>
    %173 = vector.broadcast %1 : vector<1x512xf32> to vector<8x512xf32>
    %174 = arith.mulf %172, %173 : vector<8x512xf32>
    %175 = vector.broadcast %2 : vector<1x512xf32> to vector<8x512xf32>
    %176 = arith.addf %174, %175 : vector<8x512xf32>
    %cst_40 = arith.constant dense<0.000000e+00> : vector<8x512xf32>
    %177 = tpu.matmul %149, %0, %cst_40 {dimension_numbers = #tpu.dot_dimension_numbers<[1], [0], [0], [1], [0, 0, 1, 1], [], []>} : vector<8x128xf32>, vector<128x512xf32>, vector<8x512xf32> -> vector<8x512xf32>
    %178 = arith.addf %176, %177 : vector<8x512xf32>
    %179 = vector.extract_strided_slice %178 {offsets = [0, 0], sizes = [8, 384], strides = [1, 1]} : vector<8x512xf32> to vector<8x384xf32>
    %180 = arith.negf %179 : vector<8x384xf32>
    %181 = math.exp %180 : vector<8x384xf32>
    %cst_41 = arith.constant 1.000000e+00 : f32
    %182 = vector.broadcast %cst_41 : f32 to vector<8x384xf32>
    %183 = arith.addf %182, %181 : vector<8x384xf32>
    %184 = arith.divf %182, %183 : vector<8x384xf32>
    %185 = vector.extract_strided_slice %178 {offsets = [0, 384], sizes = [8, 128], strides = [1, 1]} : vector<8x512xf32> to vector<8x128xf32>
    %186 = math.tanh %185 : vector<8x128xf32>
    %187 = vector.extract_strided_slice %184 {offsets = [0, 128], sizes = [8, 128], strides = [1, 1]} : vector<8x384xf32> to vector<8x128xf32>
    %188 = arith.mulf %187, %146 : vector<8x128xf32>
    %189 = vector.extract_strided_slice %184 {offsets = [0, 0], sizes = [8, 128], strides = [1, 1]} : vector<8x384xf32> to vector<8x128xf32>
    %190 = arith.mulf %189, %186 : vector<8x128xf32>
    %191 = arith.addf %188, %190 : vector<8x128xf32>
    %192 = vector.extract_strided_slice %184 {offsets = [0, 256], sizes = [8, 128], strides = [1, 1]} : vector<8x384xf32> to vector<8x128xf32>
    %193 = math.tanh %191 : vector<8x128xf32>
    %194 = arith.mulf %192, %193 : vector<8x128xf32>
    %195 = tpu.concatenate %149, %169 in 1 : vector<8x128xf32>, vector<8x128xf32> -> vector<8x256xf32>
    %cst_42 = arith.constant dense<0.000000e+00> : vector<8x512xf32>
    %196 = tpu.matmul %195, %59, %cst_42 {dimension_numbers = #tpu.dot_dimension_numbers<[1], [0], [0], [1], [0, 0, 1, 1], [], []>} : vector<8x256xf32>, vector<256x512xf32>, vector<8x512xf32> -> vector<8x512xf32>
    %197 = vector.broadcast %3 : vector<1x512xf32> to vector<8x512xf32>
    %198 = arith.addf %196, %197 : vector<8x512xf32>
    %199 = vector.extract_strided_slice %198 {offsets = [0, 0], sizes = [8, 384], strides = [1, 1]} : vector<8x512xf32> to vector<8x384xf32>
    %200 = arith.negf %199 : vector<8x384xf32>
    %201 = math.exp %200 : vector<8x384xf32>
    %cst_43 = arith.constant 1.000000e+00 : f32
    %202 = vector.broadcast %cst_43 : f32 to vector<8x384xf32>
    %203 = arith.addf %202, %201 : vector<8x384xf32>
    %204 = arith.divf %202, %203 : vector<8x384xf32>
    %205 = vector.extract_strided_slice %198 {offsets = [0, 384], sizes = [8, 128], strides = [1, 1]} : vector<8x512xf32> to vector<8x128xf32>
    %206 = math.tanh %205 : vector<8x128xf32>
    %207 = vector.extract_strided_slice %204 {offsets = [0, 128], sizes = [8, 128], strides = [1, 1]} : vector<8x384xf32> to vector<8x128xf32>
    %208 = arith.mulf %207, %166 : vector<8x128xf32>
    %209 = vector.extract_strided_slice %204 {offsets = [0, 0], sizes = [8, 128], strides = [1, 1]} : vector<8x384xf32> to vector<8x128xf32>
    %210 = arith.mulf %209, %206 : vector<8x128xf32>
    %211 = arith.addf %208, %210 : vector<8x128xf32>
    %212 = vector.extract_strided_slice %204 {offsets = [0, 256], sizes = [8, 128], strides = [1, 1]} : vector<8x384xf32> to vector<8x128xf32>
    %213 = math.tanh %211 : vector<8x128xf32>
    %214 = arith.mulf %212, %213 : vector<8x128xf32>
    %c5_44 = arith.constant 5 : index
    %c0_45 = arith.constant 0 : index
    %c0_46 = arith.constant 0 : index
    %215 = vector.load %arg0[%c5_44, %c0_45, %c0_46] : memref<8x8x1xf32, #tpu.memory_space<vmem>>, vector<1x8x1xf32>
    %216 = vector.shape_cast %215 : vector<1x8x1xf32> to vector<8x1xf32>
    %217 = vector.broadcast %216 : vector<8x1xf32> to vector<8x512xf32>
    %218 = vector.broadcast %1 : vector<1x512xf32> to vector<8x512xf32>
    %219 = arith.mulf %217, %218 : vector<8x512xf32>
    %220 = vector.broadcast %2 : vector<1x512xf32> to vector<8x512xf32>
    %221 = arith.addf %219, %220 : vector<8x512xf32>
    %cst_47 = arith.constant dense<0.000000e+00> : vector<8x512xf32>
    %222 = tpu.matmul %194, %0, %cst_47 {dimension_numbers = #tpu.dot_dimension_numbers<[1], [0], [0], [1], [0, 0, 1, 1], [], []>} : vector<8x128xf32>, vector<128x512xf32>, vector<8x512xf32> -> vector<8x512xf32>
    %223 = arith.addf %221, %222 : vector<8x512xf32>
    %224 = vector.extract_strided_slice %223 {offsets = [0, 0], sizes = [8, 384], strides = [1, 1]} : vector<8x512xf32> to vector<8x384xf32>
    %225 = arith.negf %224 : vector<8x384xf32>
    %226 = math.exp %225 : vector<8x384xf32>
    %cst_48 = arith.constant 1.000000e+00 : f32
    %227 = vector.broadcast %cst_48 : f32 to vector<8x384xf32>
    %228 = arith.addf %227, %226 : vector<8x384xf32>
    %229 = arith.divf %227, %228 : vector<8x384xf32>
    %230 = vector.extract_strided_slice %223 {offsets = [0, 384], sizes = [8, 128], strides = [1, 1]} : vector<8x512xf32> to vector<8x128xf32>
    %231 = math.tanh %230 : vector<8x128xf32>
    %232 = vector.extract_strided_slice %229 {offsets = [0, 128], sizes = [8, 128], strides = [1, 1]} : vector<8x384xf32> to vector<8x128xf32>
    %233 = arith.mulf %232, %191 : vector<8x128xf32>
    %234 = vector.extract_strided_slice %229 {offsets = [0, 0], sizes = [8, 128], strides = [1, 1]} : vector<8x384xf32> to vector<8x128xf32>
    %235 = arith.mulf %234, %231 : vector<8x128xf32>
    %236 = arith.addf %233, %235 : vector<8x128xf32>
    %237 = vector.extract_strided_slice %229 {offsets = [0, 256], sizes = [8, 128], strides = [1, 1]} : vector<8x384xf32> to vector<8x128xf32>
    %238 = math.tanh %236 : vector<8x128xf32>
    %239 = arith.mulf %237, %238 : vector<8x128xf32>
    %240 = tpu.concatenate %194, %214 in 1 : vector<8x128xf32>, vector<8x128xf32> -> vector<8x256xf32>
    %cst_49 = arith.constant dense<0.000000e+00> : vector<8x512xf32>
    %241 = tpu.matmul %240, %59, %cst_49 {dimension_numbers = #tpu.dot_dimension_numbers<[1], [0], [0], [1], [0, 0, 1, 1], [], []>} : vector<8x256xf32>, vector<256x512xf32>, vector<8x512xf32> -> vector<8x512xf32>
    %242 = vector.broadcast %3 : vector<1x512xf32> to vector<8x512xf32>
    %243 = arith.addf %241, %242 : vector<8x512xf32>
    %244 = vector.extract_strided_slice %243 {offsets = [0, 0], sizes = [8, 384], strides = [1, 1]} : vector<8x512xf32> to vector<8x384xf32>
    %245 = arith.negf %244 : vector<8x384xf32>
    %246 = math.exp %245 : vector<8x384xf32>
    %cst_50 = arith.constant 1.000000e+00 : f32
    %247 = vector.broadcast %cst_50 : f32 to vector<8x384xf32>
    %248 = arith.addf %247, %246 : vector<8x384xf32>
    %249 = arith.divf %247, %248 : vector<8x384xf32>
    %250 = vector.extract_strided_slice %243 {offsets = [0, 384], sizes = [8, 128], strides = [1, 1]} : vector<8x512xf32> to vector<8x128xf32>
    %251 = math.tanh %250 : vector<8x128xf32>
    %252 = vector.extract_strided_slice %249 {offsets = [0, 128], sizes = [8, 128], strides = [1, 1]} : vector<8x384xf32> to vector<8x128xf32>
    %253 = arith.mulf %252, %211 : vector<8x128xf32>
    %254 = vector.extract_strided_slice %249 {offsets = [0, 0], sizes = [8, 128], strides = [1, 1]} : vector<8x384xf32> to vector<8x128xf32>
    %255 = arith.mulf %254, %251 : vector<8x128xf32>
    %256 = arith.addf %253, %255 : vector<8x128xf32>
    %257 = vector.extract_strided_slice %249 {offsets = [0, 256], sizes = [8, 128], strides = [1, 1]} : vector<8x384xf32> to vector<8x128xf32>
    %258 = math.tanh %256 : vector<8x128xf32>
    %259 = arith.mulf %257, %258 : vector<8x128xf32>
    %c6_51 = arith.constant 6 : index
    %c0_52 = arith.constant 0 : index
    %c0_53 = arith.constant 0 : index
    %260 = vector.load %arg0[%c6_51, %c0_52, %c0_53] : memref<8x8x1xf32, #tpu.memory_space<vmem>>, vector<1x8x1xf32>
    %261 = vector.shape_cast %260 : vector<1x8x1xf32> to vector<8x1xf32>
    %262 = vector.broadcast %261 : vector<8x1xf32> to vector<8x512xf32>
    %263 = vector.broadcast %1 : vector<1x512xf32> to vector<8x512xf32>
    %264 = arith.mulf %262, %263 : vector<8x512xf32>
    %265 = vector.broadcast %2 : vector<1x512xf32> to vector<8x512xf32>
    %266 = arith.addf %264, %265 : vector<8x512xf32>
    %cst_54 = arith.constant dense<0.000000e+00> : vector<8x512xf32>
    %267 = tpu.matmul %239, %0, %cst_54 {dimension_numbers = #tpu.dot_dimension_numbers<[1], [0], [0], [1], [0, 0, 1, 1], [], []>} : vector<8x128xf32>, vector<128x512xf32>, vector<8x512xf32> -> vector<8x512xf32>
    %268 = arith.addf %266, %267 : vector<8x512xf32>
    %269 = vector.extract_strided_slice %268 {offsets = [0, 0], sizes = [8, 384], strides = [1, 1]} : vector<8x512xf32> to vector<8x384xf32>
    %270 = arith.negf %269 : vector<8x384xf32>
    %271 = math.exp %270 : vector<8x384xf32>
    %cst_55 = arith.constant 1.000000e+00 : f32
    %272 = vector.broadcast %cst_55 : f32 to vector<8x384xf32>
    %273 = arith.addf %272, %271 : vector<8x384xf32>
    %274 = arith.divf %272, %273 : vector<8x384xf32>
    %275 = vector.extract_strided_slice %268 {offsets = [0, 384], sizes = [8, 128], strides = [1, 1]} : vector<8x512xf32> to vector<8x128xf32>
    %276 = math.tanh %275 : vector<8x128xf32>
    %277 = vector.extract_strided_slice %274 {offsets = [0, 128], sizes = [8, 128], strides = [1, 1]} : vector<8x384xf32> to vector<8x128xf32>
    %278 = arith.mulf %277, %236 : vector<8x128xf32>
    %279 = vector.extract_strided_slice %274 {offsets = [0, 0], sizes = [8, 128], strides = [1, 1]} : vector<8x384xf32> to vector<8x128xf32>
    %280 = arith.mulf %279, %276 : vector<8x128xf32>
    %281 = arith.addf %278, %280 : vector<8x128xf32>
    %282 = vector.extract_strided_slice %274 {offsets = [0, 256], sizes = [8, 128], strides = [1, 1]} : vector<8x384xf32> to vector<8x128xf32>
    %283 = math.tanh %281 : vector<8x128xf32>
    %284 = arith.mulf %282, %283 : vector<8x128xf32>
    %285 = tpu.concatenate %239, %259 in 1 : vector<8x128xf32>, vector<8x128xf32> -> vector<8x256xf32>
    %cst_56 = arith.constant dense<0.000000e+00> : vector<8x512xf32>
    %286 = tpu.matmul %285, %59, %cst_56 {dimension_numbers = #tpu.dot_dimension_numbers<[1], [0], [0], [1], [0, 0, 1, 1], [], []>} : vector<8x256xf32>, vector<256x512xf32>, vector<8x512xf32> -> vector<8x512xf32>
    %287 = vector.broadcast %3 : vector<1x512xf32> to vector<8x512xf32>
    %288 = arith.addf %286, %287 : vector<8x512xf32>
    %289 = vector.extract_strided_slice %288 {offsets = [0, 0], sizes = [8, 384], strides = [1, 1]} : vector<8x512xf32> to vector<8x384xf32>
    %290 = arith.negf %289 : vector<8x384xf32>
    %291 = math.exp %290 : vector<8x384xf32>
    %cst_57 = arith.constant 1.000000e+00 : f32
    %292 = vector.broadcast %cst_57 : f32 to vector<8x384xf32>
    %293 = arith.addf %292, %291 : vector<8x384xf32>
    %294 = arith.divf %292, %293 : vector<8x384xf32>
    %295 = vector.extract_strided_slice %288 {offsets = [0, 384], sizes = [8, 128], strides = [1, 1]} : vector<8x512xf32> to vector<8x128xf32>
    %296 = math.tanh %295 : vector<8x128xf32>
    %297 = vector.extract_strided_slice %294 {offsets = [0, 128], sizes = [8, 128], strides = [1, 1]} : vector<8x384xf32> to vector<8x128xf32>
    %298 = arith.mulf %297, %256 : vector<8x128xf32>
    %299 = vector.extract_strided_slice %294 {offsets = [0, 0], sizes = [8, 128], strides = [1, 1]} : vector<8x384xf32> to vector<8x128xf32>
    %300 = arith.mulf %299, %296 : vector<8x128xf32>
    %301 = arith.addf %298, %300 : vector<8x128xf32>
    %302 = vector.extract_strided_slice %294 {offsets = [0, 256], sizes = [8, 128], strides = [1, 1]} : vector<8x384xf32> to vector<8x128xf32>
    %303 = math.tanh %301 : vector<8x128xf32>
    %304 = arith.mulf %302, %303 : vector<8x128xf32>
    %c7 = arith.constant 7 : index
    %c0_58 = arith.constant 0 : index
    %c0_59 = arith.constant 0 : index
    %305 = vector.load %arg0[%c7, %c0_58, %c0_59] : memref<8x8x1xf32, #tpu.memory_space<vmem>>, vector<1x8x1xf32>
    %306 = vector.shape_cast %305 : vector<1x8x1xf32> to vector<8x1xf32>
    %307 = vector.broadcast %306 : vector<8x1xf32> to vector<8x512xf32>
    %308 = vector.broadcast %1 : vector<1x512xf32> to vector<8x512xf32>
    %309 = arith.mulf %307, %308 : vector<8x512xf32>
    %310 = vector.broadcast %2 : vector<1x512xf32> to vector<8x512xf32>
    %311 = arith.addf %309, %310 : vector<8x512xf32>
    %cst_60 = arith.constant dense<0.000000e+00> : vector<8x512xf32>
    %312 = tpu.matmul %284, %0, %cst_60 {dimension_numbers = #tpu.dot_dimension_numbers<[1], [0], [0], [1], [0, 0, 1, 1], [], []>} : vector<8x128xf32>, vector<128x512xf32>, vector<8x512xf32> -> vector<8x512xf32>
    %313 = arith.addf %311, %312 : vector<8x512xf32>
    %314 = vector.extract_strided_slice %313 {offsets = [0, 0], sizes = [8, 384], strides = [1, 1]} : vector<8x512xf32> to vector<8x384xf32>
    %315 = arith.negf %314 : vector<8x384xf32>
    %316 = math.exp %315 : vector<8x384xf32>
    %cst_61 = arith.constant 1.000000e+00 : f32
    %317 = vector.broadcast %cst_61 : f32 to vector<8x384xf32>
    %318 = arith.addf %317, %316 : vector<8x384xf32>
    %319 = arith.divf %317, %318 : vector<8x384xf32>
    %320 = vector.extract_strided_slice %313 {offsets = [0, 384], sizes = [8, 128], strides = [1, 1]} : vector<8x512xf32> to vector<8x128xf32>
    %321 = math.tanh %320 : vector<8x128xf32>
    %322 = vector.extract_strided_slice %319 {offsets = [0, 128], sizes = [8, 128], strides = [1, 1]} : vector<8x384xf32> to vector<8x128xf32>
    %323 = arith.mulf %322, %281 : vector<8x128xf32>
    %324 = vector.extract_strided_slice %319 {offsets = [0, 0], sizes = [8, 128], strides = [1, 1]} : vector<8x384xf32> to vector<8x128xf32>
    %325 = arith.mulf %324, %321 : vector<8x128xf32>
    %326 = arith.addf %323, %325 : vector<8x128xf32>
    %327 = vector.extract_strided_slice %319 {offsets = [0, 256], sizes = [8, 128], strides = [1, 1]} : vector<8x384xf32> to vector<8x128xf32>
    %328 = math.tanh %326 : vector<8x128xf32>
    %329 = arith.mulf %327, %328 : vector<8x128xf32>
    %330 = tpu.concatenate %284, %304 in 1 : vector<8x128xf32>, vector<8x128xf32> -> vector<8x256xf32>
    %cst_62 = arith.constant dense<0.000000e+00> : vector<8x512xf32>
    %331 = tpu.matmul %330, %59, %cst_62 {dimension_numbers = #tpu.dot_dimension_numbers<[1], [0], [0], [1], [0, 0, 1, 1], [], []>} : vector<8x256xf32>, vector<256x512xf32>, vector<8x512xf32> -> vector<8x512xf32>
    %332 = vector.broadcast %3 : vector<1x512xf32> to vector<8x512xf32>
    %333 = arith.addf %331, %332 : vector<8x512xf32>
    %334 = vector.extract_strided_slice %333 {offsets = [0, 0], sizes = [8, 384], strides = [1, 1]} : vector<8x512xf32> to vector<8x384xf32>
    %335 = arith.negf %334 : vector<8x384xf32>
    %336 = math.exp %335 : vector<8x384xf32>
    %cst_63 = arith.constant 1.000000e+00 : f32
    %337 = vector.broadcast %cst_63 : f32 to vector<8x384xf32>
    %338 = arith.addf %337, %336 : vector<8x384xf32>
    %339 = arith.divf %337, %338 : vector<8x384xf32>
    %340 = vector.extract_strided_slice %333 {offsets = [0, 384], sizes = [8, 128], strides = [1, 1]} : vector<8x512xf32> to vector<8x128xf32>
    %341 = math.tanh %340 : vector<8x128xf32>
    %342 = vector.extract_strided_slice %339 {offsets = [0, 128], sizes = [8, 128], strides = [1, 1]} : vector<8x384xf32> to vector<8x128xf32>
    %343 = arith.mulf %342, %301 : vector<8x128xf32>
    %344 = vector.extract_strided_slice %339 {offsets = [0, 0], sizes = [8, 128], strides = [1, 1]} : vector<8x384xf32> to vector<8x128xf32>
    %345 = arith.mulf %344, %341 : vector<8x128xf32>
    %346 = arith.addf %343, %345 : vector<8x128xf32>
    %347 = vector.extract_strided_slice %339 {offsets = [0, 256], sizes = [8, 128], strides = [1, 1]} : vector<8x384xf32> to vector<8x128xf32>
    %348 = math.tanh %346 : vector<8x128xf32>
    %349 = arith.mulf %347, %348 : vector<8x128xf32>
    %350 = tpu.concatenate %329, %349 in 1 : vector<8x128xf32>, vector<8x128xf32> -> vector<8x256xf32>
    %cst_64 = arith.constant dense<0.000000e+00> : vector<8x512xf32>
    %351 = tpu.matmul %350, %59, %cst_64 {dimension_numbers = #tpu.dot_dimension_numbers<[1], [0], [0], [1], [0, 0, 1, 1], [], []>} : vector<8x256xf32>, vector<256x512xf32>, vector<8x512xf32> -> vector<8x512xf32>
    %352 = vector.broadcast %3 : vector<1x512xf32> to vector<8x512xf32>
    %353 = arith.addf %351, %352 : vector<8x512xf32>
    %354 = vector.extract_strided_slice %353 {offsets = [0, 0], sizes = [8, 384], strides = [1, 1]} : vector<8x512xf32> to vector<8x384xf32>
    %355 = arith.negf %354 : vector<8x384xf32>
    %356 = math.exp %355 : vector<8x384xf32>
    %cst_65 = arith.constant 1.000000e+00 : f32
    %357 = vector.broadcast %cst_65 : f32 to vector<8x384xf32>
    %358 = arith.addf %357, %356 : vector<8x384xf32>
    %359 = arith.divf %357, %358 : vector<8x384xf32>
    %360 = vector.extract_strided_slice %353 {offsets = [0, 384], sizes = [8, 128], strides = [1, 1]} : vector<8x512xf32> to vector<8x128xf32>
    %361 = math.tanh %360 : vector<8x128xf32>
    %362 = vector.extract_strided_slice %359 {offsets = [0, 128], sizes = [8, 128], strides = [1, 1]} : vector<8x384xf32> to vector<8x128xf32>
    %363 = arith.mulf %362, %346 : vector<8x128xf32>
    %364 = vector.extract_strided_slice %359 {offsets = [0, 0], sizes = [8, 128], strides = [1, 1]} : vector<8x384xf32> to vector<8x128xf32>
    %365 = arith.mulf %364, %361 : vector<8x128xf32>
    %366 = arith.addf %363, %365 : vector<8x128xf32>
    %367 = vector.extract_strided_slice %359 {offsets = [0, 256], sizes = [8, 128], strides = [1, 1]} : vector<8x384xf32> to vector<8x128xf32>
    %368 = math.tanh %366 : vector<8x128xf32>
    %369 = arith.mulf %367, %368 : vector<8x128xf32>
    %370 = tpu.iota {dimensions = array<i32: 0>} : vector<8x1xi32>
    %c2_i32 = arith.constant 2 : i32
    %371 = vector.broadcast %c2_i32 : i32 to vector<8x1xi32>
    %372 = arith.cmpi slt, %370, %371 : vector<8x1xi32>
    %373 = arith.extui %372 : vector<8x1xi1> to vector<8x1xi32>
    %374 = arith.sitofp %373 : vector<8x1xi32> to vector<8x1xf32>
    %375 = vector.broadcast %374 : vector<8x1xf32> to vector<8x128xf32>
    %376 = arith.mulf %369, %375 : vector<8x128xf32>
    %cst_66 = arith.constant dense<0.000000e+00> : vector<128xf32>
    %377 = vector.multi_reduction <add>, %376, %cst_66 [0] : vector<8x128xf32> to vector<128xf32>
    %378 = vector.shape_cast %377 : vector<128xf32> to vector<1x128xf32>
    %cst_67 = arith.constant 5.000000e-01 : f32
    %379 = vector.broadcast %cst_67 : f32 to vector<1x128xf32>
    %380 = arith.mulf %378, %379 : vector<1x128xf32>
    %381 = vector.broadcast %380 : vector<1x128xf32> to vector<8x128xf32>
    %382 = arith.subf %369, %381 : vector<8x128xf32>
    %383 = vector.broadcast %374 : vector<8x1xf32> to vector<8x128xf32>
    %384 = arith.mulf %382, %383 : vector<8x128xf32>
    %385 = arith.mulf %384, %384 : vector<8x128xf32>
    %cst_68 = arith.constant dense<0.000000e+00> : vector<128xf32>
    %386 = vector.multi_reduction <add>, %385, %cst_68 [0] : vector<8x128xf32> to vector<128xf32>
    %387 = vector.shape_cast %386 : vector<128xf32> to vector<1x128xf32>
    %cst_69 = arith.constant 5.000000e-01 : f32
    %388 = vector.broadcast %cst_69 : f32 to vector<1x128xf32>
    %389 = arith.mulf %387, %388 : vector<1x128xf32>
    %390 = vector.broadcast %380 : vector<1x128xf32> to vector<8x128xf32>
    %391 = arith.subf %369, %390 : vector<8x128xf32>
    %cst_70 = arith.constant 9.99999974E-6 : f32
    %392 = vector.broadcast %cst_70 : f32 to vector<1x128xf32>
    %393 = arith.addf %389, %392 : vector<1x128xf32>
    %394 = math.rsqrt %393 : vector<1x128xf32>
    %395 = vector.broadcast %394 : vector<1x128xf32> to vector<8x128xf32>
    %396 = arith.mulf %391, %395 : vector<8x128xf32>
    %397 = vector.broadcast %4 : vector<1x128xf32> to vector<8x128xf32>
    %398 = arith.mulf %397, %396 : vector<8x128xf32>
    %399 = vector.broadcast %5 : vector<1x128xf32> to vector<8x128xf32>
    %400 = arith.addf %398, %399 : vector<8x128xf32>
    %cst_71 = arith.constant 0.000000e+00 : f32
    %401 = vector.broadcast %cst_71 : f32 to vector<8x128xf32>
    %402 = arith.maximumf %400, %401 : vector<8x128xf32>
    %403 = vector.broadcast %6 : vector<1x128xf32> to vector<8x128xf32>
    %404 = arith.mulf %402, %403 : vector<8x128xf32>
    %cst_72 = arith.constant dense<0.000000e+00> : vector<8xf32>
    %405 = vector.multi_reduction <add>, %404, %cst_72 [1] : vector<8x128xf32> to vector<8xf32>
    %406 = vector.shape_cast %405 : vector<8xf32> to vector<8x1xf32>
    %407 = vector.broadcast %406 : vector<8x1xf32> to vector<8x128xf32>
    %408 = vector.broadcast %7 : vector<1x128xf32> to vector<8x128xf32>
    %409 = arith.addf %407, %408 : vector<8x128xf32>
    %c0_73 = arith.constant 0 : index
    %c0_74 = arith.constant 0 : index
    %410 = vector.load %arg4[%c0_73, %c0_74] : memref<8x128xf32, #tpu.memory_space<vmem>>, vector<8x128xf32>
    tpu.vector_store %arg4[%c0_73, %c0_74], %409 {strides = array<i32>} : memref<8x128xf32, #tpu.memory_space<vmem>>, vector<8x128xf32>,
    return
  }
}

</mosaic_0001>

<llo_original>
// kernel: battery_lstm_forward.1
$region0: #{battery_lstm_forward.1}
  #allocation0 [shape = 'u32[]', space=smem, size = 0x4, offset = 0x4, fixed_abs, tag = 'smem constant byte address 0x4 - core index']
  #allocation1 [shape = 'u32[144,128]{1,0:T(1,128)}', space=vmem, size = 0x12000, scoped, tag = 'internal scratch']
  #allocation2 [shape = 'f32[256,512]{1,0:T(8,128)}', space=vmem, size = 0x80000, scoped, tag = 'scratch operand']
  #allocation3 [shape = 's32[1]{0}', space=sflag, size = 0x4, scoped, tag = 'scratch operand']
  #allocation6 [shape = 's32[]', space=sflag, size = 0x4, offset = 0, fixed_abs, tag = 'sflag constant byte address 0x0 - dummy sync flag']
  #allocation7 [shape = 's32[]', space=sflag, size = 0x4, offset = 0, fixed_abs, tag = 'sflag constant byte address 0x0 - dummy sync flag']
  #allocation8 [shape = 'u32[]', space=smem, size = 0x4, offset = 0x44, fixed_abs, tag = 'smem constant byte address 0x44 - assertion arg 0']
  #allocation9 [shape = 'u32[]', space=smem, size = 0x4, offset = 0x48, fixed_abs, tag = 'smem constant byte address 0x48 - assertion arg 1']
  %s0 = inlined_call_operand.vmem [shape: f32[8,8,1], index: 0, kind: input, shape index: {}]
  %s1 = inlined_call_operand.hbm [shape: f32[128,512], index: 1, kind: input, shape index: {}]
  %s2 = inlined_call_operand.hbm [shape: f32[256,512], index: 2, kind: input, shape index: {}]
  %s3 = inlined_call_operand.vmem [shape: f32[8,512], index: 3, kind: input, shape index: {}]
  %s4 = inlined_call_operand.vmem [shape: f32[8,128], index: 4, kind: output, shape index: {}]
  %s5 = sld [smem:[#allocation0]]
  $region30: #{battery_lstm_forward.1} parent=0
    _
  %s7 = ssub.s32 1, %s5
  %s8 = scalar_select 0, %s7, %s5
  $region1: #{battery_lstm_forward.1} parent=0
    #allocation4 [shape = 'u8[262144]{0}', space=vmem, size = 0x40000, scoped, tag = 'input window, operand 1, single buffered']
    #allocation5 [shape = 's32[1]{0}', space=sflag, size = 0x4, scoped, tag = 'scoped memory for battery_lstm_forward.1']
    %9 = vsyncpa [#allocation5], 0
    // Predicated region
    $region2: #{battery_lstm_forward.1} parent=1 // pred_check
      _
    $region3: #{battery_lstm_forward.1} parent=1 // pred_check_branch
      %11 = sbr.rel (0) target = $region5
    $region4: #{battery_lstm_forward.1} parent=1 // pred_region
      _
    $region5: #{battery_lstm_forward.1} parent=1 // pred_fallthru
      _
    // Predicated region
    $region6: #{battery_lstm_forward.1} parent=1 // pred_check
      _
    $region7: #{battery_lstm_forward.1} parent=1 // pred_check_branch
      %13 = sbr.rel (0) target = $region9
    $region8: #{battery_lstm_forward.1} parent=1 // pred_region
      %s15 = ssub.s32 8192, 8192
      %16 = vsyncadd [#allocation5], %s15
      %s17 = sshll.u32 [#allocation4], 4
      %s18 = int_to_ptr.vmem [resolvable:$true] %s17
      %23 = dma.hbm_to_vmem [thread:$0]  %s1, 8192, %s18, [#allocation5], 512, 512, 32
    $region9: #{battery_lstm_forward.1} parent=1 // pred_fallthru
      _
    // Predicated region
    $region10: #{battery_lstm_forward.1} parent=1 // pred_check
      _
    $region11: #{battery_lstm_forward.1} parent=1 // pred_check_branch
      %25 = sbr.rel (0) target = $region13
    $region12: #{battery_lstm_forward.1} parent=1 // pred_region
      _
    $region13: #{battery_lstm_forward.1} parent=1 // pred_fallthru
      _
    // Predicated region
    $region14: #{battery_lstm_forward.1} parent=1 // pred_check
      _
    $region15: #{battery_lstm_forward.1} parent=1 // pred_check_branch
      %27 = sbr.rel (0) target = $region17
    $region16: #{battery_lstm_forward.1} parent=1 // pred_region
      %28 = dma.done [#allocation5], 8192
    $region17: #{battery_lstm_forward.1} parent=1 // pred_fallthru
      _
    // Predicated region
    $region18: #{battery_lstm_forward.1} parent=1 // pred_check
      _
    $region19: #{battery_lstm_forward.1} parent=1 // pred_check_branch
      %30 = sbr.rel target = $region21
    $region20: #{battery_lstm_forward.1} parent=1 // pred_region
      %31 = sst [smem:[#allocation8]] [#allocation7]
      %32 = sst [smem:[#allocation9]] [#allocation6]
    $region21: #{battery_lstm_forward.1} parent=1 // pred_fallthru
      _
    %34 = shalt.err (0)
    %s36 = sshll.u32 [#allocation2], 4
    %s37 = int_to_ptr.vmem [resolvable:$true] %s36
    %39 = dma.hbm_to_vmem [thread:$0]  %s2, 16384, %s37, [#allocation3]
    %v40 = vld [vmem:[#allocation4] sm:$0xff]
    %v41 = vld [vmem:[#allocation4 + $0x8] sm:$0xff]
    %v42 = vld [vmem:[#allocation4 + $0x10] sm:$0xff]
    %v43 = vld [vmem:[#allocation4 + $0x18] sm:$0xff]
    %v44 = vld [vmem:[#allocation4 + $0x20] sm:$0xff]
    %v45 = vld [vmem:[#allocation4 + $0x28] sm:$0xff]
    %v46 = vld [vmem:[#allocation4 + $0x30] sm:$0xff]
    %v47 = vld [vmem:[#allocation4 + $0x38] sm:$0xff]
    %v48 = vld [vmem:[#allocation4 + $0x40] sm:$0xff]
    %v49 = vld [vmem:[#allocation4 + $0x48] sm:$0xff]
    %v50 = vld [vmem:[#allocation4 + $0x50] sm:$0xff]
    %v51 = vld [vmem:[#allocation4 + $0x58] sm:$0xff]
    %v52 = vld [vmem:[#allocation4 + $0x60] sm:$0xff]
    %v53 = vld [vmem:[#allocation4 + $0x68] sm:$0xff]
    %v54 = vld [vmem:[#allocation4 + $0x70] sm:$0xff]
    %v55 = vld [vmem:[#allocation4 + $0x78] sm:$0xff]
    %v56 = vld [vmem:[#allocation4 + $0x80] sm:$0xff]
    %v57 = vld [vmem:[#allocation4 + $0x88] sm:$0xff]
    %v58 = vld [vmem:[#allocation4 + $0x90] sm:$0xff]
    %v59 = vld [vmem:[#allocation4 + $0x98] sm:$0xff]
    %v60 = vld [vmem:[#allocation4 + $0xa0] sm:$0xff]
    %v61 = vld [vmem:[#allocation4 + $0xa8] sm:$0xff]
    %v62 = vld [vmem:[#allocation4 + $0xb0] sm:$0xff]
    %v63 = vld [vmem:[#allocation4 + $0xb8] sm:$0xff]
    %v64 = vld [vmem:[#allocation4 + $0xc0] sm:$0xff]
    %v65 = vld [vmem:[#allocation4 + $0xc8] sm:$0xff]
    %v66 = vld [vmem:[#allocation4 + $0xd0] sm:$0xff]
    %v67 = vld [vmem:[#allocation4 + $0xd8] sm:$0xff]
    %v68 = vld [vmem:[#allocation4 + $0xe0] sm:$0xff]
    %v69 = vld [vmem:[#allocation4 + $0xe8] sm:$0xff]
    %v70 = vld [vmem:[#allocation4 + $0xf0] sm:$0xff]
    %v71 = vld [vmem:[#allocation4 + $0xf8] sm:$0xff]
    %v72 = vld [vmem:[#allocation4 + $0x100] sm:$0xff]
    %v73 = vld [vmem:[#allocation4 + $0x108] sm:$0xff]
    %v74 = vld [vmem:[#allocation4 + $0x110] sm:$0xff]
    %v75 = vld [vmem:[#allocation4 + $0x118] sm:$0xff]
    %v76 = vld [vmem:[#allocation4 + $0x120] sm:$0xff]
    %v77 = vld [vmem:[#allocation4 + $0x128] sm:$0xff]
    %v78 = vld [vmem:[#allocation4 + $0x130] sm:$0xff]
    %v79 = vld [vmem:[#allocation4 + $0x138] sm:$0xff]
    %v80 = vld [vmem:[#allocation4 + $0x140] sm:$0xff]
    %v81 = vld [vmem:[#allocation4 + $0x148] sm:$0xff]
    %v82 = vld [vmem:[#allocation4 + $0x150] sm:$0xff]
    %v83 = vld [vmem:[#allocation4 + $0x158] sm:$0xff]
    %v84 = vld [vmem:[#allocation4 + $0x160] sm:$0xff]
    %v85 = vld [vmem:[#allocation4 + $0x168] sm:$0xff]
    %v86 = vld [vmem:[#allocation4 + $0x170] sm:$0xff]
    %v87 = vld [vmem:[#allocation4 + $0x178] sm:$0xff]
    %v88 = vld [vmem:[#allocation4 + $0x180] sm:$0xff]
    %v89 = vld [vmem:[#allocation4 + $0x188] sm:$0xff]
    %v90 = vld [vmem:[#allocation4 + $0x190] sm:$0xff]
    %v91 = vld [vmem:[#allocation4 + $0x198] sm:$0xff]
    %v92 = vld [vmem:[#allocation4 + $0x1a0] sm:$0xff]
    %v93 = vld [vmem:[#allocation4 + $0x1a8] sm:$0xff]
    %v94 = vld [vmem:[#allocation4 + $0x1b0] sm:$0xff]
    %v95 = vld [vmem:[#allocation4 + $0x1b8] sm:$0xff]
    %v96 = vld [vmem:[#allocation4 + $0x1c0] sm:$0xff]
    %v97 = vld [vmem:[#allocation4 + $0x1c8] sm:$0xff]
    %v98 = vld [vmem:[#allocation4 + $0x1d0] sm:$0xff]
    %v99 = vld [vmem:[#allocation4 + $0x1d8] sm:$0xff]
    %v100 = vld [vmem:[#allocation4 + $0x1e0] sm:$0xff]
    %v101 = vld [vmem:[#allocation4 + $0x1e8] sm:$0xff]
    %v102 = vld [vmem:[#allocation4 + $0x1f0] sm:$0xff]
    %v103 = vld [vmem:[#allocation4 + $0x1f8] sm:$0xff]
    %v104 = vld [vmem:[%s3] ss:$8 sm:$0xf]
    %s105 = scalar_lea.vmem %s3, 1
    %v106 = vld [vmem:[%s105] ss:$8 sm:$0xf]
    %s107 = scalar_lea.vmem %s3, 2
    %v108 = vld [vmem:[%s107] ss:$8 sm:$0xf]
    %v109 = vld [vmem:[%s3 + $0x3] ss:$0 sm:$0xff]
    %v110 = vld [vmem:[%s3 + $0x4] ss:$0 sm:$0xff]
    %v111 = vld [vmem:[%s3 + $0x5] ss:$0 sm:$0xff]
    %v112 = vld [vmem:[%s3 + $0x6] ss:$0 sm:$0xff]
    %v113 = vld [vmem:[%s0] sm:$0xff]
    %115 = vset.pattern.permute.xlu0 0
    %116 = vperm.xlu0 %115, %v113
    %v117 = vpop.permute.xlu0 %116
    %v120 = vlaneseq
    %v121 = vshrl.u32 %v120, 7
    %v122 = vsub.s32 0, %v121
    %v123 = vrot.slane %v104, %v122
    %v124 = vlaneseq
    %v125 = vshrl.u32 %v124, 7
    %v126 = vsub.s32 1, %v125
    %v127 = vrot.slane %v104, %v126
    %v128 = vlaneseq
    %v129 = vshrl.u32 %v128, 7
    %v130 = vsub.s32 2, %v129
    %v131 = vrot.slane %v104, %v130
    %v132 = vlaneseq
    %v133 = vshrl.u32 %v132, 7
    %v134 = vsub.s32 3, %v133
    %v135 = vrot.slane %v104, %v134
    %v140 = vmul.f32 %v117, %v123
    %v141 = vmul.f32 %v117, %v127
    %v142 = vmul.f32 %v117, %v131
    %v143 = vmul.f32 %v117, %v135
    %v145 = vlaneseq
    %v146 = vshrl.u32 %v145, 7
    %v147 = vsub.s32 0, %v146
    %v148 = vrot.slane %v106, %v147
    %v149 = vlaneseq
    %v150 = vshrl.u32 %v149, 7
    %v151 = vsub.s32 1, %v150
    %v152 = vrot.slane %v106, %v151
    %v153 = vlaneseq
    %v154 = vshrl.u32 %v153, 7
    %v155 = vsub.s32 2, %v154
    %v156 = vrot.slane %v106, %v155
    %v157 = vlaneseq
    %v158 = vshrl.u32 %v157, 7
    %v159 = vsub.s32 3, %v158
    %v160 = vrot.slane %v106, %v159
    %v165 = vadd.f32 %v140, %v148
    %v166 = vadd.f32 %v141, %v152
    %v167 = vadd.f32 %v142, %v156
    %v168 = vadd.f32 %v143, %v160
    %169 = vmatprep.subr.mxu0 %v101
    %170 = vmatpush1.msra.mxu0 %v100
    %171 = vmatprep.subr.mxu0 %v97
    %172 = vmatpush1.msra.mxu0 %v96
    %173 = vmatprep.subr.mxu0 %v93
    %174 = vmatpush1.msra.mxu0 %v92
    %175 = vmatprep.subr.mxu0 %v89
    %176 = vmatpush1.msra.mxu0 %v88
    %177 = vmatprep.subr.mxu0 %v85
    %178 = vmatpush1.msra.mxu0 %v84
    %179 = vmatprep.subr.mxu0 %v81
    %180 = vmatpush1.msra.mxu0 %v80
    %181 = vmatprep.subr.mxu0 %v77
    %182 = vmatpush1.msra.mxu0 %v76
    %183 = vmatprep.subr.mxu0 %v73
    %184 = vmatpush1.msra.mxu0 %v72
    %185 = vmatprep.subr.mxu0 %v69
    %186 = vmatpush1.msra.mxu0 %v68
    %187 = vmatprep.subr.mxu0 %v65
    %188 = vmatpush1.msra.mxu0 %v64
    %189 = vmatprep.subr.mxu0 %v61
    %190 = vmatpush1.msra.mxu0 %v60
    %191 = vmatprep.subr.mxu0 %v57
    %192 = vmatpush1.msra.mxu0 %v56
    %193 = vmatprep.subr.mxu0 %v53
    %194 = vmatpush1.msra.mxu0 %v52
    %195 = vmatprep.subr.mxu0 %v49
    %196 = vmatpush1.msra.mxu0 %v48
    %197 = vmatprep.subr.mxu0 %v45
    %198 = vmatpush1.msra.mxu0 %v44
    %199 = vmatprep.subr.mxu0 %v41
    %200 = vmatpush1.msra.mxu0 %v40
    %201 = vmatprep.subr.mxu0 0.0
    %202 = vmatpush2.msra.mxu0 0.0
    %203 = vmatprep.subr.mxu0 0.0
    %204 = vmatpush2.msra.mxu0 0.0
    %205 = vmatprep.subr.mxu0 0.0
    %206 = vmatpush2.msra.mxu0 0.0
    %207 = vmatprep.subr.mxu0 0.0
    %208 = vmatpush2.msra.mxu0 0.0
    %209 = vmatprep.subr.mxu0 0.0
    %210 = vmatpush2.msra.mxu0 0.0
    %211 = vmatprep.subr.mxu0 0.0
    %212 = vmatpush2.msra.mxu0 0.0
    %213 = vmatprep.subr.mxu0 0.0
    %214 = vmatpush2.msra.mxu0 0.0
    %215 = vmatprep.subr.mxu0 0.0
    %216 = vmatpush2.msra.mxu0 0.0
    %217 = vmatprep.subr.mxu0 0.0
    %218 = vmatpush2.msra.mxu0 0.0
    %219 = vmatprep.subr.mxu0 0.0
    %220 = vmatpush2.msra.mxu0 0.0
    %221 = vmatprep.subr.mxu0 0.0
    %222 = vmatpush2.msra.mxu0 0.0
    %223 = vmatprep.subr.mxu0 0.0
    %224 = vmatpush2.msra.mxu0 0.0
    %225 = vmatprep.subr.mxu0 0.0
    %226 = vmatpush2.msra.mxu0 0.0
    %227 = vmatprep.subr.mxu0 0.0
    %228 = vmatpush2.msra.mxu0 0.0
    %229 = vmatprep.subr.mxu0 0.0
    %230 = vmatpush2.msra.mxu0 0.0
    %231 = vmatprep.subr.mxu0 0.0
    %232 = vmatpush2.msra.mxu0 0.0
    %233 = vmatprep.mubr.f32.mxu0 0.0
    %234 = vmatmul.mubr.f32.gmra.mxu0 0.0
    %v235 = vpop.f32.mrf.mxu0
    %v236 = vadd.f32 0.0, %v235
    %v237 = vpop.f32.mrf.mxu0
    %v238 = vadd.f32 0.0, %v237
    %239 = vdwg.mxu0
    %240 = vmatprep.subr.mxu0 %v103
    %241 = vmatpush1.msra.mxu0 %v102
    %242 = vmatprep.subr.mxu0 %v99
    %243 = vmatpush1.msra.mxu0 %v98
    %244 = vmatprep.subr.mxu0 %v95
    %245 = vmatpush1.msra.mxu0 %v94
    %246 = vmatprep.subr.mxu0 %v91
    %247 = vmatpush1.msra.mxu0 %v90
    %248 = vmatprep.subr.mxu0 %v87
    %249 = vmatpush1.msra.mxu0 %v86
    %250 = vmatprep.subr.mxu0 %v83
    %251 = vmatpush1.msra.mxu0 %v82
    %252 = vmatprep.subr.mxu0 %v79
    %253 = vmatpush1.msra.mxu0 %v78
    %254 = vmatprep.subr.mxu0 %v75
    %255 = vmatpush1.msra.mxu0 %v74
    %256 = vmatprep.subr.mxu0 %v71
    %257 = vmatpush1.msra.mxu0 %v70
    %258 = vmatprep.subr.mxu0 %v67
    %259 = vmatpush1.msra.mxu0 %v66
    %260 = vmatprep.subr.mxu0 %v63
    %261 = vmatpush1.msra.mxu0 %v62
    %262 = vmatprep.subr.mxu0 %v59
    %263 = vmatpush1.msra.mxu0 %v58
    %264 = vmatprep.subr.mxu0 %v55
    %265 = vmatpush1.msra.mxu0 %v54
    %266 = vmatprep.subr.mxu0 %v51
    %267 = vmatpush1.msra.mxu0 %v50
    %268 = vmatprep.subr.mxu0 %v47
    %269 = vmatpush1.msra.mxu0 %v46
    %270 = vmatprep.subr.mxu0 %v43
    %271 = vmatpush1.msra.mxu0 %v42
    %272 = vmatprep.subr.mxu0 0.0
    %273 = vmatpush2.msra.mxu0 0.0
    %274 = vmatprep.subr.mxu0 0.0
    %275 = vmatpush2.msra.mxu0 0.0
    %276 = vmatprep.subr.mxu0 0.0
    %277 = vmatpush2.msra.mxu0 0.0
    %278 = vmatprep.subr.mxu0 0.0
    %279 = vmatpush2.msra.mxu0 0.0
    %280 = vmatprep.subr.mxu0 0.0
    %281 = vmatpush2.msra.mxu0 0.0
    %282 = vmatprep.subr.mxu0 0.0
    %283 = vmatpush2.msra.mxu0 0.0
    %284 = vmatprep.subr.mxu0 0.0
    %285 = vmatpush2.msra.mxu0 0.0
    %286 = vmatprep.subr.mxu0 0.0
    %287 = vmatpush2.msra.mxu0 0.0
    %288 = vmatprep.subr.mxu0 0.0
    %289 = vmatpush2.msra.mxu0 0.0
    %290 = vmatprep.subr.mxu0 0.0
    %291 = vmatpush2.msra.mxu0 0.0
    %292 = vmatprep.subr.mxu0 0.0
    %293 = vmatpush2.msra.mxu0 0.0
    %294 = vmatprep.subr.mxu0 0.0
    %295 = vmatpush2.msra.mxu0 0.0
    %296 = vmatprep.subr.mxu0 0.0
    %297 = vmatpush2.msra.mxu0 0.0
    %298 = vmatprep.subr.mxu0 0.0
    %299 = vmatpush2.msra.mxu0 0.0
    %300 = vmatprep.subr.mxu0 0.0
    %301 = vmatpush2.msra.mxu0 0.0
    %302 = vmatprep.subr.mxu0 0.0
    %303 = vmatpush2.msra.mxu0 0.0
    %304 = vmatprep.mubr.f32.mxu0 0.0
    %305 = vmatmul.mubr.f32.gmra.mxu0 0.0
    %v306 = vpop.f32.mrf.mxu0
    %v307 = vadd.f32 0.0, %v306
    %v308 = vpop.f32.mrf.mxu0
    %v309 = vadd.f32 0.0, %v308
    %310 = vdwg.mxu0
    %v311 = vadd.f32 %v165, %v236
    %v312 = vadd.f32 %v166, %v238
    %v313 = vadd.f32 %v167, %v307
    %v314 = vadd.f32 %v168, %v309
    %v315 = vxor.u32 %v311, 2147483648
    %v316 = vxor.u32 %v312, 2147483648
    %v317 = vxor.u32 %v313, 2147483648
    %v318 = vmul.f32 %v315, 1.442695
    %v319 = vpow.pop %v318
    %v320 = vmul.f32 %v316, 1.442695
    %v321 = vpow.pop %v320
    %v322 = vmul.f32 %v317, 1.442695
    %v323 = vpow.pop %v322
    %v324 = vadd.f32 %v319, 1.0
    %v325 = vadd.f32 %v321, 1.0
    %v326 = vadd.f32 %v323, 1.0
    %v327 = vrcp.pop %v324
    %v328 = vmul.f32 1.0, %v327
    %v329 = vrcp.pop %v325
    %v330 = vmul.f32 1.0, %v329
    %v331 = vrcp.pop %v326
    %v332 = vmul.f32 1.0, %v331
    %v333 = vtanh.pop %v314
    %v334 = vmul.f32 %v330, 0.0
    %v335 = vmul.f32 %v328, %v333
    %v336 = vadd.f32 %v334, %v335
    %v337 = vtanh.pop %v336
    %v338 = vmul.f32 %v332, %v337
    %s339 = scalar_lea.vmem %s0, 8
    %v340 = vld [vmem:[%s339] sm:$0xff]
    %342 = vset.pattern.permute.xlu0 0
    %343 = vperm.xlu0 %342, %v340
    %v344 = vpop.permute.xlu0 %343
    %v346 = vmul.f32 %v344, %v123
    %v347 = vmul.f32 %v344, %v127
    %v348 = vmul.f32 %v344, %v131
    %v349 = vmul.f32 %v344, %v135
    %v350 = vadd.f32 %v346, %v148
    %v351 = vadd.f32 %v347, %v152
    %v352 = vadd.f32 %v348, %v156
    %v353 = vadd.f32 %v349, %v160
    %354 = vmatprep.subr.mxu0 %v101
    %355 = vmatpush1.msra.mxu0 %v100
    %356 = vmatprep.subr.mxu0 %v97
    %357 = vmatpush1.msra.mxu0 %v96
    %358 = vmatprep.subr.mxu0 %v93
    %359 = vmatpush1.msra.mxu0 %v92
    %360 = vmatprep.subr.mxu0 %v89
    %361 = vmatpush1.msra.mxu0 %v88
    %362 = vmatprep.subr.mxu0 %v85
    %363 = vmatpush1.msra.mxu0 %v84
    %364 = vmatprep.subr.mxu0 %v81
    %365 = vmatpush1.msra.mxu0 %v80
    %366 = vmatprep.subr.mxu0 %v77
    %367 = vmatpush1.msra.mxu0 %v76
    %368 = vmatprep.subr.mxu0 %v73
    %369 = vmatpush1.msra.mxu0 %v72
    %370 = vmatprep.subr.mxu0 %v69
    %371 = vmatpush1.msra.mxu0 %v68
    %372 = vmatprep.subr.mxu0 %v65
    %373 = vmatpush1.msra.mxu0 %v64
    %374 = vmatprep.subr.mxu0 %v61
    %375 = vmatpush1.msra.mxu0 %v60
    %376 = vmatprep.subr.mxu0 %v57
    %377 = vmatpush1.msra.mxu0 %v56
    %378 = vmatprep.subr.mxu0 %v53
    %379 = vmatpush1.msra.mxu0 %v52
    %380 = vmatprep.subr.mxu0 %v49
    %381 = vmatpush1.msra.mxu0 %v48
    %382 = vmatprep.subr.mxu0 %v45
    %383 = vmatpush1.msra.mxu0 %v44
    %384 = vmatprep.subr.mxu0 %v41
    %385 = vmatpush1.msra.mxu0 %v40
    %386 = vmatprep.subr.mxu0 0.0
    %387 = vmatpush2.msra.mxu0 0.0
    %388 = vmatprep.subr.mxu0 0.0
    %389 = vmatpush2.msra.mxu0 0.0
    %390 = vmatprep.subr.mxu0 0.0
    %391 = vmatpush2.msra.mxu0 0.0
    %392 = vmatprep.subr.mxu0 0.0
    %393 = vmatpush2.msra.mxu0 0.0
    %394 = vmatprep.subr.mxu0 0.0
    %395 = vmatpush2.msra.mxu0 0.0
    %396 = vmatprep.subr.mxu0 0.0
    %397 = vmatpush2.msra.mxu0 0.0
    %398 = vmatprep.subr.mxu0 0.0
    %399 = vmatpush2.msra.mxu0 0.0
    %400 = vmatprep.subr.mxu0 0.0
    %401 = vmatpush2.msra.mxu0 0.0
    %402 = vmatprep.subr.mxu0 0.0
    %403 = vmatpush2.msra.mxu0 0.0
    %404 = vmatprep.subr.mxu0 0.0
    %405 = vmatpush2.msra.mxu0 0.0
    %406 = vmatprep.subr.mxu0 0.0
    %407 = vmatpush2.msra.mxu0 0.0
    %408 = vmatprep.subr.mxu0 0.0
    %409 = vmatpush2.msra.mxu0 0.0
    %410 = vmatprep.subr.mxu0 0.0
    %411 = vmatpush2.msra.mxu0 0.0
    %412 = vmatprep.subr.mxu0 0.0
    %413 = vmatpush2.msra.mxu0 0.0
    %414 = vmatprep.subr.mxu0 0.0
    %415 = vmatpush2.msra.mxu0 0.0
    %416 = vmatprep.subr.mxu0 0.0
    %417 = vmatpush2.msra.mxu0 0.0
    %418 = vmatprep.mubr.f32.mxu0 0.0
    %419 = vmatmul.mubr.f32.gmra.mxu0 %v338
    %v420 = vpop.f32.mrf.mxu0
    %v421 = vadd.f32 0.0, %v420
    %v422 = vpop.f32.mrf.mxu0
    %v423 = vadd.f32 0.0, %v422
    %424 = vdwg.mxu0
    %425 = vmatprep.subr.mxu0 %v103
    %426 = vmatpush1.msra.mxu0 %v102
    %427 = vmatprep.subr.mxu0 %v99
    %428 = vmatpush1.msra.mxu0 %v98
    %429 = vmatprep.subr.mxu0 %v95
    %430 = vmatpush1.msra.mxu0 %v94
    %431 = vmatprep.subr.mxu0 %v91
    %432 = vmatpush1.msra.mxu0 %v90
    %433 = vmatprep.subr.mxu0 %v87
    %434 = vmatpush1.msra.mxu0 %v86
    %435 = vmatprep.subr.mxu0 %v83
    %436 = vmatpush1.msra.mxu0 %v82
    %437 = vmatprep.subr.mxu0 %v79
    %438 = vmatpush1.msra.mxu0 %v78
    %439 = vmatprep.subr.mxu0 %v75
    %440 = vmatpush1.msra.mxu0 %v74
    %441 = vmatprep.subr.mxu0 %v71
    %442 = vmatpush1.msra.mxu0 %v70
    %443 = vmatprep.subr.mxu0 %v67
    %444 = vmatpush1.msra.mxu0 %v66
    %445 = vmatprep.subr.mxu0 %v63
    %446 = vmatpush1.msra.mxu0 %v62
    %447 = vmatprep.subr.mxu0 %v59
    %448 = vmatpush1.msra.mxu0 %v58
    %449 = vmatprep.subr.mxu0 %v55
    %450 = vmatpush1.msra.mxu0 %v54
    %451 = vmatprep.subr.mxu0 %v51
    %452 = vmatpush1.msra.mxu0 %v50
    %453 = vmatprep.subr.mxu0 %v47
    %454 = vmatpush1.msra.mxu0 %v46
    %455 = vmatprep.subr.mxu0 %v43
    %456 = vmatpush1.msra.mxu0 %v42
    %457 = vmatprep.subr.mxu0 0.0
    %458 = vmatpush2.msra.mxu0 0.0
    %459 = vmatprep.subr.mxu0 0.0
    %460 = vmatpush2.msra.mxu0 0.0
    %461 = vmatprep.subr.mxu0 0.0
    %462 = vmatpush2.msra.mxu0 0.0
    %463 = vmatprep.subr.mxu0 0.0
    %464 = vmatpush2.msra.mxu0 0.0
    %465 = vmatprep.subr.mxu0 0.0
    %466 = vmatpush2.msra.mxu0 0.0
    %467 = vmatprep.subr.mxu0 0.0
    %468 = vmatpush2.msra.mxu0 0.0
    %469 = vmatprep.subr.mxu0 0.0
    %470 = vmatpush2.msra.mxu0 0.0
    %471 = vmatprep.subr.mxu0 0.0
    %472 = vmatpush2.msra.mxu0 0.0
    %473 = vmatprep.subr.mxu0 0.0
    %474 = vmatpush2.msra.mxu0 0.0
    %475 = vmatprep.subr.mxu0 0.0
    %476 = vmatpush2.msra.mxu0 0.0
    %477 = vmatprep.subr.mxu0 0.0
    %478 = vmatpush2.msra.mxu0 0.0
    %479 = vmatprep.subr.mxu0 0.0
    %480 = vmatpush2.msra.mxu0 0.0
    %481 = vmatprep.subr.mxu0 0.0
    %482 = vmatpush2.msra.mxu0 0.0
    %483 = vmatprep.subr.mxu0 0.0
    %484 = vmatpush2.msra.mxu0 0.0
    %485 = vmatprep.subr.mxu0 0.0
    %486 = vmatpush2.msra.mxu0 0.0
    %487 = vmatprep.subr.mxu0 0.0
    %488 = vmatpush2.msra.mxu0 0.0
    %489 = vmatprep.mubr.f32.mxu0 0.0
    %490 = vmatmul.mubr.f32.gmra.mxu0 %v338
    %v491 = vpop.f32.mrf.mxu0
    %v492 = vadd.f32 0.0, %v491
    %v493 = vpop.f32.mrf.mxu0
    %v494 = vadd.f32 0.0, %v493
    %495 = vdwg.mxu0
    %v496 = vadd.f32 %v350, %v421
    %v497 = vadd.f32 %v351, %v423
    %v498 = vadd.f32 %v352, %v492
    %v499 = vadd.f32 %v353, %v494
    %v500 = vxor.u32 %v496, 2147483648
    %v501 = vxor.u32 %v497, 2147483648
    %v502 = vxor.u32 %v498, 2147483648
    %v503 = vmul.f32 %v500, 1.442695
    %v504 = vpow.pop %v503
    %v505 = vmul.f32 %v501, 1.442695
    %v506 = vpow.pop %v505
    %v507 = vmul.f32 %v502, 1.442695
    %v508 = vpow.pop %v507
    %v509 = vadd.f32 %v504, 1.0
    %v510 = vadd.f32 %v506, 1.0
    %v511 = vadd.f32 %v508, 1.0
    %v512 = vrcp.pop %v509
    %v513 = vmul.f32 1.0, %v512
    %v514 = vrcp.pop %v510
    %v515 = vmul.f32 1.0, %v514
    %v516 = vrcp.pop %v511
    %v517 = vmul.f32 1.0, %v516
    %v518 = vtanh.pop %v499
    %v519 = vmul.f32 %v515, %v336
    %v520 = vmul.f32 %v513, %v518
    %v521 = vadd.f32 %v519, %v520
    %v522 = vtanh.pop %v521
    %v523 = vmul.f32 %v517, %v522
    %s524 = smul.u32 8, 32
    %s525 = smul.u32 %s524, 4
    %s526 = sshll.u32 %s525, 4
    %527 = dma.done [#allocation3], %s526
    %v528 = vld [vmem:[#allocation2] sm:$0xff]
    %v529 = vld [vmem:[#allocation2 + $0x8] sm:$0xff]
    %v530 = vld [vmem:[#allocation2 + $0x10] sm:$0xff]
    %v531 = vld [vmem:[#allocation2 + $0x18] sm:$0xff]
    %v532 = vld [vmem:[#allocation2 + $0x20] sm:$0xff]
    %v533 = vld [vmem:[#allocation2 + $0x28] sm:$0xff]
    %v534 = vld [vmem:[#allocation2 + $0x30] sm:$0xff]
    %v535 = vld [vmem:[#allocation2 + $0x38] sm:$0xff]
    %v536 = vld [vmem:[#allocation2 + $0x40] sm:$0xff]
    %v537 = vld [vmem:[#allocation2 + $0x48] sm:$0xff]
    %v538 = vld [vmem:[#allocation2 + $0x50] sm:$0xff]
    %v539 = vld [vmem:[#allocation2 + $0x58] sm:$0xff]
    %v540 = vld [vmem:[#allocation2 + $0x60] sm:$0xff]
    %v541 = vld [vmem:[#allocation2 + $0x68] sm:$0xff]
    %v542 = vld [vmem:[#allocation2 + $0x70] sm:$0xff]
    %v543 = vld [vmem:[#allocation2 + $0x78] sm:$0xff]
    %v544 = vld [vmem:[#allocation2 + $0x80] sm:$0xff]
    %v545 = vld [vmem:[#allocation2 + $0x88] sm:$0xff]
    %v546 = vld [vmem:[#allocation2 + $0x90] sm:$0xff]
    %v547 = vld [vmem:[#allocation2 + $0x98] sm:$0xff]
    %v548 = vld [vmem:[#allocation2 + $0xa0] sm:$0xff]
    %v549 = vld [vmem:[#allocation2 + $0xa8] sm:$0xff]
    %v550 = vld [vmem:[#allocation2 + $0xb0] sm:$0xff]
    %v551 = vld [vmem:[#allocation2 + $0xb8] sm:$0xff]
    %v552 = vld [vmem:[#allocation2 + $0xc0] sm:$0xff]
    %v553 = vld [vmem:[#allocation2 + $0xc8] sm:$0xff]
    %v554 = vld [vmem:[#allocation2 + $0xd0] sm:$0xff]
    %v555 = vld [vmem:[#allocation2 + $0xd8] sm:$0xff]
    %v556 = vld [vmem:[#allocation2 + $0xe0] sm:$0xff]
    %v557 = vld [vmem:[#allocation2 + $0xe8] sm:$0xff]
    %v558 = vld [vmem:[#allocation2 + $0xf0] sm:$0xff]
    %v559 = vld [vmem:[#allocation2 + $0xf8] sm:$0xff]
    %v560 = vld [vmem:[#allocation2 + $0x100] sm:$0xff]
    %v561 = vld [vmem:[#allocation2 + $0x108] sm:$0xff]
    %v562 = vld [vmem:[#allocation2 + $0x110] sm:$0xff]
    %v563 = vld [vmem:[#allocation2 + $0x118] sm:$0xff]
    %v564 = vld [vmem:[#allocation2 + $0x120] sm:$0xff]
    %v565 = vld [vmem:[#allocation2 + $0x128] sm:$0xff]
    %v566 = vld [vmem:[#allocation2 + $0x130] sm:$0xff]
    %v567 = vld [vmem:[#allocation2 + $0x138] sm:$0xff]
    %v568 = vld [vmem:[#allocation2 + $0x140] sm:$0xff]
    %v569 = vld [vmem:[#allocation2 + $0x148] sm:$0xff]
    %v570 = vld [vmem:[#allocation2 + $0x150] sm:$0xff]
    %v571 = vld [vmem:[#allocation2 + $0x158] sm:$0xff]
    %v572 = vld [vmem:[#allocation2 + $0x160] sm:$0xff]
    %v573 = vld [vmem:[#allocation2 + $0x168] sm:$0xff]
    %v574 = vld [vmem:[#allocation2 + $0x170] sm:$0xff]
    %v575 = vld [vmem:[#allocation2 + $0x178] sm:$0xff]
    %v576 = vld [vmem:[#allocation2 + $0x180] sm:$0xff]
    %v577 = vld [vmem:[#allocation2 + $0x188] sm:$0xff]
    %v578 = vld [vmem:[#allocation2 + $0x190] sm:$0xff]
    %v579 = vld [vmem:[#allocation2 + $0x198] sm:$0xff]
    %v580 = vld [vmem:[#allocation2 + $0x1a0] sm:$0xff]
    %v581 = vld [vmem:[#allocation2 + $0x1a8] sm:$0xff]
    %v582 = vld [vmem:[#allocation2 + $0x1b0] sm:$0xff]
    %v583 = vld [vmem:[#allocation2 + $0x1b8] sm:$0xff]
    %v584 = vld [vmem:[#allocation2 + $0x1c0] sm:$0xff]
    %v585 = vld [vmem:[#allocation2 + $0x1c8] sm:$0xff]
    %v586 = vld [vmem:[#allocation2 + $0x1d0] sm:$0xff]
    %v587 = vld [vmem:[#allocation2 + $0x1d8] sm:$0xff]
    %v588 = vld [vmem:[#allocation2 + $0x1e0] sm:$0xff]
    %v589 = vld [vmem:[#allocation2 + $0x1e8] sm:$0xff]
    %v590 = vld [vmem:[#allocation2 + $0x1f0] sm:$0xff]
    %v591 = vld [vmem:[#allocation2 + $0x1f8] sm:$0xff]
    %v592 = vld [vmem:[#allocation2 + $0x200] sm:$0xff]
    %v593 = vld [vmem:[#allocation2 + $0x208] sm:$0xff]
    %v594 = vld [vmem:[#allocation2 + $0x210] sm:$0xff]
    %v595 = vld [vmem:[#allocation2 + $0x218] sm:$0xff]
    %v596 = vld [vmem:[#allocation2 + $0x220] sm:$0xff]
    %v597 = vld [vmem:[#allocation2 + $0x228] sm:$0xff]
    %v598 = vld [vmem:[#allocation2 + $0x230] sm:$0xff]
    %v599 = vld [vmem:[#allocation2 + $0x238] sm:$0xff]
    %v600 = vld [vmem:[#allocation2 + $0x240] sm:$0xff]
    %v601 = vld [vmem:[#allocation2 + $0x248] sm:$0xff]
    %v602 = vld [vmem:[#allocation2 + $0x250] sm:$0xff]
    %v603 = vld [vmem:[#allocation2 + $0x258] sm:$0xff]
    %v604 = vld [vmem:[#allocation2 + $0x260] sm:$0xff]
    %v605 = vld [vmem:[#allocation2 + $0x268] sm:$0xff]
    %v606 = vld [vmem:[#allocation2 + $0x270] sm:$0xff]
    %v607 = vld [vmem:[#allocation2 + $0x278] sm:$0xff]
    %v608 = vld [vmem:[#allocation2 + $0x280] sm:$0xff]
    %v609 = vld [vmem:[#allocation2 + $0x288] sm:$0xff]
    %v610 = vld [vmem:[#allocation2 + $0x290] sm:$0xff]
    %v611 = vld [vmem:[#allocation2 + $0x298] sm:$0xff]
    %v612 = vld [vmem:[#allocation2 + $0x2a0] sm:$0xff]
    %v613 = vld [vmem:[#allocation2 + $0x2a8] sm:$0xff]
    %v614 = vld [vmem:[#allocation2 + $0x2b0] sm:$0xff]
    %v615 = vld [vmem:[#allocation2 + $0x2b8] sm:$0xff]
    %v616 = vld [vmem:[#allocation2 + $0x2c0] sm:$0xff]
    %v617 = vld [vmem:[#allocation2 + $0x2c8] sm:$0xff]
    %v618 = vld [vmem:[#allocation2 + $0x2d0] sm:$0xff]
    %v619 = vld [vmem:[#allocation2 + $0x2d8] sm:$0xff]
    %v620 = vld [vmem:[#allocation2 + $0x2e0] sm:$0xff]
    %v621 = vld [vmem:[#allocation2 + $0x2e8] sm:$0xff]
    %v622 = vld [vmem:[#allocation2 + $0x2f0] sm:$0xff]
    %v623 = vld [vmem:[#allocation2 + $0x2f8] sm:$0xff]
    %v624 = vld [vmem:[#allocation2 + $0x300] sm:$0xff]
    %v625 = vld [vmem:[#allocation2 + $0x308] sm:$0xff]
    %v626 = vld [vmem:[#allocation2 + $0x310] sm:$0xff]
    %v627 = vld [vmem:[#allocation2 + $0x318] sm:$0xff]
    %v628 = vld [vmem:[#allocation2 + $0x320] sm:$0xff]
    %v629 = vld [vmem:[#allocation2 + $0x328] sm:$0xff]
    %v630 = vld [vmem:[#allocation2 + $0x330] sm:$0xff]
    %v631 = vld [vmem:[#allocation2 + $0x338] sm:$0xff]
    %v632 = vld [vmem:[#allocation2 + $0x340] sm:$0xff]
    %v633 = vld [vmem:[#allocation2 + $0x348] sm:$0xff]
    %v634 = vld [vmem:[#allocation2 + $0x350] sm:$0xff]
    %v635 = vld [vmem:[#allocation2 + $0x358] sm:$0xff]
    %v636 = vld [vmem:[#allocation2 + $0x360] sm:$0xff]
    %v637 = vld [vmem:[#allocation2 + $0x368] sm:$0xff]
    %v638 = vld [vmem:[#allocation2 + $0x370] sm:$0xff]
    %v639 = vld [vmem:[#allocation2 + $0x378] sm:$0xff]
    %v640 = vld [vmem:[#allocation2 + $0x380] sm:$0xff]
    %v641 = vld [vmem:[#allocation2 + $0x388] sm:$0xff]
    %v642 = vld [vmem:[#allocation2 + $0x390] sm:$0xff]
    %v643 = vld [vmem:[#allocation2 + $0x398] sm:$0xff]
    %v644 = vld [vmem:[#allocation2 + $0x3a0] sm:$0xff]
    %v645 = vld [vmem:[#allocation2 + $0x3a8] sm:$0xff]
    %v646 = vld [vmem:[#allocation2 + $0x3b0] sm:$0xff]
    %v647 = vld [vmem:[#allocation2 + $0x3b8] sm:$0xff]
    %v648 = vld [vmem:[#allocation2 + $0x3c0] sm:$0xff]
    %v649 = vld [vmem:[#allocation2 + $0x3c8] sm:$0xff]
    %v650 = vld [vmem:[#allocation2 + $0x3d0] sm:$0xff]
    %v651 = vld [vmem:[#allocation2 + $0x3d8] sm:$0xff]
    %v652 = vld [vmem:[#allocation2 + $0x3e0] sm:$0xff]
    %v653 = vld [vmem:[#allocation2 + $0x3e8] sm:$0xff]
    %v654 = vld [vmem:[#allocation2 + $0x3f0] sm:$0xff]
    %v655 = vld [vmem:[#allocation2 + $0x3f8] sm:$0xff]
    %v657 = vlaneseq
    %v658 = vshrl.u32 %v657, 7
    %v659 = vsub.s32 0, %v658
    %v660 = vrot.slane %v108, %v659
    %v661 = vlaneseq
    %v662 = vshrl.u32 %v661, 7
    %v663 = vsub.s32 1, %v662
    %v664 = vrot.slane %v108, %v663
    %v665 = vlaneseq
    %v666 = vshrl.u32 %v665, 7
    %v667 = vsub.s32 2, %v666
    %v668 = vrot.slane %v108, %v667
    %v669 = vlaneseq
    %v670 = vshrl.u32 %v669, 7
    %v671 = vsub.s32 3, %v670
    %v672 = vrot.slane %v108, %v671
    %677 = vmatprep.subr.mxu0 %v589
    %678 = vmatpush1.msra.mxu0 %v588
    %679 = vmatprep.subr.mxu0 %v585
    %680 = vmatpush1.msra.mxu0 %v584
    %681 = vmatprep.subr.mxu0 %v581
    %682 = vmatpush1.msra.mxu0 %v580
    %683 = vmatprep.subr.mxu0 %v577
    %684 = vmatpush1.msra.mxu0 %v576
    %685 = vmatprep.subr.mxu0 %v573
    %686 = vmatpush1.msra.mxu0 %v572
    %687 = vmatprep.subr.mxu0 %v569
    %688 = vmatpush1.msra.mxu0 %v568
    %689 = vmatprep.subr.mxu0 %v565
    %690 = vmatpush1.msra.mxu0 %v564
    %691 = vmatprep.subr.mxu0 %v561
    %692 = vmatpush1.msra.mxu0 %v560
    %693 = vmatprep.subr.mxu0 %v557
    %694 = vmatpush1.msra.mxu0 %v556
    %695 = vmatprep.subr.mxu0 %v553
    %696 = vmatpush1.msra.mxu0 %v552
    %697 = vmatprep.subr.mxu0 %v549
    %698 = vmatpush1.msra.mxu0 %v548
    %699 = vmatprep.subr.mxu0 %v545
    %700 = vmatpush1.msra.mxu0 %v544
    %701 = vmatprep.subr.mxu0 %v541
    %702 = vmatpush1.msra.mxu0 %v540
    %703 = vmatprep.subr.mxu0 %v537
    %704 = vmatpush1.msra.mxu0 %v536
    %705 = vmatprep.subr.mxu0 %v533
    %706 = vmatpush1.msra.mxu0 %v532
    %707 = vmatprep.subr.mxu0 %v529
    %708 = vmatpush1.msra.mxu0 %v528
    %709 = vmatprep.subr.mxu0 %v653
    %710 = vmatpush2.msra.mxu0 %v652
    %711 = vmatprep.subr.mxu0 %v649
    %712 = vmatpush2.msra.mxu0 %v648
    %713 = vmatprep.subr.mxu0 %v645
    %714 = vmatpush2.msra.mxu0 %v644
    %715 = vmatprep.subr.mxu0 %v641
    %716 = vmatpush2.msra.mxu0 %v640
    %717 = vmatprep.subr.mxu0 %v637
    %718 = vmatpush2.msra.mxu0 %v636
    %719 = vmatprep.subr.mxu0 %v633
    %720 = vmatpush2.msra.mxu0 %v632
    %721 = vmatprep.subr.mxu0 %v629
    %722 = vmatpush2.msra.mxu0 %v628
    %723 = vmatprep.subr.mxu0 %v625
    %724 = vmatpush2.msra.mxu0 %v624
    %725 = vmatprep.subr.mxu0 %v621
    %726 = vmatpush2.msra.mxu0 %v620
    %727 = vmatprep.subr.mxu0 %v617
    %728 = vmatpush2.msra.mxu0 %v616
    %729 = vmatprep.subr.mxu0 %v613
    %730 = vmatpush2.msra.mxu0 %v612
    %731 = vmatprep.subr.mxu0 %v609
    %732 = vmatpush2.msra.mxu0 %v608
    %733 = vmatprep.subr.mxu0 %v605
    %734 = vmatpush2.msra.mxu0 %v604
    %735 = vmatprep.subr.mxu0 %v601
    %736 = vmatpush2.msra.mxu0 %v600
    %737 = vmatprep.subr.mxu0 %v597
    %738 = vmatpush2.msra.mxu0 %v596
    %739 = vmatprep.subr.mxu0 %v593
    %740 = vmatpush2.msra.mxu0 %v592
    %741 = vmatprep.mubr.f32.mxu0 0.0
    %742 = vmatmul.mubr.f32.gmra.mxu0 %v338
    %v743 = vpop.f32.mrf.mxu0
    %v744 = vadd.f32 %v660, %v743
    %v745 = vpop.f32.mrf.mxu0
    %v746 = vadd.f32 %v664, %v745
    %747 = vdwg.mxu0
    %748 = vmatprep.subr.mxu0 %v591
    %749 = vmatpush1.msra.mxu0 %v590
    %750 = vmatprep.subr.mxu0 %v587
    %751 = vmatpush1.msra.mxu0 %v586
    %752 = vmatprep.subr.mxu0 %v583
    %753 = vmatpush1.msra.mxu0 %v582
    %754 = vmatprep.subr.mxu0 %v579
    %755 = vmatpush1.msra.mxu0 %v578
    %756 = vmatprep.subr.mxu0 %v575
    %757 = vmatpush1.msra.mxu0 %v574
    %758 = vmatprep.subr.mxu0 %v571
    %759 = vmatpush1.msra.mxu0 %v570
    %760 = vmatprep.subr.mxu0 %v567
    %761 = vmatpush1.msra.mxu0 %v566
    %762 = vmatprep.subr.mxu0 %v563
    %763 = vmatpush1.msra.mxu0 %v562
    %764 = vmatprep.subr.mxu0 %v559
    %765 = vmatpush1.msra.mxu0 %v558
    %766 = vmatprep.subr.mxu0 %v555
    %767 = vmatpush1.msra.mxu0 %v554
    %768 = vmatprep.subr.mxu0 %v551
    %769 = vmatpush1.msra.mxu0 %v550
    %770 = vmatprep.subr.mxu0 %v547
    %771 = vmatpush1.msra.mxu0 %v546
    %772 = vmatprep.subr.mxu0 %v543
    %773 = vmatpush1.msra.mxu0 %v542
    %774 = vmatprep.subr.mxu0 %v539
    %775 = vmatpush1.msra.mxu0 %v538
    %776 = vmatprep.subr.mxu0 %v535
    %777 = vmatpush1.msra.mxu0 %v534
    %778 = vmatprep.subr.mxu0 %v531
    %779 = vmatpush1.msra.mxu0 %v530
    %780 = vmatprep.subr.mxu0 %v655
    %781 = vmatpush2.msra.mxu0 %v654
    %782 = vmatprep.subr.mxu0 %v651
    %783 = vmatpush2.msra.mxu0 %v650
    %784 = vmatprep.subr.mxu0 %v647
    %785 = vmatpush2.msra.mxu0 %v646
    %786 = vmatprep.subr.mxu0 %v643
    %787 = vmatpush2.msra.mxu0 %v642
    %788 = vmatprep.subr.mxu0 %v639
    %789 = vmatpush2.msra.mxu0 %v638
    %790 = vmatprep.subr.mxu0 %v635
    %791 = vmatpush2.msra.mxu0 %v634
    %792 = vmatprep.subr.mxu0 %v631
    %793 = vmatpush2.msra.mxu0 %v630
    %794 = vmatprep.subr.mxu0 %v627
    %795 = vmatpush2.msra.mxu0 %v626
    %796 = vmatprep.subr.mxu0 %v623
    %797 = vmatpush2.msra.mxu0 %v622
    %798 = vmatprep.subr.mxu0 %v619
    %799 = vmatpush2.msra.mxu0 %v618
    %800 = vmatprep.subr.mxu0 %v615
    %801 = vmatpush2.msra.mxu0 %v614
    %802 = vmatprep.subr.mxu0 %v611
    %803 = vmatpush2.msra.mxu0 %v610
    %804 = vmatprep.subr.mxu0 %v607
    %805 = vmatpush2.msra.mxu0 %v606
    %806 = vmatprep.subr.mxu0 %v603
    %807 = vmatpush2.msra.mxu0 %v602
    %808 = vmatprep.subr.mxu0 %v599
    %809 = vmatpush2.msra.mxu0 %v598
    %810 = vmatprep.subr.mxu0 %v595
    %811 = vmatpush2.msra.mxu0 %v594
    %812 = vmatprep.mubr.f32.mxu0 0.0
    %813 = vmatmul.mubr.f32.gmra.mxu0 %v338
    %v814 = vpop.f32.mrf.mxu0
    %v815 = vadd.f32 %v668, %v814
    %v816 = vpop.f32.mrf.mxu0
    %v817 = vadd.f32 %v672, %v816
    %818 = vdwg.mxu0
    %v819 = vxor.u32 %v744, 2147483648
    %v820 = vxor.u32 %v746, 2147483648
    %v821 = vxor.u32 %v815, 2147483648
    %v822 = vmul.f32 %v819, 1.442695
    %v823 = vpow.pop %v822
    %v824 = vmul.f32 %v820, 1.442695
    %v825 = vpow.pop %v824
    %v826 = vmul.f32 %v821, 1.442695
    %v827 = vpow.pop %v826
    %v828 = vadd.f32 %v823, 1.0
    %v829 = vadd.f32 %v825, 1.0
    %v830 = vadd.f32 %v827, 1.0
    %v831 = vrcp.pop %v828
    %v832 = vmul.f32 1.0, %v831
    %v833 = vrcp.pop %v829
    %v834 = vmul.f32 1.0, %v833
    %v835 = vrcp.pop %v830
    %v836 = vmul.f32 1.0, %v835
    %v837 = vtanh.pop %v817
    %v838 = vmul.f32 %v834, 0.0
    %v839 = vmul.f32 %v832, %v837
    %v840 = vadd.f32 %v838, %v839
    %v841 = vtanh.pop %v840
    %v842 = vmul.f32 %v836, %v841
    %s843 = scalar_lea.vmem %s0, 16
    %v844 = vld [vmem:[%s843] sm:$0xff]
    %846 = vset.pattern.permute.xlu0 0
    %847 = vperm.xlu0 %846, %v844
    %v848 = vpop.permute.xlu0 %847
    %v850 = vmul.f32 %v848, %v123
    %v851 = vmul.f32 %v848, %v127
    %v852 = vmul.f32 %v848, %v131
    %v853 = vmul.f32 %v848, %v135
    %v854 = vadd.f32 %v850, %v148
    %v855 = vadd.f32 %v851, %v152
    %v856 = vadd.f32 %v852, %v156
    %v857 = vadd.f32 %v853, %v160
    %858 = vmatprep.subr.mxu0 %v101
    %859 = vmatpush1.msra.mxu0 %v100
    %860 = vmatprep.subr.mxu0 %v97
    %861 = vmatpush1.msra.mxu0 %v96
    %862 = vmatprep.subr.mxu0 %v93
    %863 = vmatpush1.msra.mxu0 %v92
    %864 = vmatprep.subr.mxu0 %v89
    %865 = vmatpush1.msra.mxu0 %v88
    %866 = vmatprep.subr.mxu0 %v85
    %867 = vmatpush1.msra.mxu0 %v84
    %868 = vmatprep.subr.mxu0 %v81
    %869 = vmatpush1.msra.mxu0 %v80
    %870 = vmatprep.subr.mxu0 %v77
    %871 = vmatpush1.msra.mxu0 %v76
    %872 = vmatprep.subr.mxu0 %v73
    %873 = vmatpush1.msra.mxu0 %v72
    %874 = vmatprep.subr.mxu0 %v69
    %875 = vmatpush1.msra.mxu0 %v68
    %876 = vmatprep.subr.mxu0 %v65
    %877 = vmatpush1.msra.mxu0 %v64
    %878 = vmatprep.subr.mxu0 %v61
    %879 = vmatpush1.msra.mxu0 %v60
    %880 = vmatprep.subr.mxu0 %v57
    %881 = vmatpush1.msra.mxu0 %v56
    %882 = vmatprep.subr.mxu0 %v53
    %883 = vmatpush1.msra.mxu0 %v52
    %884 = vmatprep.subr.mxu0 %v49
    %885 = vmatpush1.msra.mxu0 %v48
    %886 = vmatprep.subr.mxu0 %v45
    %887 = vmatpush1.msra.mxu0 %v44
    %888 = vmatprep.subr.mxu0 %v41
    %889 = vmatpush1.msra.mxu0 %v40
    %890 = vmatprep.subr.mxu0 0.0
    %891 = vmatpush2.msra.mxu0 0.0
    %892 = vmatprep.subr.mxu0 0.0
    %893 = vmatpush2.msra.mxu0 0.0
    %894 = vmatprep.subr.mxu0 0.0
    %895 = vmatpush2.msra.mxu0 0.0
    %896 = vmatprep.subr.mxu0 0.0
    %897 = vmatpush2.msra.mxu0 0.0
    %898 = vmatprep.subr.mxu0 0.0
    %899 = vmatpush2.msra.mxu0 0.0
    %900 = vmatprep.subr.mxu0 0.0
    %901 = vmatpush2.msra.mxu0 0.0
    %902 = vmatprep.subr.mxu0 0.0
    %903 = vmatpush2.msra.mxu0 0.0
    %904 = vmatprep.subr.mxu0 0.0
    %905 = vmatpush2.msra.mxu0 0.0
    %906 = vmatprep.subr.mxu0 0.0
    %907 = vmatpush2.msra.mxu0 0.0
    %908 = vmatprep.subr.mxu0 0.0
    %909 = vmatpush2.msra.mxu0 0.0
    %910 = vmatprep.subr.mxu0 0.0
    %911 = vmatpush2.msra.mxu0 0.0
    %912 = vmatprep.subr.mxu0 0.0
    %913 = vmatpush2.msra.mxu0 0.0
    %914 = vmatprep.subr.mxu0 0.0
    %915 = vmatpush2.msra.mxu0 0.0
    %916 = vmatprep.subr.mxu0 0.0
    %917 = vmatpush2.msra.mxu0 0.0
    %918 = vmatprep.subr.mxu0 0.0
    %919 = vmatpush2.msra.mxu0 0.0
    %920 = vmatprep.subr.mxu0 0.0
    %921 = vmatpush2.msra.mxu0 0.0
    %922 = vmatprep.mubr.f32.mxu0 0.0
    %923 = vmatmul.mubr.f32.gmra.mxu0 %v523
    %v924 = vpop.f32.mrf.mxu0
    %v925 = vadd.f32 0.0, %v924
    %v926 = vpop.f32.mrf.mxu0
    %v927 = vadd.f32 0.0, %v926
    %928 = vdwg.mxu0
    %929 = vmatprep.subr.mxu0 %v103
    %930 = vmatpush1.msra.mxu0 %v102
    %931 = vmatprep.subr.mxu0 %v99
    %932 = vmatpush1.msra.mxu0 %v98
    %933 = vmatprep.subr.mxu0 %v95
    %934 = vmatpush1.msra.mxu0 %v94
    %935 = vmatprep.subr.mxu0 %v91
    %936 = vmatpush1.msra.mxu0 %v90
    %937 = vmatprep.subr.mxu0 %v87
    %938 = vmatpush1.msra.mxu0 %v86
    %939 = vmatprep.subr.mxu0 %v83
    %940 = vmatpush1.msra.mxu0 %v82
    %941 = vmatprep.subr.mxu0 %v79
    %942 = vmatpush1.msra.mxu0 %v78
    %943 = vmatprep.subr.mxu0 %v75
    %944 = vmatpush1.msra.mxu0 %v74
    %945 = vmatprep.subr.mxu0 %v71
    %946 = vmatpush1.msra.mxu0 %v70
    %947 = vmatprep.subr.mxu0 %v67
    %948 = vmatpush1.msra.mxu0 %v66
    %949 = vmatprep.subr.mxu0 %v63
    %950 = vmatpush1.msra.mxu0 %v62
    %951 = vmatprep.subr.mxu0 %v59
    %952 = vmatpush1.msra.mxu0 %v58
    %953 = vmatprep.subr.mxu0 %v55
    %954 = vmatpush1.msra.mxu0 %v54
    %955 = vmatprep.subr.mxu0 %v51
    %956 = vmatpush1.msra.mxu0 %v50
    %957 = vmatprep.subr.mxu0 %v47
    %958 = vmatpush1.msra.mxu0 %v46
    %959 = vmatprep.subr.mxu0 %v43
    %960 = vmatpush1.msra.mxu0 %v42
    %961 = vmatprep.subr.mxu0 0.0
    %962 = vmatpush2.msra.mxu0 0.0
    %963 = vmatprep.subr.mxu0 0.0
    %964 = vmatpush2.msra.mxu0 0.0
    %965 = vmatprep.subr.mxu0 0.0
    %966 = vmatpush2.msra.mxu0 0.0
    %967 = vmatprep.subr.mxu0 0.0
    %968 = vmatpush2.msra.mxu0 0.0
    %969 = vmatprep.subr.mxu0 0.0
    %970 = vmatpush2.msra.mxu0 0.0
    %971 = vmatprep.subr.mxu0 0.0
    %972 = vmatpush2.msra.mxu0 0.0
    %973 = vmatprep.subr.mxu0 0.0
    %974 = vmatpush2.msra.mxu0 0.0
    %975 = vmatprep.subr.mxu0 0.0
    %976 = vmatpush2.msra.mxu0 0.0
    %977 = vmatprep.subr.mxu0 0.0
    %978 = vmatpush2.msra.mxu0 0.0
    %979 = vmatprep.subr.mxu0 0.0
    %980 = vmatpush2.msra.mxu0 0.0
    %981 = vmatprep.subr.mxu0 0.0
    %982 = vmatpush2.msra.mxu0 0.0
    %983 = vmatprep.subr.mxu0 0.0
    %984 = vmatpush2.msra.mxu0 0.0
    %985 = vmatprep.subr.mxu0 0.0
    %986 = vmatpush2.msra.mxu0 0.0
    %987 = vmatprep.subr.mxu0 0.0
    %988 = vmatpush2.msra.mxu0 0.0
    %989 = vmatprep.subr.mxu0 0.0
    %990 = vmatpush2.msra.mxu0 0.0
    %991 = vmatprep.subr.mxu0 0.0
    %992 = vmatpush2.msra.mxu0 0.0
    %993 = vmatprep.mubr.f32.mxu0 0.0
    %994 = vmatmul.mubr.f32.gmra.mxu0 %v523
    %v995 = vpop.f32.mrf.mxu0
    %v996 = vadd.f32 0.0, %v995
    %v997 = vpop.f32.mrf.mxu0
    %v998 = vadd.f32 0.0, %v997
    %999 = vdwg.mxu0
    %v1000 = vadd.f32 %v854, %v925
    %v1001 = vadd.f32 %v855, %v927
    %v1002 = vadd.f32 %v856, %v996
    %v1003 = vadd.f32 %v857, %v998
    %v1004 = vxor.u32 %v1000, 2147483648
    %v1005 = vxor.u32 %v1001, 2147483648
    %v1006 = vxor.u32 %v1002, 2147483648
    %v1007 = vmul.f32 %v1004, 1.442695
    %v1008 = vpow.pop %v1007
    %v1009 = vmul.f32 %v1005, 1.442695
    %v1010 = vpow.pop %v1009
    %v1011 = vmul.f32 %v1006, 1.442695
    %v1012 = vpow.pop %v1011
    %v1013 = vadd.f32 %v1008, 1.0
    %v1014 = vadd.f32 %v1010, 1.0
    %v1015 = vadd.f32 %v1012, 1.0
    %v1016 = vrcp.pop %v1013
    %v1017 = vmul.f32 1.0, %v1016
    %v1018 = vrcp.pop %v1014
    %v1019 = vmul.f32 1.0, %v1018
    %v1020 = vrcp.pop %v1015
    %v1021 = vmul.f32 1.0, %v1020
    %v1022 = vtanh.pop %v1003
    %v1023 = vmul.f32 %v1019, %v521
    %v1024 = vmul.f32 %v1017, %v1022
    %v1025 = vadd.f32 %v1023, %v1024
    %v1026 = vtanh.pop %v1025
    %v1027 = vmul.f32 %v1021, %v1026
    %1028 = vmatprep.subr.mxu0 %v589
    %1029 = vmatpush1.msra.mxu0 %v588
    %1030 = vmatprep.subr.mxu0 %v585
    %1031 = vmatpush1.msra.mxu0 %v584
    %1032 = vmatprep.subr.mxu0 %v581
    %1033 = vmatpush1.msra.mxu0 %v580
    %1034 = vmatprep.subr.mxu0 %v577
    %1035 = vmatpush1.msra.mxu0 %v576
    %1036 = vmatprep.subr.mxu0 %v573
    %1037 = vmatpush1.msra.mxu0 %v572
    %1038 = vmatprep.subr.mxu0 %v569
    %1039 = vmatpush1.msra.mxu0 %v568
    %1040 = vmatprep.subr.mxu0 %v565
    %1041 = vmatpush1.msra.mxu0 %v564
    %1042 = vmatprep.subr.mxu0 %v561
    %1043 = vmatpush1.msra.mxu0 %v560
    %1044 = vmatprep.subr.mxu0 %v557
    %1045 = vmatpush1.msra.mxu0 %v556
    %1046 = vmatprep.subr.mxu0 %v553
    %1047 = vmatpush1.msra.mxu0 %v552
    %1048 = vmatprep.subr.mxu0 %v549
    %1049 = vmatpush1.msra.mxu0 %v548
    %1050 = vmatprep.subr.mxu0 %v545
    %1051 = vmatpush1.msra.mxu0 %v544
    %1052 = vmatprep.subr.mxu0 %v541
    %1053 = vmatpush1.msra.mxu0 %v540
    %1054 = vmatprep.subr.mxu0 %v537
    %1055 = vmatpush1.msra.mxu0 %v536
    %1056 = vmatprep.subr.mxu0 %v533
    %1057 = vmatpush1.msra.mxu0 %v532
    %1058 = vmatprep.subr.mxu0 %v529
    %1059 = vmatpush1.msra.mxu0 %v528
    %1060 = vmatprep.subr.mxu0 %v653
    %1061 = vmatpush2.msra.mxu0 %v652
    %1062 = vmatprep.subr.mxu0 %v649
    %1063 = vmatpush2.msra.mxu0 %v648
    %1064 = vmatprep.subr.mxu0 %v645
    %1065 = vmatpush2.msra.mxu0 %v644
    %1066 = vmatprep.subr.mxu0 %v641
    %1067 = vmatpush2.msra.mxu0 %v640
    %1068 = vmatprep.subr.mxu0 %v637
    %1069 = vmatpush2.msra.mxu0 %v636
    %1070 = vmatprep.subr.mxu0 %v633
    %1071 = vmatpush2.msra.mxu0 %v632
    %1072 = vmatprep.subr.mxu0 %v629
    %1073 = vmatpush2.msra.mxu0 %v628
    %1074 = vmatprep.subr.mxu0 %v625
    %1075 = vmatpush2.msra.mxu0 %v624
    %1076 = vmatprep.subr.mxu0 %v621
    %1077 = vmatpush2.msra.mxu0 %v620
    %1078 = vmatprep.subr.mxu0 %v617
    %1079 = vmatpush2.msra.mxu0 %v616
    %1080 = vmatprep.subr.mxu0 %v613
    %1081 = vmatpush2.msra.mxu0 %v612
    %1082 = vmatprep.subr.mxu0 %v609
    %1083 = vmatpush2.msra.mxu0 %v608
    %1084 = vmatprep.subr.mxu0 %v605
    %1085 = vmatpush2.msra.mxu0 %v604
    %1086 = vmatprep.subr.mxu0 %v601
    %1087 = vmatpush2.msra.mxu0 %v600
    %1088 = vmatprep.subr.mxu0 %v597
    %1089 = vmatpush2.msra.mxu0 %v596
    %1090 = vmatprep.subr.mxu0 %v593
    %1091 = vmatpush2.msra.mxu0 %v592
    %1092 = vmatprep.mubr.f32.mxu0 %v842
    %1093 = vmatmul.mubr.f32.gmra.mxu0 %v523
    %v1094 = vpop.f32.mrf.mxu0
    %v1095 = vadd.f32 %v660, %v1094
    %v1096 = vpop.f32.mrf.mxu0
    %v1097 = vadd.f32 %v664, %v1096
    %1098 = vdwg.mxu0
    %1099 = vmatprep.subr.mxu0 %v591
    %1100 = vmatpush1.msra.mxu0 %v590
    %1101 = vmatprep.subr.mxu0 %v587
    %1102 = vmatpush1.msra.mxu0 %v586
    %1103 = vmatprep.subr.mxu0 %v583
    %1104 = vmatpush1.msra.mxu0 %v582
    %1105 = vmatprep.subr.mxu0 %v579
    %1106 = vmatpush1.msra.mxu0 %v578
    %1107 = vmatprep.subr.mxu0 %v575
    %1108 = vmatpush1.msra.mxu0 %v574
    %1109 = vmatprep.subr.mxu0 %v571
    %1110 = vmatpush1.msra.mxu0 %v570
    %1111 = vmatprep.subr.mxu0 %v567
    %1112 = vmatpush1.msra.mxu0 %v566
    %1113 = vmatprep.subr.mxu0 %v563
    %1114 = vmatpush1.msra.mxu0 %v562
    %1115 = vmatprep.subr.mxu0 %v559
    %1116 = vmatpush1.msra.mxu0 %v558
    %1117 = vmatprep.subr.mxu0 %v555
    %1118 = vmatpush1.msra.mxu0 %v554
    %1119 = vmatprep.subr.mxu0 %v551
    %1120 = vmatpush1.msra.mxu0 %v550
    %1121 = vmatprep.subr.mxu0 %v547
    %1122 = vmatpush1.msra.mxu0 %v546
    %1123 = vmatprep.subr.mxu0 %v543
    %1124 = vmatpush1.msra.mxu0 %v542
    %1125 = vmatprep.subr.mxu0 %v539
    %1126 = vmatpush1.msra.mxu0 %v538
    %1127 = vmatprep.subr.mxu0 %v535
    %1128 = vmatpush1.msra.mxu0 %v534
    %1129 = vmatprep.subr.mxu0 %v531
    %1130 = vmatpush1.msra.mxu0 %v530
    %1131 = vmatprep.subr.mxu0 %v655
    %1132 = vmatpush2.msra.mxu0 %v654
    %1133 = vmatprep.subr.mxu0 %v651
    %1134 = vmatpush2.msra.mxu0 %v650
    %1135 = vmatprep.subr.mxu0 %v647
    %1136 = vmatpush2.msra.mxu0 %v646
    %1137 = vmatprep.subr.mxu0 %v643
    %1138 = vmatpush2.msra.mxu0 %v642
    %1139 = vmatprep.subr.mxu0 %v639
    %1140 = vmatpush2.msra.mxu0 %v638
    %1141 = vmatprep.subr.mxu0 %v635
    %1142 = vmatpush2.msra.mxu0 %v634
    %1143 = vmatprep.subr.mxu0 %v631
    %1144 = vmatpush2.msra.mxu0 %v630
    %1145 = vmatprep.subr.mxu0 %v627
    %1146 = vmatpush2.msra.mxu0 %v626
    %1147 = vmatprep.subr.mxu0 %v623
    %1148 = vmatpush2.msra.mxu0 %v622
    %1149 = vmatprep.subr.mxu0 %v619
    %1150 = vmatpush2.msra.mxu0 %v618
    %1151 = vmatprep.subr.mxu0 %v615
    %1152 = vmatpush2.msra.mxu0 %v614
    %1153 = vmatprep.subr.mxu0 %v611
    %1154 = vmatpush2.msra.mxu0 %v610
    %1155 = vmatprep.subr.mxu0 %v607
    %1156 = vmatpush2.msra.mxu0 %v606
    %1157 = vmatprep.subr.mxu0 %v603
    %1158 = vmatpush2.msra.mxu0 %v602
    %1159 = vmatprep.subr.mxu0 %v599
    %1160 = vmatpush2.msra.mxu0 %v598
    %1161 = vmatprep.subr.mxu0 %v595
    %1162 = vmatpush2.msra.mxu0 %v594
    %1163 = vmatprep.mubr.f32.mxu0 %v842
    %1164 = vmatmul.mubr.f32.gmra.mxu0 %v523
    %v1165 = vpop.f32.mrf.mxu0
    %v1166 = vadd.f32 %v668, %v1165
    %v1167 = vpop.f32.mrf.mxu0
    %v1168 = vadd.f32 %v672, %v1167
    %1169 = vdwg.mxu0
    %v1170 = vxor.u32 %v1095, 2147483648
    %v1171 = vxor.u32 %v1097, 2147483648
    %v1172 = vxor.u32 %v1166, 2147483648
    %v1173 = vmul.f32 %v1170, 1.442695
    %v1174 = vpow.pop %v1173
    %v1175 = vmul.f32 %v1171, 1.442695
    %v1176 = vpow.pop %v1175
    %v1177 = vmul.f32 %v1172, 1.442695
    %v1178 = vpow.pop %v1177
    %v1179 = vadd.f32 %v1174, 1.0
    %v1180 = vadd.f32 %v1176, 1.0
    %v1181 = vadd.f32 %v1178, 1.0
    %v1182 = vrcp.pop %v1179
    %v1183 = vmul.f32 1.0, %v1182
    %v1184 = vrcp.pop %v1180
    %v1185 = vmul.f32 1.0, %v1184
    %v1186 = vrcp.pop %v1181
    %v1187 = vmul.f32 1.0, %v1186
    %v1188 = vtanh.pop %v1168
    %v1189 = vmul.f32 %v1185, %v840
    %v1190 = vmul.f32 %v1183, %v1188
    %v1191 = vadd.f32 %v1189, %v1190
    %v1192 = vtanh.pop %v1191
    %v1193 = vmul.f32 %v1187, %v1192
    %s1194 = scalar_lea.vmem %s0, 24
    %v1195 = vld [vmem:[%s1194] sm:$0xff]
    %1197 = vset.pattern.permute.xlu0 0
    %1198 = vperm.xlu0 %1197, %v1195
    %v1199 = vpop.permute.xlu0 %1198
    %v1201 = vmul.f32 %v1199, %v123
    %v1202 = vmul.f32 %v1199, %v127
    %v1203 = vmul.f32 %v1199, %v131
    %v1204 = vmul.f32 %v1199, %v135
    %v1205 = vadd.f32 %v1201, %v148
    %v1206 = vadd.f32 %v1202, %v152
    %v1207 = vadd.f32 %v1203, %v156
    %v1208 = vadd.f32 %v1204, %v160
    %1209 = vmatprep.subr.mxu0 %v101
    %1210 = vmatpush1.msra.mxu0 %v100
    %1211 = vmatprep.subr.mxu0 %v97
    %1212 = vmatpush1.msra.mxu0 %v96
    %1213 = vmatprep.subr.mxu0 %v93
    %1214 = vmatpush1.msra.mxu0 %v92
    %1215 = vmatprep.subr.mxu0 %v89
    %1216 = vmatpush1.msra.mxu0 %v88
    %1217 = vmatprep.subr.mxu0 %v85
    %1218 = vmatpush1.msra.mxu0 %v84
    %1219 = vmatprep.subr.mxu0 %v81
    %1220 = vmatpush1.msra.mxu0 %v80
    %1221 = vmatprep.subr.mxu0 %v77
    %1222 = vmatpush1.msra.mxu0 %v76
    %1223 = vmatprep.subr.mxu0 %v73
    %1224 = vmatpush1.msra.mxu0 %v72
    %1225 = vmatprep.subr.mxu0 %v69
    %1226 = vmatpush1.msra.mxu0 %v68
    %1227 = vmatprep.subr.mxu0 %v65
    %1228 = vmatpush1.msra.mxu0 %v64
    %1229 = vmatprep.subr.mxu0 %v61
    %1230 = vmatpush1.msra.mxu0 %v60
    %1231 = vmatprep.subr.mxu0 %v57
    %1232 = vmatpush1.msra.mxu0 %v56
    %1233 = vmatprep.subr.mxu0 %v53
    %1234 = vmatpush1.msra.mxu0 %v52
    %1235 = vmatprep.subr.mxu0 %v49
    %1236 = vmatpush1.msra.mxu0 %v48
    %1237 = vmatprep.subr.mxu0 %v45
    %1238 = vmatpush1.msra.mxu0 %v44
    %1239 = vmatprep.subr.mxu0 %v41
    %1240 = vmatpush1.msra.mxu0 %v40
    %1241 = vmatprep.subr.mxu0 0.0
    %1242 = vmatpush2.msra.mxu0 0.0
    %1243 = vmatprep.subr.mxu0 0.0
    %1244 = vmatpush2.msra.mxu0 0.0
    %1245 = vmatprep.subr.mxu0 0.0
    %1246 = vmatpush2.msra.mxu0 0.0
    %1247 = vmatprep.subr.mxu0 0.0
    %1248 = vmatpush2.msra.mxu0 0.0
    %1249 = vmatprep.subr.mxu0 0.0
    %1250 = vmatpush2.msra.mxu0 0.0
    %1251 = vmatprep.subr.mxu0 0.0
    %1252 = vmatpush2.msra.mxu0 0.0
    %1253 = vmatprep.subr.mxu0 0.0
    %1254 = vmatpush2.msra.mxu0 0.0
    %1255 = vmatprep.subr.mxu0 0.0
    %1256 = vmatpush2.msra.mxu0 0.0
    %1257 = vmatprep.subr.mxu0 0.0
    %1258 = vmatpush2.msra.mxu0 0.0
    %1259 = vmatprep.subr.mxu0 0.0
    %1260 = vmatpush2.msra.mxu0 0.0
    %1261 = vmatprep.subr.mxu0 0.0
    %1262 = vmatpush2.msra.mxu0 0.0
    %1263 = vmatprep.subr.mxu0 0.0
    %1264 = vmatpush2.msra.mxu0 0.0
    %1265 = vmatprep.subr.mxu0 0.0
    %1266 = vmatpush2.msra.mxu0 0.0
    %1267 = vmatprep.subr.mxu0 0.0
    %1268 = vmatpush2.msra.mxu0 0.0
    %1269 = vmatprep.subr.mxu0 0.0
    %1270 = vmatpush2.msra.mxu0 0.0
    %1271 = vmatprep.subr.mxu0 0.0
    %1272 = vmatpush2.msra.mxu0 0.0
    %1273 = vmatprep.mubr.f32.mxu0 0.0
    %1274 = vmatmul.mubr.f32.gmra.mxu0 %v1027
    %v1275 = vpop.f32.mrf.mxu0
    %v1276 = vadd.f32 0.0, %v1275
    %v1277 = vpop.f32.mrf.mxu0
    %v1278 = vadd.f32 0.0, %v1277
    %1279 = vdwg.mxu0
    %1280 = vmatprep.subr.mxu0 %v103
    %1281 = vmatpush1.msra.mxu0 %v102
    %1282 = vmatprep.subr.mxu0 %v99
    %1283 = vmatpush1.msra.mxu0 %v98
    %1284 = vmatprep.subr.mxu0 %v95
    %1285 = vmatpush1.msra.mxu0 %v94
    %1286 = vmatprep.subr.mxu0 %v91
    %1287 = vmatpush1.msra.mxu0 %v90
    %1288 = vmatprep.subr.mxu0 %v87
    %1289 = vmatpush1.msra.mxu0 %v86
    %1290 = vmatprep.subr.mxu0 %v83
    %1291 = vmatpush1.msra.mxu0 %v82
    %1292 = vmatprep.subr.mxu0 %v79
    %1293 = vmatpush1.msra.mxu0 %v78
    %1294 = vmatprep.subr.mxu0 %v75
    %1295 = vmatpush1.msra.mxu0 %v74
    %1296 = vmatprep.subr.mxu0 %v71
    %1297 = vmatpush1.msra.mxu0 %v70
    %1298 = vmatprep.subr.mxu0 %v67
    %1299 = vmatpush1.msra.mxu0 %v66
    %1300 = vmatprep.subr.mxu0 %v63
    %1301 = vmatpush1.msra.mxu0 %v62
    %1302 = vmatprep.subr.mxu0 %v59
    %1303 = vmatpush1.msra.mxu0 %v58
    %1304 = vmatprep.subr.mxu0 %v55
    %1305 = vmatpush1.msra.mxu0 %v54
    %1306 = vmatprep.subr.mxu0 %v51
    %1307 = vmatpush1.msra.mxu0 %v50
    %1308 = vmatprep.subr.mxu0 %v47
    %1309 = vmatpush1.msra.mxu0 %v46
    %1310 = vmatprep.subr.mxu0 %v43
    %1311 = vmatpush1.msra.mxu0 %v42
    %1312 = vmatprep.subr.mxu0 0.0
    %1313 = vmatpush2.msra.mxu0 0.0
    %1314 = vmatprep.subr.mxu0 0.0
    %1315 = vmatpush2.msra.mxu0 0.0
    %1316 = vmatprep.subr.mxu0 0.0
    %1317 = vmatpush2.msra.mxu0 0.0
    %1318 = vmatprep.subr.mxu0 0.0
    %1319 = vmatpush2.msra.mxu0 0.0
    %1320 = vmatprep.subr.mxu0 0.0
    %1321 = vmatpush2.msra.mxu0 0.0
    %1322 = vmatprep.subr.mxu0 0.0
    %1323 = vmatpush2.msra.mxu0 0.0
    %1324 = vmatprep.subr.mxu0 0.0
    %1325 = vmatpush2.msra.mxu0 0.0
    %1326 = vmatprep.subr.mxu0 0.0
    %1327 = vmatpush2.msra.mxu0 0.0
    %1328 = vmatprep.subr.mxu0 0.0
    %1329 = vmatpush2.msra.mxu0 0.0
    %1330 = vmatprep.subr.mxu0 0.0
    %1331 = vmatpush2.msra.mxu0 0.0
    %1332 = vmatprep.subr.mxu0 0.0
    %1333 = vmatpush2.msra.mxu0 0.0
    %1334 = vmatprep.subr.mxu0 0.0
    %1335 = vmatpush2.msra.mxu0 0.0
    %1336 = vmatprep.subr.mxu0 0.0
    %1337 = vmatpush2.msra.mxu0 0.0
    %1338 = vmatprep.subr.mxu0 0.0
    %1339 = vmatpush2.msra.mxu0 0.0
    %1340 = vmatprep.subr.mxu0 0.0
    %1341 = vmatpush2.msra.mxu0 0.0
    %1342 = vmatprep.subr.mxu0 0.0
    %1343 = vmatpush2.msra.mxu0 0.0
    %1344 = vmatprep.mubr.f32.mxu0 0.0
    %1345 = vmatmul.mubr.f32.gmra.mxu0 %v1027
    %v1346 = vpop.f32.mrf.mxu0
    %v1347 = vadd.f32 0.0, %v1346
    %v1348 = vpop.f32.mrf.mxu0
    %v1349 = vadd.f32 0.0, %v1348
    %1350 = vdwg.mxu0
    %v1351 = vadd.f32 %v1205, %v1276
    %v1352 = vadd.f32 %v1206, %v1278
    %v1353 = vadd.f32 %v1207, %v1347
    %v1354 = vadd.f32 %v1208, %v1349
    %v1355 = vxor.u32 %v1351, 2147483648
    %v1356 = vxor.u32 %v1352, 2147483648
    %v1357 = vxor.u32 %v1353, 2147483648
    %v1358 = vmul.f32 %v1355, 1.442695
    %v1359 = vpow.pop %v1358
    %v1360 = vmul.f32 %v1356, 1.442695
    %v1361 = vpow.pop %v1360
    %v1362 = vmul.f32 %v1357, 1.442695
    %v1363 = vpow.pop %v1362
    %v1364 = vadd.f32 %v1359, 1.0
    %v1365 = vadd.f32 %v1361, 1.0
    %v1366 = vadd.f32 %v1363, 1.0
    %v1367 = vrcp.pop %v1364
    %v1368 = vmul.f32 1.0, %v1367
    %v1369 = vrcp.pop %v1365
    %v1370 = vmul.f32 1.0, %v1369
    %v1371 = vrcp.pop %v1366
    %v1372 = vmul.f32 1.0, %v1371
    %v1373 = vtanh.pop %v1354
    %v1374 = vmul.f32 %v1370, %v1025
    %v1375 = vmul.f32 %v1368, %v1373
    %v1376 = vadd.f32 %v1374, %v1375
    %v1377 = vtanh.pop %v1376
    %v1378 = vmul.f32 %v1372, %v1377
    %1379 = vmatprep.subr.mxu0 %v589
    %1380 = vmatpush1.msra.mxu0 %v588
    %1381 = vmatprep.subr.mxu0 %v585
    %1382 = vmatpush1.msra.mxu0 %v584
    %1383 = vmatprep.subr.mxu0 %v581
    %1384 = vmatpush1.msra.mxu0 %v580
    %1385 = vmatprep.subr.mxu0 %v577
    %1386 = vmatpush1.msra.mxu0 %v576
    %1387 = vmatprep.subr.mxu0 %v573
    %1388 = vmatpush1.msra.mxu0 %v572
    %1389 = vmatprep.subr.mxu0 %v569
    %1390 = vmatpush1.msra.mxu0 %v568
    %1391 = vmatprep.subr.mxu0 %v565
    %1392 = vmatpush1.msra.mxu0 %v564
    %1393 = vmatprep.subr.mxu0 %v561
    %1394 = vmatpush1.msra.mxu0 %v560
    %1395 = vmatprep.subr.mxu0 %v557
    %1396 = vmatpush1.msra.mxu0 %v556
    %1397 = vmatprep.subr.mxu0 %v553
    %1398 = vmatpush1.msra.mxu0 %v552
    %1399 = vmatprep.subr.mxu0 %v549
    %1400 = vmatpush1.msra.mxu0 %v548
    %1401 = vmatprep.subr.mxu0 %v545
    %1402 = vmatpush1.msra.mxu0 %v544
    %1403 = vmatprep.subr.mxu0 %v541
    %1404 = vmatpush1.msra.mxu0 %v540
    %1405 = vmatprep.subr.mxu0 %v537
    %1406 = vmatpush1.msra.mxu0 %v536
    %1407 = vmatprep.subr.mxu0 %v533
    %1408 = vmatpush1.msra.mxu0 %v532
    %1409 = vmatprep.subr.mxu0 %v529
    %1410 = vmatpush1.msra.mxu0 %v528
    %1411 = vmatprep.subr.mxu0 %v653
    %1412 = vmatpush2.msra.mxu0 %v652
    %1413 = vmatprep.subr.mxu0 %v649
    %1414 = vmatpush2.msra.mxu0 %v648
    %1415 = vmatprep.subr.mxu0 %v645
    %1416 = vmatpush2.msra.mxu0 %v644
    %1417 = vmatprep.subr.mxu0 %v641
    %1418 = vmatpush2.msra.mxu0 %v640
    %1419 = vmatprep.subr.mxu0 %v637
    %1420 = vmatpush2.msra.mxu0 %v636
    %1421 = vmatprep.subr.mxu0 %v633
    %1422 = vmatpush2.msra.mxu0 %v632
    %1423 = vmatprep.subr.mxu0 %v629
    %1424 = vmatpush2.msra.mxu0 %v628
    %1425 = vmatprep.subr.mxu0 %v625
    %1426 = vmatpush2.msra.mxu0 %v624
    %1427 = vmatprep.subr.mxu0 %v621
    %1428 = vmatpush2.msra.mxu0 %v620
    %1429 = vmatprep.subr.mxu0 %v617
    %1430 = vmatpush2.msra.mxu0 %v616
    %1431 = vmatprep.subr.mxu0 %v613
    %1432 = vmatpush2.msra.mxu0 %v612
    %1433 = vmatprep.subr.mxu0 %v609
    %1434 = vmatpush2.msra.mxu0 %v608
    %1435 = vmatprep.subr.mxu0 %v605
    %1436 = vmatpush2.msra.mxu0 %v604
    %1437 = vmatprep.subr.mxu0 %v601
    %1438 = vmatpush2.msra.mxu0 %v600
    %1439 = vmatprep.subr.mxu0 %v597
    %1440 = vmatpush2.msra.mxu0 %v596
    %1441 = vmatprep.subr.mxu0 %v593
    %1442 = vmatpush2.msra.mxu0 %v592
    %1443 = vmatprep.mubr.f32.mxu0 %v1193
    %1444 = vmatmul.mubr.f32.gmra.mxu0 %v1027
    %v1445 = vpop.f32.mrf.mxu0
    %v1446 = vadd.f32 %v660, %v1445
    %v1447 = vpop.f32.mrf.mxu0
    %v1448 = vadd.f32 %v664, %v1447
    %1449 = vdwg.mxu0
    %1450 = vmatprep.subr.mxu0 %v591
    %1451 = vmatpush1.msra.mxu0 %v590
    %1452 = vmatprep.subr.mxu0 %v587
    %1453 = vmatpush1.msra.mxu0 %v586
    %1454 = vmatprep.subr.mxu0 %v583
    %1455 = vmatpush1.msra.mxu0 %v582
    %1456 = vmatprep.subr.mxu0 %v579
    %1457 = vmatpush1.msra.mxu0 %v578
    %1458 = vmatprep.subr.mxu0 %v575
    %1459 = vmatpush1.msra.mxu0 %v574
    %1460 = vmatprep.subr.mxu0 %v571
    %1461 = vmatpush1.msra.mxu0 %v570
    %1462 = vmatprep.subr.mxu0 %v567
    %1463 = vmatpush1.msra.mxu0 %v566
    %1464 = vmatprep.subr.mxu0 %v563
    %1465 = vmatpush1.msra.mxu0 %v562
    %1466 = vmatprep.subr.mxu0 %v559
    %1467 = vmatpush1.msra.mxu0 %v558
    %1468 = vmatprep.subr.mxu0 %v555
    %1469 = vmatpush1.msra.mxu0 %v554
    %1470 = vmatprep.subr.mxu0 %v551
    %1471 = vmatpush1.msra.mxu0 %v550
    %1472 = vmatprep.subr.mxu0 %v547
    %1473 = vmatpush1.msra.mxu0 %v546
    %1474 = vmatprep.subr.mxu0 %v543
    %1475 = vmatpush1.msra.mxu0 %v542
    %1476 = vmatprep.subr.mxu0 %v539
    %1477 = vmatpush1.msra.mxu0 %v538
    %1478 = vmatprep.subr.mxu0 %v535
    %1479 = vmatpush1.msra.mxu0 %v534
    %1480 = vmatprep.subr.mxu0 %v531
    %1481 = vmatpush1.msra.mxu0 %v530
    %1482 = vmatprep.subr.mxu0 %v655
    %1483 = vmatpush2.msra.mxu0 %v654
    %1484 = vmatprep.subr.mxu0 %v651
    %1485 = vmatpush2.msra.mxu0 %v650
    %1486 = vmatprep.subr.mxu0 %v647
    %1487 = vmatpush2.msra.mxu0 %v646
    %1488 = vmatprep.subr.mxu0 %v643
    %1489 = vmatpush2.msra.mxu0 %v642
    %1490 = vmatprep.subr.mxu0 %v639
    %1491 = vmatpush2.msra.mxu0 %v638
    %1492 = vmatprep.subr.mxu0 %v635
    %1493 = vmatpush2.msra.mxu0 %v634
    %1494 = vmatprep.subr.mxu0 %v631
    %1495 = vmatpush2.msra.mxu0 %v630
    %1496 = vmatprep.subr.mxu0 %v627
    %1497 = vmatpush2.msra.mxu0 %v626
    %1498 = vmatprep.subr.mxu0 %v623
    %1499 = vmatpush2.msra.mxu0 %v622
    %1500 = vmatprep.subr.mxu0 %v619
    %1501 = vmatpush2.msra.mxu0 %v618
    %1502 = vmatprep.subr.mxu0 %v615
    %1503 = vmatpush2.msra.mxu0 %v614
    %1504 = vmatprep.subr.mxu0 %v611
    %1505 = vmatpush2.msra.mxu0 %v610
    %1506 = vmatprep.subr.mxu0 %v607
    %1507 = vmatpush2.msra.mxu0 %v606
    %1508 = vmatprep.subr.mxu0 %v603
    %1509 = vmatpush2.msra.mxu0 %v602
    %1510 = vmatprep.subr.mxu0 %v599
    %1511 = vmatpush2.msra.mxu0 %v598
    %1512 = vmatprep.subr.mxu0 %v595
    %1513 = vmatpush2.msra.mxu0 %v594
    %1514 = vmatprep.mubr.f32.mxu0 %v1193
    %1515 = vmatmul.mubr.f32.gmra.mxu0 %v1027
    %v1516 = vpop.f32.mrf.mxu0
    %v1517 = vadd.f32 %v668, %v1516
    %v1518 = vpop.f32.mrf.mxu0
    %v1519 = vadd.f32 %v672, %v1518
    %1520 = vdwg.mxu0
    %v1521 = vxor.u32 %v1446, 2147483648
    %v1522 = vxor.u32 %v1448, 2147483648
    %v1523 = vxor.u32 %v1517, 2147483648
    %v1524 = vmul.f32 %v1521, 1.442695
    %v1525 = vpow.pop %v1524
    %v1526 = vmul.f32 %v1522, 1.442695
    %v1527 = vpow.pop %v1526
    %v1528 = vmul.f32 %v1523, 1.442695
    %v1529 = vpow.pop %v1528
    %v1530 = vadd.f32 %v1525, 1.0
    %v1531 = vadd.f32 %v1527, 1.0
    %v1532 = vadd.f32 %v1529, 1.0
    %v1533 = vrcp.pop %v1530
    %v1534 = vmul.f32 1.0, %v1533
    %v1535 = vrcp.pop %v1531
    %v1536 = vmul.f32 1.0, %v1535
    %v1537 = vrcp.pop %v1532
    %v1538 = vmul.f32 1.0, %v1537
    %v1539 = vtanh.pop %v1519
    %v1540 = vmul.f32 %v1536, %v1191
    %v1541 = vmul.f32 %v1534, %v1539
    %v1542 = vadd.f32 %v1540, %v1541
    %v1543 = vtanh.pop %v1542
    %v1544 = vmul.f32 %v1538, %v1543
    %s1545 = scalar_lea.vmem %s0, 32
    %v1546 = vld [vmem:[%s1545] sm:$0xff]
    %1548 = vset.pattern.permute.xlu0 0
    %1549 = vperm.xlu0 %1548, %v1546
    %v1550 = vpop.permute.xlu0 %1549
    %v1552 = vmul.f32 %v1550, %v123
    %v1553 = vmul.f32 %v1550, %v127
    %v1554 = vmul.f32 %v1550, %v131
    %v1555 = vmul.f32 %v1550, %v135
    %v1556 = vadd.f32 %v1552, %v148
    %v1557 = vadd.f32 %v1553, %v152
    %v1558 = vadd.f32 %v1554, %v156
    %v1559 = vadd.f32 %v1555, %v160
    %1560 = vmatprep.subr.mxu0 %v101
    %1561 = vmatpush1.msra.mxu0 %v100
    %1562 = vmatprep.subr.mxu0 %v97
    %1563 = vmatpush1.msra.mxu0 %v96
    %1564 = vmatprep.subr.mxu0 %v93
    %1565 = vmatpush1.msra.mxu0 %v92
    %1566 = vmatprep.subr.mxu0 %v89
    %1567 = vmatpush1.msra.mxu0 %v88
    %1568 = vmatprep.subr.mxu0 %v85
    %1569 = vmatpush1.msra.mxu0 %v84
    %1570 = vmatprep.subr.mxu0 %v81
    %1571 = vmatpush1.msra.mxu0 %v80
    %1572 = vmatprep.subr.mxu0 %v77
    %1573 = vmatpush1.msra.mxu0 %v76
    %1574 = vmatprep.subr.mxu0 %v73
    %1575 = vmatpush1.msra.mxu0 %v72
    %1576 = vmatprep.subr.mxu0 %v69
    %1577 = vmatpush1.msra.mxu0 %v68
    %1578 = vmatprep.subr.mxu0 %v65
    %1579 = vmatpush1.msra.mxu0 %v64
    %1580 = vmatprep.subr.mxu0 %v61
    %1581 = vmatpush1.msra.mxu0 %v60
    %1582 = vmatprep.subr.mxu0 %v57
    %1583 = vmatpush1.msra.mxu0 %v56
    %1584 = vmatprep.subr.mxu0 %v53
    %1585 = vmatpush1.msra.mxu0 %v52
    %1586 = vmatprep.subr.mxu0 %v49
    %1587 = vmatpush1.msra.mxu0 %v48
    %1588 = vmatprep.subr.mxu0 %v45
    %1589 = vmatpush1.msra.mxu0 %v44
    %1590 = vmatprep.subr.mxu0 %v41
    %1591 = vmatpush1.msra.mxu0 %v40
    %1592 = vmatprep.subr.mxu0 0.0
    %1593 = vmatpush2.msra.mxu0 0.0
    %1594 = vmatprep.subr.mxu0 0.0
    %1595 = vmatpush2.msra.mxu0 0.0
    %1596 = vmatprep.subr.mxu0 0.0
    %1597 = vmatpush2.msra.mxu0 0.0
    %1598 = vmatprep.subr.mxu0 0.0
    %1599 = vmatpush2.msra.mxu0 0.0
    %1600 = vmatprep.subr.mxu0 0.0
    %1601 = vmatpush2.msra.mxu0 0.0
    %1602 = vmatprep.subr.mxu0 0.0
    %1603 = vmatpush2.msra.mxu0 0.0
    %1604 = vmatprep.subr.mxu0 0.0
    %1605 = vmatpush2.msra.mxu0 0.0
    %1606 = vmatprep.subr.mxu0 0.0
    %1607 = vmatpush2.msra.mxu0 0.0
    %1608 = vmatprep.subr.mxu0 0.0
    %1609 = vmatpush2.msra.mxu0 0.0
    %1610 = vmatprep.subr.mxu0 0.0
    %1611 = vmatpush2.msra.mxu0 0.0
    %1612 = vmatprep.subr.mxu0 0.0
    %1613 = vmatpush2.msra.mxu0 0.0
    %1614 = vmatprep.subr.mxu0 0.0
    %1615 = vmatpush2.msra.mxu0 0.0
    %1616 = vmatprep.subr.mxu0 0.0
    %1617 = vmatpush2.msra.mxu0 0.0
    %1618 = vmatprep.subr.mxu0 0.0
    %1619 = vmatpush2.msra.mxu0 0.0
    %1620 = vmatprep.subr.mxu0 0.0
    %1621 = vmatpush2.msra.mxu0 0.0
    %1622 = vmatprep.subr.mxu0 0.0
    %1623 = vmatpush2.msra.mxu0 0.0
    %1624 = vmatprep.mubr.f32.mxu0 0.0
    %1625 = vmatmul.mubr.f32.gmra.mxu0 %v1378
    %v1626 = vpop.f32.mrf.mxu0
    %v1627 = vadd.f32 0.0, %v1626
    %v1628 = vpop.f32.mrf.mxu0
    %v1629 = vadd.f32 0.0, %v1628
    %1630 = vdwg.mxu0
    %1631 = vmatprep.subr.mxu0 %v103
    %1632 = vmatpush1.msra.mxu0 %v102
    %1633 = vmatprep.subr.mxu0 %v99
    %1634 = vmatpush1.msra.mxu0 %v98
    %1635 = vmatprep.subr.mxu0 %v95
    %1636 = vmatpush1.msra.mxu0 %v94
    %1637 = vmatprep.subr.mxu0 %v91
    %1638 = vmatpush1.msra.mxu0 %v90
    %1639 = vmatprep.subr.mxu0 %v87
    %1640 = vmatpush1.msra.mxu0 %v86
    %1641 = vmatprep.subr.mxu0 %v83
    %1642 = vmatpush1.msra.mxu0 %v82
    %1643 = vmatprep.subr.mxu0 %v79
    %1644 = vmatpush1.msra.mxu0 %v78
    %1645 = vmatprep.subr.mxu0 %v75
    %1646 = vmatpush1.msra.mxu0 %v74
    %1647 = vmatprep.subr.mxu0 %v71
    %1648 = vmatpush1.msra.mxu0 %v70
    %1649 = vmatprep.subr.mxu0 %v67
    %1650 = vmatpush1.msra.mxu0 %v66
    %1651 = vmatprep.subr.mxu0 %v63
    %1652 = vmatpush1.msra.mxu0 %v62
    %1653 = vmatprep.subr.mxu0 %v59
    %1654 = vmatpush1.msra.mxu0 %v58
    %1655 = vmatprep.subr.mxu0 %v55
    %1656 = vmatpush1.msra.mxu0 %v54
    %1657 = vmatprep.subr.mxu0 %v51
    %1658 = vmatpush1.msra.mxu0 %v50
    %1659 = vmatprep.subr.mxu0 %v47
    %1660 = vmatpush1.msra.mxu0 %v46
    %1661 = vmatprep.subr.mxu0 %v43
    %1662 = vmatpush1.msra.mxu0 %v42
    %1663 = vmatprep.subr.mxu0 0.0
    %1664 = vmatpush2.msra.mxu0 0.0
    %1665 = vmatprep.subr.mxu0 0.0
    %1666 = vmatpush2.msra.mxu0 0.0
    %1667 = vmatprep.subr.mxu0 0.0
    %1668 = vmatpush2.msra.mxu0 0.0
    %1669 = vmatprep.subr.mxu0 0.0
    %1670 = vmatpush2.msra.mxu0 0.0
    %1671 = vmatprep.subr.mxu0 0.0
    %1672 = vmatpush2.msra.mxu0 0.0
    %1673 = vmatprep.subr.mxu0 0.0
    %1674 = vmatpush2.msra.mxu0 0.0
    %1675 = vmatprep.subr.mxu0 0.0
    %1676 = vmatpush2.msra.mxu0 0.0
    %1677 = vmatprep.subr.mxu0 0.0
    %1678 = vmatpush2.msra.mxu0 0.0
    %1679 = vmatprep.subr.mxu0 0.0
    %1680 = vmatpush2.msra.mxu0 0.0
    %1681 = vmatprep.subr.mxu0 0.0
    %1682 = vmatpush2.msra.mxu0 0.0
    %1683 = vmatprep.subr.mxu0 0.0
    %1684 = vmatpush2.msra.mxu0 0.0
    %1685 = vmatprep.subr.mxu0 0.0
    %1686 = vmatpush2.msra.mxu0 0.0
    %1687 = vmatprep.subr.mxu0 0.0
    %1688 = vmatpush2.msra.mxu0 0.0
    %1689 = vmatprep.subr.mxu0 0.0
    %1690 = vmatpush2.msra.mxu0 0.0
    %1691 = vmatprep.subr.mxu0 0.0
    %1692 = vmatpush2.msra.mxu0 0.0
    %1693 = vmatprep.subr.mxu0 0.0
    %1694 = vmatpush2.msra.mxu0 0.0
    %1695 = vmatprep.mubr.f32.mxu0 0.0
    %1696 = vmatmul.mubr.f32.gmra.mxu0 %v1378
    %v1697 = vpop.f32.mrf.mxu0
    %v1698 = vadd.f32 0.0, %v1697
    %v1699 = vpop.f32.mrf.mxu0
    %v1700 = vadd.f32 0.0, %v1699
    %1701 = vdwg.mxu0
    %v1702 = vadd.f32 %v1556, %v1627
    %v1703 = vadd.f32 %v1557, %v1629
    %v1704 = vadd.f32 %v1558, %v1698
    %v1705 = vadd.f32 %v1559, %v1700
    %v1706 = vxor.u32 %v1702, 2147483648
    %v1707 = vxor.u32 %v1703, 2147483648
    %v1708 = vxor.u32 %v1704, 2147483648
    %v1709 = vmul.f32 %v1706, 1.442695
    %v1710 = vpow.pop %v1709
    %v1711 = vmul.f32 %v1707, 1.442695
    %v1712 = vpow.pop %v1711
    %v1713 = vmul.f32 %v1708, 1.442695
    %v1714 = vpow.pop %v1713
    %v1715 = vadd.f32 %v1710, 1.0
    %v1716 = vadd.f32 %v1712, 1.0
    %v1717 = vadd.f32 %v1714, 1.0
    %v1718 = vrcp.pop %v1715
    %v1719 = vmul.f32 1.0, %v1718
    %v1720 = vrcp.pop %v1716
    %v1721 = vmul.f32 1.0, %v1720
    %v1722 = vrcp.pop %v1717
    %v1723 = vmul.f32 1.0, %v1722
    %v1724 = vtanh.pop %v1705
    %v1725 = vmul.f32 %v1721, %v1376
    %v1726 = vmul.f32 %v1719, %v1724
    %v1727 = vadd.f32 %v1725, %v1726
    %v1728 = vtanh.pop %v1727
    %v1729 = vmul.f32 %v1723, %v1728
    %1730 = vmatprep.subr.mxu0 %v589
    %1731 = vmatpush1.msra.mxu0 %v588
    %1732 = vmatprep.subr.mxu0 %v585
    %1733 = vmatpush1.msra.mxu0 %v584
    %1734 = vmatprep.subr.mxu0 %v581
    %1735 = vmatpush1.msra.mxu0 %v580
    %1736 = vmatprep.subr.mxu0 %v577
    %1737 = vmatpush1.msra.mxu0 %v576
    %1738 = vmatprep.subr.mxu0 %v573
    %1739 = vmatpush1.msra.mxu0 %v572
    %1740 = vmatprep.subr.mxu0 %v569
    %1741 = vmatpush1.msra.mxu0 %v568
    %1742 = vmatprep.subr.mxu0 %v565
    %1743 = vmatpush1.msra.mxu0 %v564
    %1744 = vmatprep.subr.mxu0 %v561
    %1745 = vmatpush1.msra.mxu0 %v560
    %1746 = vmatprep.subr.mxu0 %v557
    %1747 = vmatpush1.msra.mxu0 %v556
    %1748 = vmatprep.subr.mxu0 %v553
    %1749 = vmatpush1.msra.mxu0 %v552
    %1750 = vmatprep.subr.mxu0 %v549
    %1751 = vmatpush1.msra.mxu0 %v548
    %1752 = vmatprep.subr.mxu0 %v545
    %1753 = vmatpush1.msra.mxu0 %v544
    %1754 = vmatprep.subr.mxu0 %v541
    %1755 = vmatpush1.msra.mxu0 %v540
    %1756 = vmatprep.subr.mxu0 %v537
    %1757 = vmatpush1.msra.mxu0 %v536
    %1758 = vmatprep.subr.mxu0 %v533
    %1759 = vmatpush1.msra.mxu0 %v532
    %1760 = vmatprep.subr.mxu0 %v529
    %1761 = vmatpush1.msra.mxu0 %v528
    %1762 = vmatprep.subr.mxu0 %v653
    %1763 = vmatpush2.msra.mxu0 %v652
    %1764 = vmatprep.subr.mxu0 %v649
    %1765 = vmatpush2.msra.mxu0 %v648
    %1766 = vmatprep.subr.mxu0 %v645
    %1767 = vmatpush2.msra.mxu0 %v644
    %1768 = vmatprep.subr.mxu0 %v641
    %1769 = vmatpush2.msra.mxu0 %v640
    %1770 = vmatprep.subr.mxu0 %v637
    %1771 = vmatpush2.msra.mxu0 %v636
    %1772 = vmatprep.subr.mxu0 %v633
    %1773 = vmatpush2.msra.mxu0 %v632
    %1774 = vmatprep.subr.mxu0 %v629
    %1775 = vmatpush2.msra.mxu0 %v628
    %1776 = vmatprep.subr.mxu0 %v625
    %1777 = vmatpush2.msra.mxu0 %v624
    %1778 = vmatprep.subr.mxu0 %v621
    %1779 = vmatpush2.msra.mxu0 %v620
    %1780 = vmatprep.subr.mxu0 %v617
    %1781 = vmatpush2.msra.mxu0 %v616
    %1782 = vmatprep.subr.mxu0 %v613
    %1783 = vmatpush2.msra.mxu0 %v612
    %1784 = vmatprep.subr.mxu0 %v609
    %1785 = vmatpush2.msra.mxu0 %v608
    %1786 = vmatprep.subr.mxu0 %v605
    %1787 = vmatpush2.msra.mxu0 %v604
    %1788 = vmatprep.subr.mxu0 %v601
    %1789 = vmatpush2.msra.mxu0 %v600
    %1790 = vmatprep.subr.mxu0 %v597
    %1791 = vmatpush2.msra.mxu0 %v596
    %1792 = vmatprep.subr.mxu0 %v593
    %1793 = vmatpush2.msra.mxu0 %v592
    %1794 = vmatprep.mubr.f32.mxu0 %v1544
    %1795 = vmatmul.mubr.f32.gmra.mxu0 %v1378
    %v1796 = vpop.f32.mrf.mxu0
    %v1797 = vadd.f32 %v660, %v1796
    %v1798 = vpop.f32.mrf.mxu0
    %v1799 = vadd.f32 %v664, %v1798
    %1800 = vdwg.mxu0
    %1801 = vmatprep.subr.mxu0 %v591
    %1802 = vmatpush1.msra.mxu0 %v590
    %1803 = vmatprep.subr.mxu0 %v587
    %1804 = vmatpush1.msra.mxu0 %v586
    %1805 = vmatprep.subr.mxu0 %v583
    %1806 = vmatpush1.msra.mxu0 %v582
    %1807 = vmatprep.subr.mxu0 %v579
    %1808 = vmatpush1.msra.mxu0 %v578
    %1809 = vmatprep.subr.mxu0 %v575
    %1810 = vmatpush1.msra.mxu0 %v574
    %1811 = vmatprep.subr.mxu0 %v571
    %1812 = vmatpush1.msra.mxu0 %v570
    %1813 = vmatprep.subr.mxu0 %v567
    %1814 = vmatpush1.msra.mxu0 %v566
    %1815 = vmatprep.subr.mxu0 %v563
    %1816 = vmatpush1.msra.mxu0 %v562
    %1817 = vmatprep.subr.mxu0 %v559
    %1818 = vmatpush1.msra.mxu0 %v558
    %1819 = vmatprep.subr.mxu0 %v555
    %1820 = vmatpush1.msra.mxu0 %v554
    %1821 = vmatprep.subr.mxu0 %v551
    %1822 = vmatpush1.msra.mxu0 %v550
    %1823 = vmatprep.subr.mxu0 %v547
    %1824 = vmatpush1.msra.mxu0 %v546
    %1825 = vmatprep.subr.mxu0 %v543
    %1826 = vmatpush1.msra.mxu0 %v542
    %1827 = vmatprep.subr.mxu0 %v539
    %1828 = vmatpush1.msra.mxu0 %v538
    %1829 = vmatprep.subr.mxu0 %v535
    %1830 = vmatpush1.msra.mxu0 %v534
    %1831 = vmatprep.subr.mxu0 %v531
    %1832 = vmatpush1.msra.mxu0 %v530
    %1833 = vmatprep.subr.mxu0 %v655
    %1834 = vmatpush2.msra.mxu0 %v654
    %1835 = vmatprep.subr.mxu0 %v651
    %1836 = vmatpush2.msra.mxu0 %v650
    %1837 = vmatprep.subr.mxu0 %v647
    %1838 = vmatpush2.msra.mxu0 %v646
    %1839 = vmatprep.subr.mxu0 %v643
    %1840 = vmatpush2.msra.mxu0 %v642
    %1841 = vmatprep.subr.mxu0 %v639
    %1842 = vmatpush2.msra.mxu0 %v638
    %1843 = vmatprep.subr.mxu0 %v635
    %1844 = vmatpush2.msra.mxu0 %v634
    %1845 = vmatprep.subr.mxu0 %v631
    %1846 = vmatpush2.msra.mxu0 %v630
    %1847 = vmatprep.subr.mxu0 %v627
    %1848 = vmatpush2.msra.mxu0 %v626
    %1849 = vmatprep.subr.mxu0 %v623
    %1850 = vmatpush2.msra.mxu0 %v622
    %1851 = vmatprep.subr.mxu0 %v619
    %1852 = vmatpush2.msra.mxu0 %v618
    %1853 = vmatprep.subr.mxu0 %v615
    %1854 = vmatpush2.msra.mxu0 %v614
    %1855 = vmatprep.subr.mxu0 %v611
    %1856 = vmatpush2.msra.mxu0 %v610
    %1857 = vmatprep.subr.mxu0 %v607
    %1858 = vmatpush2.msra.mxu0 %v606
    %1859 = vmatprep.subr.mxu0 %v603
    %1860 = vmatpush2.msra.mxu0 %v602
    %1861 = vmatprep.subr.mxu0 %v599
    %1862 = vmatpush2.msra.mxu0 %v598
    %1863 = vmatprep.subr.mxu0 %v595
    %1864 = vmatpush2.msra.mxu0 %v594
    %1865 = vmatprep.mubr.f32.mxu0 %v1544
    %1866 = vmatmul.mubr.f32.gmra.mxu0 %v1378
    %v1867 = vpop.f32.mrf.mxu0
    %v1868 = vadd.f32 %v668, %v1867
    %v1869 = vpop.f32.mrf.mxu0
    %v1870 = vadd.f32 %v672, %v1869
    %1871 = vdwg.mxu0
    %v1872 = vxor.u32 %v1797, 2147483648
    %v1873 = vxor.u32 %v1799, 2147483648
    %v1874 = vxor.u32 %v1868, 2147483648
    %v1875 = vmul.f32 %v1872, 1.442695
    %v1876 = vpow.pop %v1875
    %v1877 = vmul.f32 %v1873, 1.442695
    %v1878 = vpow.pop %v1877
    %v1879 = vmul.f32 %v1874, 1.442695
    %v1880 = vpow.pop %v1879
    %v1881 = vadd.f32 %v1876, 1.0
    %v1882 = vadd.f32 %v1878, 1.0
    %v1883 = vadd.f32 %v1880, 1.0
    %v1884 = vrcp.pop %v1881
    %v1885 = vmul.f32 1.0, %v1884
    %v1886 = vrcp.pop %v1882
    %v1887 = vmul.f32 1.0, %v1886
    %v1888 = vrcp.pop %v1883
    %v1889 = vmul.f32 1.0, %v1888
    %v1890 = vtanh.pop %v1870
    %v1891 = vmul.f32 %v1887, %v1542
    %v1892 = vmul.f32 %v1885, %v1890
    %v1893 = vadd.f32 %v1891, %v1892
    %v1894 = vtanh.pop %v1893
    %v1895 = vmul.f32 %v1889, %v1894
    %s1896 = scalar_lea.vmem %s0, 40
    %v1897 = vld [vmem:[%s1896] sm:$0xff]
    %1899 = vset.pattern.permute.xlu0 0
    %1900 = vperm.xlu0 %1899, %v1897
    %v1901 = vpop.permute.xlu0 %1900
    %v1903 = vmul.f32 %v1901, %v123
    %v1904 = vmul.f32 %v1901, %v127
    %v1905 = vmul.f32 %v1901, %v131
    %v1906 = vmul.f32 %v1901, %v135
    %v1907 = vadd.f32 %v1903, %v148
    %v1908 = vadd.f32 %v1904, %v152
    %v1909 = vadd.f32 %v1905, %v156
    %v1910 = vadd.f32 %v1906, %v160
    %1911 = vmatprep.subr.mxu0 %v101
    %1912 = vmatpush1.msra.mxu0 %v100
    %1913 = vmatprep.subr.mxu0 %v97
    %1914 = vmatpush1.msra.mxu0 %v96
    %1915 = vmatprep.subr.mxu0 %v93
    %1916 = vmatpush1.msra.mxu0 %v92
    %1917 = vmatprep.subr.mxu0 %v89
    %1918 = vmatpush1.msra.mxu0 %v88
    %1919 = vmatprep.subr.mxu0 %v85
    %1920 = vmatpush1.msra.mxu0 %v84
    %1921 = vmatprep.subr.mxu0 %v81
    %1922 = vmatpush1.msra.mxu0 %v80
    %1923 = vmatprep.subr.mxu0 %v77
    %1924 = vmatpush1.msra.mxu0 %v76
    %1925 = vmatprep.subr.mxu0 %v73
    %1926 = vmatpush1.msra.mxu0 %v72
    %1927 = vmatprep.subr.mxu0 %v69
    %1928 = vmatpush1.msra.mxu0 %v68
    %1929 = vmatprep.subr.mxu0 %v65
    %1930 = vmatpush1.msra.mxu0 %v64
    %1931 = vmatprep.subr.mxu0 %v61
    %1932 = vmatpush1.msra.mxu0 %v60
    %1933 = vmatprep.subr.mxu0 %v57
    %1934 = vmatpush1.msra.mxu0 %v56
    %1935 = vmatprep.subr.mxu0 %v53
    %1936 = vmatpush1.msra.mxu0 %v52
    %1937 = vmatprep.subr.mxu0 %v49
    %1938 = vmatpush1.msra.mxu0 %v48
    %1939 = vmatprep.subr.mxu0 %v45
    %1940 = vmatpush1.msra.mxu0 %v44
    %1941 = vmatprep.subr.mxu0 %v41
    %1942 = vmatpush1.msra.mxu0 %v40
    %1943 = vmatprep.subr.mxu0 0.0
    %1944 = vmatpush2.msra.mxu0 0.0
    %1945 = vmatprep.subr.mxu0 0.0
    %1946 = vmatpush2.msra.mxu0 0.0
    %1947 = vmatprep.subr.mxu0 0.0
    %1948 = vmatpush2.msra.mxu0 0.0
    %1949 = vmatprep.subr.mxu0 0.0
    %1950 = vmatpush2.msra.mxu0 0.0
    %1951 = vmatprep.subr.mxu0 0.0
    %1952 = vmatpush2.msra.mxu0 0.0
    %1953 = vmatprep.subr.mxu0 0.0
    %1954 = vmatpush2.msra.mxu0 0.0
    %1955 = vmatprep.subr.mxu0 0.0
    %1956 = vmatpush2.msra.mxu0 0.0
    %1957 = vmatprep.subr.mxu0 0.0
    %1958 = vmatpush2.msra.mxu0 0.0
    %1959 = vmatprep.subr.mxu0 0.0
    %1960 = vmatpush2.msra.mxu0 0.0
    %1961 = vmatprep.subr.mxu0 0.0
    %1962 = vmatpush2.msra.mxu0 0.0
    %1963 = vmatprep.subr.mxu0 0.0
    %1964 = vmatpush2.msra.mxu0 0.0
    %1965 = vmatprep.subr.mxu0 0.0
    %1966 = vmatpush2.msra.mxu0 0.0
    %1967 = vmatprep.subr.mxu0 0.0
    %1968 = vmatpush2.msra.mxu0 0.0
    %1969 = vmatprep.subr.mxu0 0.0
    %1970 = vmatpush2.msra.mxu0 0.0
    %1971 = vmatprep.subr.mxu0 0.0
    %1972 = vmatpush2.msra.mxu0 0.0
    %1973 = vmatprep.subr.mxu0 0.0
    %1974 = vmatpush2.msra.mxu0 0.0
    %1975 = vmatprep.mubr.f32.mxu0 0.0
    %1976 = vmatmul.mubr.f32.gmra.mxu0 %v1729
    %v1977 = vpop.f32.mrf.mxu0
    %v1978 = vadd.f32 0.0, %v1977
    %v1979 = vpop.f32.mrf.mxu0
    %v1980 = vadd.f32 0.0, %v1979
    %1981 = vdwg.mxu0
    %1982 = vmatprep.subr.mxu0 %v103
    %1983 = vmatpush1.msra.mxu0 %v102
    %1984 = vmatprep.subr.mxu0 %v99
    %1985 = vmatpush1.msra.mxu0 %v98
    %1986 = vmatprep.subr.mxu0 %v95
    %1987 = vmatpush1.msra.mxu0 %v94
    %1988 = vmatprep.subr.mxu0 %v91
    %1989 = vmatpush1.msra.mxu0 %v90
    %1990 = vmatprep.subr.mxu0 %v87
    %1991 = vmatpush1.msra.mxu0 %v86
    %1992 = vmatprep.subr.mxu0 %v83
    %1993 = vmatpush1.msra.mxu0 %v82
    %1994 = vmatprep.subr.mxu0 %v79
    %1995 = vmatpush1.msra.mxu0 %v78
    %1996 = vmatprep.subr.mxu0 %v75
    %1997 = vmatpush1.msra.mxu0 %v74
    %1998 = vmatprep.subr.mxu0 %v71
    %1999 = vmatpush1.msra.mxu0 %v70
    %2000 = vmatprep.subr.mxu0 %v67
    %2001 = vmatpush1.msra.mxu0 %v66
    %2002 = vmatprep.subr.mxu0 %v63
    %2003 = vmatpush1.msra.mxu0 %v62
    %2004 = vmatprep.subr.mxu0 %v59
    %2005 = vmatpush1.msra.mxu0 %v58
    %2006 = vmatprep.subr.mxu0 %v55
    %2007 = vmatpush1.msra.mxu0 %v54
    %2008 = vmatprep.subr.mxu0 %v51
    %2009 = vmatpush1.msra.mxu0 %v50
    %2010 = vmatprep.subr.mxu0 %v47
    %2011 = vmatpush1.msra.mxu0 %v46
    %2012 = vmatprep.subr.mxu0 %v43
    %2013 = vmatpush1.msra.mxu0 %v42
    %2014 = vmatprep.subr.mxu0 0.0
    %2015 = vmatpush2.msra.mxu0 0.0
    %2016 = vmatprep.subr.mxu0 0.0
    %2017 = vmatpush2.msra.mxu0 0.0
    %2018 = vmatprep.subr.mxu0 0.0
    %2019 = vmatpush2.msra.mxu0 0.0
    %2020 = vmatprep.subr.mxu0 0.0
    %2021 = vmatpush2.msra.mxu0 0.0
    %2022 = vmatprep.subr.mxu0 0.0
    %2023 = vmatpush2.msra.mxu0 0.0
    %2024 = vmatprep.subr.mxu0 0.0
    %2025 = vmatpush2.msra.mxu0 0.0
    %2026 = vmatprep.subr.mxu0 0.0
    %2027 = vmatpush2.msra.mxu0 0.0
    %2028 = vmatprep.subr.mxu0 0.0
    %2029 = vmatpush2.msra.mxu0 0.0
    %2030 = vmatprep.subr.mxu0 0.0
    %2031 = vmatpush2.msra.mxu0 0.0
    %2032 = vmatprep.subr.mxu0 0.0
    %2033 = vmatpush2.msra.mxu0 0.0
    %2034 = vmatprep.subr.mxu0 0.0
    %2035 = vmatpush2.msra.mxu0 0.0
    %2036 = vmatprep.subr.mxu0 0.0
    %2037 = vmatpush2.msra.mxu0 0.0
    %2038 = vmatprep.subr.mxu0 0.0
    %2039 = vmatpush2.msra.mxu0 0.0
    %2040 = vmatprep.subr.mxu0 0.0
    %2041 = vmatpush2.msra.mxu0 0.0
    %2042 = vmatprep.subr.mxu0 0.0
    %2043 = vmatpush2.msra.mxu0 0.0
    %2044 = vmatprep.subr.mxu0 0.0
    %2045 = vmatpush2.msra.mxu0 0.0
    %2046 = vmatprep.mubr.f32.mxu0 0.0
    %2047 = vmatmul.mubr.f32.gmra.mxu0 %v1729
    %v2048 = vpop.f32.mrf.mxu0
    %v2049 = vadd.f32 0.0, %v2048
    %v2050 = vpop.f32.mrf.mxu0
    %v2051 = vadd.f32 0.0, %v2050
    %2052 = vdwg.mxu0
    %v2053 = vadd.f32 %v1907, %v1978
    %v2054 = vadd.f32 %v1908, %v1980
    %v2055 = vadd.f32 %v1909, %v2049
    %v2056 = vadd.f32 %v1910, %v2051
    %v2057 = vxor.u32 %v2053, 2147483648
    %v2058 = vxor.u32 %v2054, 2147483648
    %v2059 = vxor.u32 %v2055, 2147483648
    %v2060 = vmul.f32 %v2057, 1.442695
    %v2061 = vpow.pop %v2060
    %v2062 = vmul.f32 %v2058, 1.442695
    %v2063 = vpow.pop %v2062
    %v2064 = vmul.f32 %v2059, 1.442695
    %v2065 = vpow.pop %v2064
    %v2066 = vadd.f32 %v2061, 1.0
    %v2067 = vadd.f32 %v2063, 1.0
    %v2068 = vadd.f32 %v2065, 1.0
    %v2069 = vrcp.pop %v2066
    %v2070 = vmul.f32 1.0, %v2069
    %v2071 = vrcp.pop %v2067
    %v2072 = vmul.f32 1.0, %v2071
    %v2073 = vrcp.pop %v2068
    %v2074 = vmul.f32 1.0, %v2073
    %v2075 = vtanh.pop %v2056
    %v2076 = vmul.f32 %v2072, %v1727
    %v2077 = vmul.f32 %v2070, %v2075
    %v2078 = vadd.f32 %v2076, %v2077
    %v2079 = vtanh.pop %v2078
    %v2080 = vmul.f32 %v2074, %v2079
    %2081 = vmatprep.subr.mxu0 %v589
    %2082 = vmatpush1.msra.mxu0 %v588
    %2083 = vmatprep.subr.mxu0 %v585
    %2084 = vmatpush1.msra.mxu0 %v584
    %2085 = vmatprep.subr.mxu0 %v581
    %2086 = vmatpush1.msra.mxu0 %v580
    %2087 = vmatprep.subr.mxu0 %v577
    %2088 = vmatpush1.msra.mxu0 %v576
    %2089 = vmatprep.subr.mxu0 %v573
    %2090 = vmatpush1.msra.mxu0 %v572
    %2091 = vmatprep.subr.mxu0 %v569
    %2092 = vmatpush1.msra.mxu0 %v568
    %2093 = vmatprep.subr.mxu0 %v565
    %2094 = vmatpush1.msra.mxu0 %v564
    %2095 = vmatprep.subr.mxu0 %v561
    %2096 = vmatpush1.msra.mxu0 %v560
    %2097 = vmatprep.subr.mxu0 %v557
    %2098 = vmatpush1.msra.mxu0 %v556
    %2099 = vmatprep.subr.mxu0 %v553
    %2100 = vmatpush1.msra.mxu0 %v552
    %2101 = vmatprep.subr.mxu0 %v549
    %2102 = vmatpush1.msra.mxu0 %v548
    %2103 = vmatprep.subr.mxu0 %v545
    %2104 = vmatpush1.msra.mxu0 %v544
    %2105 = vmatprep.subr.mxu0 %v541
    %2106 = vmatpush1.msra.mxu0 %v540
    %2107 = vmatprep.subr.mxu0 %v537
    %2108 = vmatpush1.msra.mxu0 %v536
    %2109 = vmatprep.subr.mxu0 %v533
    %2110 = vmatpush1.msra.mxu0 %v532
    %2111 = vmatprep.subr.mxu0 %v529
    %2112 = vmatpush1.msra.mxu0 %v528
    %2113 = vmatprep.subr.mxu0 %v653
    %2114 = vmatpush2.msra.mxu0 %v652
    %2115 = vmatprep.subr.mxu0 %v649
    %2116 = vmatpush2.msra.mxu0 %v648
    %2117 = vmatprep.subr.mxu0 %v645
    %2118 = vmatpush2.msra.mxu0 %v644
    %2119 = vmatprep.subr.mxu0 %v641
    %2120 = vmatpush2.msra.mxu0 %v640
    %2121 = vmatprep.subr.mxu0 %v637
    %2122 = vmatpush2.msra.mxu0 %v636
    %2123 = vmatprep.subr.mxu0 %v633
    %2124 = vmatpush2.msra.mxu0 %v632
    %2125 = vmatprep.subr.mxu0 %v629
    %2126 = vmatpush2.msra.mxu0 %v628
    %2127 = vmatprep.subr.mxu0 %v625
    %2128 = vmatpush2.msra.mxu0 %v624
    %2129 = vmatprep.subr.mxu0 %v621
    %2130 = vmatpush2.msra.mxu0 %v620
    %2131 = vmatprep.subr.mxu0 %v617
    %2132 = vmatpush2.msra.mxu0 %v616
    %2133 = vmatprep.subr.mxu0 %v613
    %2134 = vmatpush2.msra.mxu0 %v612
    %2135 = vmatprep.subr.mxu0 %v609
    %2136 = vmatpush2.msra.mxu0 %v608
    %2137 = vmatprep.subr.mxu0 %v605
    %2138 = vmatpush2.msra.mxu0 %v604
    %2139 = vmatprep.subr.mxu0 %v601
    %2140 = vmatpush2.msra.mxu0 %v600
    %2141 = vmatprep.subr.mxu0 %v597
    %2142 = vmatpush2.msra.mxu0 %v596
    %2143 = vmatprep.subr.mxu0 %v593
    %2144 = vmatpush2.msra.mxu0 %v592
    %2145 = vmatprep.mubr.f32.mxu0 %v1895
    %2146 = vmatmul.mubr.f32.gmra.mxu0 %v1729
    %v2147 = vpop.f32.mrf.mxu0
    %v2148 = vadd.f32 %v660, %v2147
    %v2149 = vpop.f32.mrf.mxu0
    %v2150 = vadd.f32 %v664, %v2149
    %2151 = vdwg.mxu0
    %2152 = vmatprep.subr.mxu0 %v591
    %2153 = vmatpush1.msra.mxu0 %v590
    %2154 = vmatprep.subr.mxu0 %v587
    %2155 = vmatpush1.msra.mxu0 %v586
    %2156 = vmatprep.subr.mxu0 %v583
    %2157 = vmatpush1.msra.mxu0 %v582
    %2158 = vmatprep.subr.mxu0 %v579
    %2159 = vmatpush1.msra.mxu0 %v578
    %2160 = vmatprep.subr.mxu0 %v575
    %2161 = vmatpush1.msra.mxu0 %v574
    %2162 = vmatprep.subr.mxu0 %v571
    %2163 = vmatpush1.msra.mxu0 %v570
    %2164 = vmatprep.subr.mxu0 %v567
    %2165 = vmatpush1.msra.mxu0 %v566
    %2166 = vmatprep.subr.mxu0 %v563
    %2167 = vmatpush1.msra.mxu0 %v562
    %2168 = vmatprep.subr.mxu0 %v559
    %2169 = vmatpush1.msra.mxu0 %v558
    %2170 = vmatprep.subr.mxu0 %v555
    %2171 = vmatpush1.msra.mxu0 %v554
    %2172 = vmatprep.subr.mxu0 %v551
    %2173 = vmatpush1.msra.mxu0 %v550
    %2174 = vmatprep.subr.mxu0 %v547
    %2175 = vmatpush1.msra.mxu0 %v546
    %2176 = vmatprep.subr.mxu0 %v543
    %2177 = vmatpush1.msra.mxu0 %v542
    %2178 = vmatprep.subr.mxu0 %v539
    %2179 = vmatpush1.msra.mxu0 %v538
    %2180 = vmatprep.subr.mxu0 %v535
    %2181 = vmatpush1.msra.mxu0 %v534
    %2182 = vmatprep.subr.mxu0 %v531
    %2183 = vmatpush1.msra.mxu0 %v530
    %2184 = vmatprep.subr.mxu0 %v655
    %2185 = vmatpush2.msra.mxu0 %v654
    %2186 = vmatprep.subr.mxu0 %v651
    %2187 = vmatpush2.msra.mxu0 %v650
    %2188 = vmatprep.subr.mxu0 %v647
    %2189 = vmatpush2.msra.mxu0 %v646
    %2190 = vmatprep.subr.mxu0 %v643
    %2191 = vmatpush2.msra.mxu0 %v642
    %2192 = vmatprep.subr.mxu0 %v639
    %2193 = vmatpush2.msra.mxu0 %v638
    %2194 = vmatprep.subr.mxu0 %v635
    %2195 = vmatpush2.msra.mxu0 %v634
    %2196 = vmatprep.subr.mxu0 %v631
    %2197 = vmatpush2.msra.mxu0 %v630
    %2198 = vmatprep.subr.mxu0 %v627
    %2199 = vmatpush2.msra.mxu0 %v626
    %2200 = vmatprep.subr.mxu0 %v623
    %2201 = vmatpush2.msra.mxu0 %v622
    %2202 = vmatprep.subr.mxu0 %v619
    %2203 = vmatpush2.msra.mxu0 %v618
    %2204 = vmatprep.subr.mxu0 %v615
    %2205 = vmatpush2.msra.mxu0 %v614
    %2206 = vmatprep.subr.mxu0 %v611
    %2207 = vmatpush2.msra.mxu0 %v610
    %2208 = vmatprep.subr.mxu0 %v607
    %2209 = vmatpush2.msra.mxu0 %v606
    %2210 = vmatprep.subr.mxu0 %v603
    %2211 = vmatpush2.msra.mxu0 %v602
    %2212 = vmatprep.subr.mxu0 %v599
    %2213 = vmatpush2.msra.mxu0 %v598
    %2214 = vmatprep.subr.mxu0 %v595
    %2215 = vmatpush2.msra.mxu0 %v594
    %2216 = vmatprep.mubr.f32.mxu0 %v1895
    %2217 = vmatmul.mubr.f32.gmra.mxu0 %v1729
    %v2218 = vpop.f32.mrf.mxu0
    %v2219 = vadd.f32 %v668, %v2218
    %v2220 = vpop.f32.mrf.mxu0
    %v2221 = vadd.f32 %v672, %v2220
    %2222 = vdwg.mxu0
    %v2223 = vxor.u32 %v2148, 2147483648
    %v2224 = vxor.u32 %v2150, 2147483648
    %v2225 = vxor.u32 %v2219, 2147483648
    %v2226 = vmul.f32 %v2223, 1.442695
    %v2227 = vpow.pop %v2226
    %v2228 = vmul.f32 %v2224, 1.442695
    %v2229 = vpow.pop %v2228
    %v2230 = vmul.f32 %v2225, 1.442695
    %v2231 = vpow.pop %v2230
    %v2232 = vadd.f32 %v2227, 1.0
    %v2233 = vadd.f32 %v2229, 1.0
    %v2234 = vadd.f32 %v2231, 1.0
    %v2235 = vrcp.pop %v2232
    %v2236 = vmul.f32 1.0, %v2235
    %v2237 = vrcp.pop %v2233
    %v2238 = vmul.f32 1.0, %v2237
    %v2239 = vrcp.pop %v2234
    %v2240 = vmul.f32 1.0, %v2239
    %v2241 = vtanh.pop %v2221
    %v2242 = vmul.f32 %v2238, %v1893
    %v2243 = vmul.f32 %v2236, %v2241
    %v2244 = vadd.f32 %v2242, %v2243
    %v2245 = vtanh.pop %v2244
    %v2246 = vmul.f32 %v2240, %v2245
    %s2247 = scalar_lea.vmem %s0, 48
    %v2248 = vld [vmem:[%s2247] sm:$0xff]
    %2250 = vset.pattern.permute.xlu0 0
    %2251 = vperm.xlu0 %2250, %v2248
    %v2252 = vpop.permute.xlu0 %2251
    %v2254 = vmul.f32 %v2252, %v123
    %v2255 = vmul.f32 %v2252, %v127
    %v2256 = vmul.f32 %v2252, %v131
    %v2257 = vmul.f32 %v2252, %v135
    %v2258 = vadd.f32 %v2254, %v148
    %v2259 = vadd.f32 %v2255, %v152
    %v2260 = vadd.f32 %v2256, %v156
    %v2261 = vadd.f32 %v2257, %v160
    %2262 = vmatprep.subr.mxu0 %v101
    %2263 = vmatpush1.msra.mxu0 %v100
    %2264 = vmatprep.subr.mxu0 %v97
    %2265 = vmatpush1.msra.mxu0 %v96
    %2266 = vmatprep.subr.mxu0 %v93
    %2267 = vmatpush1.msra.mxu0 %v92
    %2268 = vmatprep.subr.mxu0 %v89
    %2269 = vmatpush1.msra.mxu0 %v88
    %2270 = vmatprep.subr.mxu0 %v85
    %2271 = vmatpush1.msra.mxu0 %v84
    %2272 = vmatprep.subr.mxu0 %v81
    %2273 = vmatpush1.msra.mxu0 %v80
    %2274 = vmatprep.subr.mxu0 %v77
    %2275 = vmatpush1.msra.mxu0 %v76
    %2276 = vmatprep.subr.mxu0 %v73
    %2277 = vmatpush1.msra.mxu0 %v72
    %2278 = vmatprep.subr.mxu0 %v69
    %2279 = vmatpush1.msra.mxu0 %v68
    %2280 = vmatprep.subr.mxu0 %v65
    %2281 = vmatpush1.msra.mxu0 %v64
    %2282 = vmatprep.subr.mxu0 %v61
    %2283 = vmatpush1.msra.mxu0 %v60
    %2284 = vmatprep.subr.mxu0 %v57
    %2285 = vmatpush1.msra.mxu0 %v56
    %2286 = vmatprep.subr.mxu0 %v53
    %2287 = vmatpush1.msra.mxu0 %v52
    %2288 = vmatprep.subr.mxu0 %v49
    %2289 = vmatpush1.msra.mxu0 %v48
    %2290 = vmatprep.subr.mxu0 %v45
    %2291 = vmatpush1.msra.mxu0 %v44
    %2292 = vmatprep.subr.mxu0 %v41
    %2293 = vmatpush1.msra.mxu0 %v40
    %2294 = vmatprep.subr.mxu0 0.0
    %2295 = vmatpush2.msra.mxu0 0.0
    %2296 = vmatprep.subr.mxu0 0.0
    %2297 = vmatpush2.msra.mxu0 0.0
    %2298 = vmatprep.subr.mxu0 0.0
    %2299 = vmatpush2.msra.mxu0 0.0
    %2300 = vmatprep.subr.mxu0 0.0
    %2301 = vmatpush2.msra.mxu0 0.0
    %2302 = vmatprep.subr.mxu0 0.0
    %2303 = vmatpush2.msra.mxu0 0.0
    %2304 = vmatprep.subr.mxu0 0.0
    %2305 = vmatpush2.msra.mxu0 0.0
    %2306 = vmatprep.subr.mxu0 0.0
    %2307 = vmatpush2.msra.mxu0 0.0
    %2308 = vmatprep.subr.mxu0 0.0
    %2309 = vmatpush2.msra.mxu0 0.0
    %2310 = vmatprep.subr.mxu0 0.0
    %2311 = vmatpush2.msra.mxu0 0.0
    %2312 = vmatprep.subr.mxu0 0.0
    %2313 = vmatpush2.msra.mxu0 0.0
    %2314 = vmatprep.subr.mxu0 0.0
    %2315 = vmatpush2.msra.mxu0 0.0
    %2316 = vmatprep.subr.mxu0 0.0
    %2317 = vmatpush2.msra.mxu0 0.0
    %2318 = vmatprep.subr.mxu0 0.0
    %2319 = vmatpush2.msra.mxu0 0.0
    %2320 = vmatprep.subr.mxu0 0.0
    %2321 = vmatpush2.msra.mxu0 0.0
    %2322 = vmatprep.subr.mxu0 0.0
    %2323 = vmatpush2.msra.mxu0 0.0
    %2324 = vmatprep.subr.mxu0 0.0
    %2325 = vmatpush2.msra.mxu0 0.0
    %2326 = vmatprep.mubr.f32.mxu0 0.0
    %2327 = vmatmul.mubr.f32.gmra.mxu0 %v2080
    %v2328 = vpop.f32.mrf.mxu0
    %v2329 = vadd.f32 0.0, %v2328
    %v2330 = vpop.f32.mrf.mxu0
    %v2331 = vadd.f32 0.0, %v2330
    %2332 = vdwg.mxu0
    %2333 = vmatprep.subr.mxu0 %v103
    %2334 = vmatpush1.msra.mxu0 %v102
    %2335 = vmatprep.subr.mxu0 %v99
    %2336 = vmatpush1.msra.mxu0 %v98
    %2337 = vmatprep.subr.mxu0 %v95
    %2338 = vmatpush1.msra.mxu0 %v94
    %2339 = vmatprep.subr.mxu0 %v91
    %2340 = vmatpush1.msra.mxu0 %v90
    %2341 = vmatprep.subr.mxu0 %v87
    %2342 = vmatpush1.msra.mxu0 %v86
    %2343 = vmatprep.subr.mxu0 %v83
    %2344 = vmatpush1.msra.mxu0 %v82
    %2345 = vmatprep.subr.mxu0 %v79
    %2346 = vmatpush1.msra.mxu0 %v78
    %2347 = vmatprep.subr.mxu0 %v75
    %2348 = vmatpush1.msra.mxu0 %v74
    %2349 = vmatprep.subr.mxu0 %v71
    %2350 = vmatpush1.msra.mxu0 %v70
    %2351 = vmatprep.subr.mxu0 %v67
    %2352 = vmatpush1.msra.mxu0 %v66
    %2353 = vmatprep.subr.mxu0 %v63
    %2354 = vmatpush1.msra.mxu0 %v62
    %2355 = vmatprep.subr.mxu0 %v59
    %2356 = vmatpush1.msra.mxu0 %v58
    %2357 = vmatprep.subr.mxu0 %v55
    %2358 = vmatpush1.msra.mxu0 %v54
    %2359 = vmatprep.subr.mxu0 %v51
    %2360 = vmatpush1.msra.mxu0 %v50
    %2361 = vmatprep.subr.mxu0 %v47
    %2362 = vmatpush1.msra.mxu0 %v46
    %2363 = vmatprep.subr.mxu0 %v43
    %2364 = vmatpush1.msra.mxu0 %v42
    %2365 = vmatprep.subr.mxu0 0.0
    %2366 = vmatpush2.msra.mxu0 0.0
    %2367 = vmatprep.subr.mxu0 0.0
    %2368 = vmatpush2.msra.mxu0 0.0
    %2369 = vmatprep.subr.mxu0 0.0
    %2370 = vmatpush2.msra.mxu0 0.0
    %2371 = vmatprep.subr.mxu0 0.0
    %2372 = vmatpush2.msra.mxu0 0.0
    %2373 = vmatprep.subr.mxu0 0.0
    %2374 = vmatpush2.msra.mxu0 0.0
    %2375 = vmatprep.subr.mxu0 0.0
    %2376 = vmatpush2.msra.mxu0 0.0
    %2377 = vmatprep.subr.mxu0 0.0
    %2378 = vmatpush2.msra.mxu0 0.0
    %2379 = vmatprep.subr.mxu0 0.0
    %2380 = vmatpush2.msra.mxu0 0.0
    %2381 = vmatprep.subr.mxu0 0.0
    %2382 = vmatpush2.msra.mxu0 0.0
    %2383 = vmatprep.subr.mxu0 0.0
    %2384 = vmatpush2.msra.mxu0 0.0
    %2385 = vmatprep.subr.mxu0 0.0
    %2386 = vmatpush2.msra.mxu0 0.0
    %2387 = vmatprep.subr.mxu0 0.0
    %2388 = vmatpush2.msra.mxu0 0.0
    %2389 = vmatprep.subr.mxu0 0.0
    %2390 = vmatpush2.msra.mxu0 0.0
    %2391 = vmatprep.subr.mxu0 0.0
    %2392 = vmatpush2.msra.mxu0 0.0
    %2393 = vmatprep.subr.mxu0 0.0
    %2394 = vmatpush2.msra.mxu0 0.0
    %2395 = vmatprep.subr.mxu0 0.0
    %2396 = vmatpush2.msra.mxu0 0.0
    %2397 = vmatprep.mubr.f32.mxu0 0.0
    %2398 = vmatmul.mubr.f32.gmra.mxu0 %v2080
    %v2399 = vpop.f32.mrf.mxu0
    %v2400 = vadd.f32 0.0, %v2399
    %v2401 = vpop.f32.mrf.mxu0
    %v2402 = vadd.f32 0.0, %v2401
    %2403 = vdwg.mxu0
    %v2404 = vadd.f32 %v2258, %v2329
    %v2405 = vadd.f32 %v2259, %v2331
    %v2406 = vadd.f32 %v2260, %v2400
    %v2407 = vadd.f32 %v2261, %v2402
    %v2408 = vxor.u32 %v2404, 2147483648
    %v2409 = vxor.u32 %v2405, 2147483648
    %v2410 = vxor.u32 %v2406, 2147483648
    %v2411 = vmul.f32 %v2408, 1.442695
    %v2412 = vpow.pop %v2411
    %v2413 = vmul.f32 %v2409, 1.442695
    %v2414 = vpow.pop %v2413
    %v2415 = vmul.f32 %v2410, 1.442695
    %v2416 = vpow.pop %v2415
    %v2417 = vadd.f32 %v2412, 1.0
    %v2418 = vadd.f32 %v2414, 1.0
    %v2419 = vadd.f32 %v2416, 1.0
    %v2420 = vrcp.pop %v2417
    %v2421 = vmul.f32 1.0, %v2420
    %v2422 = vrcp.pop %v2418
    %v2423 = vmul.f32 1.0, %v2422
    %v2424 = vrcp.pop %v2419
    %v2425 = vmul.f32 1.0, %v2424
    %v2426 = vtanh.pop %v2407
    %v2427 = vmul.f32 %v2423, %v2078
    %v2428 = vmul.f32 %v2421, %v2426
    %v2429 = vadd.f32 %v2427, %v2428
    %v2430 = vtanh.pop %v2429
    %v2431 = vmul.f32 %v2425, %v2430
    %2432 = vmatprep.subr.mxu0 %v589
    %2433 = vmatpush1.msra.mxu0 %v588
    %2434 = vmatprep.subr.mxu0 %v585
    %2435 = vmatpush1.msra.mxu0 %v584
    %2436 = vmatprep.subr.mxu0 %v581
    %2437 = vmatpush1.msra.mxu0 %v580
    %2438 = vmatprep.subr.mxu0 %v577
    %2439 = vmatpush1.msra.mxu0 %v576
    %2440 = vmatprep.subr.mxu0 %v573
    %2441 = vmatpush1.msra.mxu0 %v572
    %2442 = vmatprep.subr.mxu0 %v569
    %2443 = vmatpush1.msra.mxu0 %v568
    %2444 = vmatprep.subr.mxu0 %v565
    %2445 = vmatpush1.msra.mxu0 %v564
    %2446 = vmatprep.subr.mxu0 %v561
    %2447 = vmatpush1.msra.mxu0 %v560
    %2448 = vmatprep.subr.mxu0 %v557
    %2449 = vmatpush1.msra.mxu0 %v556
    %2450 = vmatprep.subr.mxu0 %v553
    %2451 = vmatpush1.msra.mxu0 %v552
    %2452 = vmatprep.subr.mxu0 %v549
    %2453 = vmatpush1.msra.mxu0 %v548
    %2454 = vmatprep.subr.mxu0 %v545
    %2455 = vmatpush1.msra.mxu0 %v544
    %2456 = vmatprep.subr.mxu0 %v541
    %2457 = vmatpush1.msra.mxu0 %v540
    %2458 = vmatprep.subr.mxu0 %v537
    %2459 = vmatpush1.msra.mxu0 %v536
    %2460 = vmatprep.subr.mxu0 %v533
    %2461 = vmatpush1.msra.mxu0 %v532
    %2462 = vmatprep.subr.mxu0 %v529
    %2463 = vmatpush1.msra.mxu0 %v528
    %2464 = vmatprep.subr.mxu0 %v653
    %2465 = vmatpush2.msra.mxu0 %v652
    %2466 = vmatprep.subr.mxu0 %v649
    %2467 = vmatpush2.msra.mxu0 %v648
    %2468 = vmatprep.subr.mxu0 %v645
    %2469 = vmatpush2.msra.mxu0 %v644
    %2470 = vmatprep.subr.mxu0 %v641
    %2471 = vmatpush2.msra.mxu0 %v640
    %2472 = vmatprep.subr.mxu0 %v637
    %2473 = vmatpush2.msra.mxu0 %v636
    %2474 = vmatprep.subr.mxu0 %v633
    %2475 = vmatpush2.msra.mxu0 %v632
    %2476 = vmatprep.subr.mxu0 %v629
    %2477 = vmatpush2.msra.mxu0 %v628
    %2478 = vmatprep.subr.mxu0 %v625
    %2479 = vmatpush2.msra.mxu0 %v624
    %2480 = vmatprep.subr.mxu0 %v621
    %2481 = vmatpush2.msra.mxu0 %v620
    %2482 = vmatprep.subr.mxu0 %v617
    %2483 = vmatpush2.msra.mxu0 %v616
    %2484 = vmatprep.subr.mxu0 %v613
    %2485 = vmatpush2.msra.mxu0 %v612
    %2486 = vmatprep.subr.mxu0 %v609
    %2487 = vmatpush2.msra.mxu0 %v608
    %2488 = vmatprep.subr.mxu0 %v605
    %2489 = vmatpush2.msra.mxu0 %v604
    %2490 = vmatprep.subr.mxu0 %v601
    %2491 = vmatpush2.msra.mxu0 %v600
    %2492 = vmatprep.subr.mxu0 %v597
    %2493 = vmatpush2.msra.mxu0 %v596
    %2494 = vmatprep.subr.mxu0 %v593
    %2495 = vmatpush2.msra.mxu0 %v592
    %2496 = vmatprep.mubr.f32.mxu0 %v2246
    %2497 = vmatmul.mubr.f32.gmra.mxu0 %v2080
    %v2498 = vpop.f32.mrf.mxu0
    %v2499 = vadd.f32 %v660, %v2498
    %v2500 = vpop.f32.mrf.mxu0
    %v2501 = vadd.f32 %v664, %v2500
    %2502 = vdwg.mxu0
    %2503 = vmatprep.subr.mxu0 %v591
    %2504 = vmatpush1.msra.mxu0 %v590
    %2505 = vmatprep.subr.mxu0 %v587
    %2506 = vmatpush1.msra.mxu0 %v586
    %2507 = vmatprep.subr.mxu0 %v583
    %2508 = vmatpush1.msra.mxu0 %v582
    %2509 = vmatprep.subr.mxu0 %v579
    %2510 = vmatpush1.msra.mxu0 %v578
    %2511 = vmatprep.subr.mxu0 %v575
    %2512 = vmatpush1.msra.mxu0 %v574
    %2513 = vmatprep.subr.mxu0 %v571
    %2514 = vmatpush1.msra.mxu0 %v570
    %2515 = vmatprep.subr.mxu0 %v567
    %2516 = vmatpush1.msra.mxu0 %v566
    %2517 = vmatprep.subr.mxu0 %v563
    %2518 = vmatpush1.msra.mxu0 %v562
    %2519 = vmatprep.subr.mxu0 %v559
    %2520 = vmatpush1.msra.mxu0 %v558
    %2521 = vmatprep.subr.mxu0 %v555
    %2522 = vmatpush1.msra.mxu0 %v554
    %2523 = vmatprep.subr.mxu0 %v551
    %2524 = vmatpush1.msra.mxu0 %v550
    %2525 = vmatprep.subr.mxu0 %v547
    %2526 = vmatpush1.msra.mxu0 %v546
    %2527 = vmatprep.subr.mxu0 %v543
    %2528 = vmatpush1.msra.mxu0 %v542
    %2529 = vmatprep.subr.mxu0 %v539
    %2530 = vmatpush1.msra.mxu0 %v538
    %2531 = vmatprep.subr.mxu0 %v535
    %2532 = vmatpush1.msra.mxu0 %v534
    %2533 = vmatprep.subr.mxu0 %v531
    %2534 = vmatpush1.msra.mxu0 %v530
    %2535 = vmatprep.subr.mxu0 %v655
    %2536 = vmatpush2.msra.mxu0 %v654
    %2537 = vmatprep.subr.mxu0 %v651
    %2538 = vmatpush2.msra.mxu0 %v650
    %2539 = vmatprep.subr.mxu0 %v647
    %2540 = vmatpush2.msra.mxu0 %v646
    %2541 = vmatprep.subr.mxu0 %v643
    %2542 = vmatpush2.msra.mxu0 %v642
    %2543 = vmatprep.subr.mxu0 %v639
    %2544 = vmatpush2.msra.mxu0 %v638
    %2545 = vmatprep.subr.mxu0 %v635
    %2546 = vmatpush2.msra.mxu0 %v634
    %2547 = vmatprep.subr.mxu0 %v631
    %2548 = vmatpush2.msra.mxu0 %v630
    %2549 = vmatprep.subr.mxu0 %v627
    %2550 = vmatpush2.msra.mxu0 %v626
    %2551 = vmatprep.subr.mxu0 %v623
    %2552 = vmatpush2.msra.mxu0 %v622
    %2553 = vmatprep.subr.mxu0 %v619
    %2554 = vmatpush2.msra.mxu0 %v618
    %2555 = vmatprep.subr.mxu0 %v615
    %2556 = vmatpush2.msra.mxu0 %v614
    %2557 = vmatprep.subr.mxu0 %v611
    %2558 = vmatpush2.msra.mxu0 %v610
    %2559 = vmatprep.subr.mxu0 %v607
    %2560 = vmatpush2.msra.mxu0 %v606
    %2561 = vmatprep.subr.mxu0 %v603
    %2562 = vmatpush2.msra.mxu0 %v602
    %2563 = vmatprep.subr.mxu0 %v599
    %2564 = vmatpush2.msra.mxu0 %v598
    %2565 = vmatprep.subr.mxu0 %v595
    %2566 = vmatpush2.msra.mxu0 %v594
    %2567 = vmatprep.mubr.f32.mxu0 %v2246
    %2568 = vmatmul.mubr.f32.gmra.mxu0 %v2080
    %v2569 = vpop.f32.mrf.mxu0
    %v2570 = vadd.f32 %v668, %v2569
    %v2571 = vpop.f32.mrf.mxu0
    %v2572 = vadd.f32 %v672, %v2571
    %2573 = vdwg.mxu0
    %v2574 = vxor.u32 %v2499, 2147483648
    %v2575 = vxor.u32 %v2501, 2147483648
    %v2576 = vxor.u32 %v2570, 2147483648
    %v2577 = vmul.f32 %v2574, 1.442695
    %v2578 = vpow.pop %v2577
    %v2579 = vmul.f32 %v2575, 1.442695
    %v2580 = vpow.pop %v2579
    %v2581 = vmul.f32 %v2576, 1.442695
    %v2582 = vpow.pop %v2581
    %v2583 = vadd.f32 %v2578, 1.0
    %v2584 = vadd.f32 %v2580, 1.0
    %v2585 = vadd.f32 %v2582, 1.0
    %v2586 = vrcp.pop %v2583
    %v2587 = vmul.f32 1.0, %v2586
    %v2588 = vrcp.pop %v2584
    %v2589 = vmul.f32 1.0, %v2588
    %v2590 = vrcp.pop %v2585
    %v2591 = vmul.f32 1.0, %v2590
    %v2592 = vtanh.pop %v2572
    %v2593 = vmul.f32 %v2589, %v2244
    %v2594 = vmul.f32 %v2587, %v2592
    %v2595 = vadd.f32 %v2593, %v2594
    %v2596 = vtanh.pop %v2595
    %v2597 = vmul.f32 %v2591, %v2596
    %s2598 = scalar_lea.vmem %s0, 56
    %v2599 = vld [vmem:[%s2598] sm:$0xff]
    %2601 = vset.pattern.permute.xlu0 0
    %2602 = vperm.xlu0 %2601, %v2599
    %v2603 = vpop.permute.xlu0 %2602
    %v2605 = vmul.f32 %v2603, %v123
    %v2606 = vmul.f32 %v2603, %v127
    %v2607 = vmul.f32 %v2603, %v131
    %v2608 = vmul.f32 %v2603, %v135
    %v2609 = vadd.f32 %v2605, %v148
    %v2610 = vadd.f32 %v2606, %v152
    %v2611 = vadd.f32 %v2607, %v156
    %v2612 = vadd.f32 %v2608, %v160
    %2613 = vmatprep.subr.mxu0 %v101
    %2614 = vmatpush1.msra.mxu0 %v100
    %2615 = vmatprep.subr.mxu0 %v97
    %2616 = vmatpush1.msra.mxu0 %v96
    %2617 = vmatprep.subr.mxu0 %v93
    %2618 = vmatpush1.msra.mxu0 %v92
    %2619 = vmatprep.subr.mxu0 %v89
    %2620 = vmatpush1.msra.mxu0 %v88
    %2621 = vmatprep.subr.mxu0 %v85
    %2622 = vmatpush1.msra.mxu0 %v84
    %2623 = vmatprep.subr.mxu0 %v81
    %2624 = vmatpush1.msra.mxu0 %v80
    %2625 = vmatprep.subr.mxu0 %v77
    %2626 = vmatpush1.msra.mxu0 %v76
    %2627 = vmatprep.subr.mxu0 %v73
    %2628 = vmatpush1.msra.mxu0 %v72
    %2629 = vmatprep.subr.mxu0 %v69
    %2630 = vmatpush1.msra.mxu0 %v68
    %2631 = vmatprep.subr.mxu0 %v65
    %2632 = vmatpush1.msra.mxu0 %v64
    %2633 = vmatprep.subr.mxu0 %v61
    %2634 = vmatpush1.msra.mxu0 %v60
    %2635 = vmatprep.subr.mxu0 %v57
    %2636 = vmatpush1.msra.mxu0 %v56
    %2637 = vmatprep.subr.mxu0 %v53
    %2638 = vmatpush1.msra.mxu0 %v52
    %2639 = vmatprep.subr.mxu0 %v49
    %2640 = vmatpush1.msra.mxu0 %v48
    %2641 = vmatprep.subr.mxu0 %v45
    %2642 = vmatpush1.msra.mxu0 %v44
    %2643 = vmatprep.subr.mxu0 %v41
    %2644 = vmatpush1.msra.mxu0 %v40
    %2645 = vmatprep.subr.mxu0 0.0
    %2646 = vmatpush2.msra.mxu0 0.0
    %2647 = vmatprep.subr.mxu0 0.0
    %2648 = vmatpush2.msra.mxu0 0.0
    %2649 = vmatprep.subr.mxu0 0.0
    %2650 = vmatpush2.msra.mxu0 0.0
    %2651 = vmatprep.subr.mxu0 0.0
    %2652 = vmatpush2.msra.mxu0 0.0
    %2653 = vmatprep.subr.mxu0 0.0
    %2654 = vmatpush2.msra.mxu0 0.0
    %2655 = vmatprep.subr.mxu0 0.0
    %2656 = vmatpush2.msra.mxu0 0.0
    %2657 = vmatprep.subr.mxu0 0.0
    %2658 = vmatpush2.msra.mxu0 0.0
    %2659 = vmatprep.subr.mxu0 0.0
    %2660 = vmatpush2.msra.mxu0 0.0
    %2661 = vmatprep.subr.mxu0 0.0
    %2662 = vmatpush2.msra.mxu0 0.0
    %2663 = vmatprep.subr.mxu0 0.0
    %2664 = vmatpush2.msra.mxu0 0.0
    %2665 = vmatprep.subr.mxu0 0.0
    %2666 = vmatpush2.msra.mxu0 0.0
    %2667 = vmatprep.subr.mxu0 0.0
    %2668 = vmatpush2.msra.mxu0 0.0
    %2669 = vmatprep.subr.mxu0 0.0
    %2670 = vmatpush2.msra.mxu0 0.0
    %2671 = vmatprep.subr.mxu0 0.0
    %2672 = vmatpush2.msra.mxu0 0.0
    %2673 = vmatprep.subr.mxu0 0.0
    %2674 = vmatpush2.msra.mxu0 0.0
    %2675 = vmatprep.subr.mxu0 0.0
    %2676 = vmatpush2.msra.mxu0 0.0
    %2677 = vmatprep.mubr.f32.mxu0 0.0
    %2678 = vmatmul.mubr.f32.gmra.mxu0 %v2431
    %v2679 = vpop.f32.mrf.mxu0
    %v2680 = vadd.f32 0.0, %v2679
    %v2681 = vpop.f32.mrf.mxu0
    %v2682 = vadd.f32 0.0, %v2681
    %2683 = vdwg.mxu0
    %2684 = vmatprep.subr.mxu0 %v103
    %2685 = vmatpush1.msra.mxu0 %v102
    %2686 = vmatprep.subr.mxu0 %v99
    %2687 = vmatpush1.msra.mxu0 %v98
    %2688 = vmatprep.subr.mxu0 %v95
    %2689 = vmatpush1.msra.mxu0 %v94
    %2690 = vmatprep.subr.mxu0 %v91
    %2691 = vmatpush1.msra.mxu0 %v90
    %2692 = vmatprep.subr.mxu0 %v87
    %2693 = vmatpush1.msra.mxu0 %v86
    %2694 = vmatprep.subr.mxu0 %v83
    %2695 = vmatpush1.msra.mxu0 %v82
    %2696 = vmatprep.subr.mxu0 %v79
    %2697 = vmatpush1.msra.mxu0 %v78
    %2698 = vmatprep.subr.mxu0 %v75
    %2699 = vmatpush1.msra.mxu0 %v74
    %2700 = vmatprep.subr.mxu0 %v71
    %2701 = vmatpush1.msra.mxu0 %v70
    %2702 = vmatprep.subr.mxu0 %v67
    %2703 = vmatpush1.msra.mxu0 %v66
    %2704 = vmatprep.subr.mxu0 %v63
    %2705 = vmatpush1.msra.mxu0 %v62
    %2706 = vmatprep.subr.mxu0 %v59
    %2707 = vmatpush1.msra.mxu0 %v58
    %2708 = vmatprep.subr.mxu0 %v55
    %2709 = vmatpush1.msra.mxu0 %v54
    %2710 = vmatprep.subr.mxu0 %v51
    %2711 = vmatpush1.msra.mxu0 %v50
    %2712 = vmatprep.subr.mxu0 %v47
    %2713 = vmatpush1.msra.mxu0 %v46
    %2714 = vmatprep.subr.mxu0 %v43
    %2715 = vmatpush1.msra.mxu0 %v42
    %2716 = vmatprep.subr.mxu0 0.0
    %2717 = vmatpush2.msra.mxu0 0.0
    %2718 = vmatprep.subr.mxu0 0.0
    %2719 = vmatpush2.msra.mxu0 0.0
    %2720 = vmatprep.subr.mxu0 0.0
    %2721 = vmatpush2.msra.mxu0 0.0
    %2722 = vmatprep.subr.mxu0 0.0
    %2723 = vmatpush2.msra.mxu0 0.0
    %2724 = vmatprep.subr.mxu0 0.0
    %2725 = vmatpush2.msra.mxu0 0.0
    %2726 = vmatprep.subr.mxu0 0.0
    %2727 = vmatpush2.msra.mxu0 0.0
    %2728 = vmatprep.subr.mxu0 0.0
    %2729 = vmatpush2.msra.mxu0 0.0
    %2730 = vmatprep.subr.mxu0 0.0
    %2731 = vmatpush2.msra.mxu0 0.0
    %2732 = vmatprep.subr.mxu0 0.0
    %2733 = vmatpush2.msra.mxu0 0.0
    %2734 = vmatprep.subr.mxu0 0.0
    %2735 = vmatpush2.msra.mxu0 0.0
    %2736 = vmatprep.subr.mxu0 0.0
    %2737 = vmatpush2.msra.mxu0 0.0
    %2738 = vmatprep.subr.mxu0 0.0
    %2739 = vmatpush2.msra.mxu0 0.0
    %2740 = vmatprep.subr.mxu0 0.0
    %2741 = vmatpush2.msra.mxu0 0.0
    %2742 = vmatprep.subr.mxu0 0.0
    %2743 = vmatpush2.msra.mxu0 0.0
    %2744 = vmatprep.subr.mxu0 0.0
    %2745 = vmatpush2.msra.mxu0 0.0
    %2746 = vmatprep.subr.mxu0 0.0
    %2747 = vmatpush2.msra.mxu0 0.0
    %2748 = vmatprep.mubr.f32.mxu0 0.0
    %2749 = vmatmul.mubr.f32.gmra.mxu0 %v2431
    %v2750 = vpop.f32.mrf.mxu0
    %v2751 = vadd.f32 0.0, %v2750
    %v2752 = vpop.f32.mrf.mxu0
    %v2753 = vadd.f32 0.0, %v2752
    %2754 = vdwg.mxu0
    %v2755 = vadd.f32 %v2609, %v2680
    %v2756 = vadd.f32 %v2610, %v2682
    %v2757 = vadd.f32 %v2611, %v2751
    %v2758 = vadd.f32 %v2612, %v2753
    %v2759 = vxor.u32 %v2755, 2147483648
    %v2760 = vxor.u32 %v2756, 2147483648
    %v2761 = vxor.u32 %v2757, 2147483648
    %v2762 = vmul.f32 %v2759, 1.442695
    %v2763 = vpow.pop %v2762
    %v2764 = vmul.f32 %v2760, 1.442695
    %v2765 = vpow.pop %v2764
    %v2766 = vmul.f32 %v2761, 1.442695
    %v2767 = vpow.pop %v2766
    %v2768 = vadd.f32 %v2763, 1.0
    %v2769 = vadd.f32 %v2765, 1.0
    %v2770 = vadd.f32 %v2767, 1.0
    %v2771 = vrcp.pop %v2768
    %v2772 = vmul.f32 1.0, %v2771
    %v2773 = vrcp.pop %v2769
    %v2774 = vmul.f32 1.0, %v2773
    %v2775 = vrcp.pop %v2770
    %v2776 = vmul.f32 1.0, %v2775
    %v2777 = vtanh.pop %v2758
    %v2778 = vmul.f32 %v2774, %v2429
    %v2779 = vmul.f32 %v2772, %v2777
    %v2780 = vadd.f32 %v2778, %v2779
    %v2781 = vtanh.pop %v2780
    %v2782 = vmul.f32 %v2776, %v2781
    %2783 = vmatprep.subr.mxu0 %v589
    %2784 = vmatpush1.msra.mxu0 %v588
    %2785 = vmatprep.subr.mxu0 %v585
    %2786 = vmatpush1.msra.mxu0 %v584
    %2787 = vmatprep.subr.mxu0 %v581
    %2788 = vmatpush1.msra.mxu0 %v580
    %2789 = vmatprep.subr.mxu0 %v577
    %2790 = vmatpush1.msra.mxu0 %v576
    %2791 = vmatprep.subr.mxu0 %v573
    %2792 = vmatpush1.msra.mxu0 %v572
    %2793 = vmatprep.subr.mxu0 %v569
    %2794 = vmatpush1.msra.mxu0 %v568
    %2795 = vmatprep.subr.mxu0 %v565
    %2796 = vmatpush1.msra.mxu0 %v564
    %2797 = vmatprep.subr.mxu0 %v561
    %2798 = vmatpush1.msra.mxu0 %v560
    %2799 = vmatprep.subr.mxu0 %v557
    %2800 = vmatpush1.msra.mxu0 %v556
    %2801 = vmatprep.subr.mxu0 %v553
    %2802 = vmatpush1.msra.mxu0 %v552
    %2803 = vmatprep.subr.mxu0 %v549
    %2804 = vmatpush1.msra.mxu0 %v548
    %2805 = vmatprep.subr.mxu0 %v545
    %2806 = vmatpush1.msra.mxu0 %v544
    %2807 = vmatprep.subr.mxu0 %v541
    %2808 = vmatpush1.msra.mxu0 %v540
    %2809 = vmatprep.subr.mxu0 %v537
    %2810 = vmatpush1.msra.mxu0 %v536
    %2811 = vmatprep.subr.mxu0 %v533
    %2812 = vmatpush1.msra.mxu0 %v532
    %2813 = vmatprep.subr.mxu0 %v529
    %2814 = vmatpush1.msra.mxu0 %v528
    %2815 = vmatprep.subr.mxu0 %v653
    %2816 = vmatpush2.msra.mxu0 %v652
    %2817 = vmatprep.subr.mxu0 %v649
    %2818 = vmatpush2.msra.mxu0 %v648
    %2819 = vmatprep.subr.mxu0 %v645
    %2820 = vmatpush2.msra.mxu0 %v644
    %2821 = vmatprep.subr.mxu0 %v641
    %2822 = vmatpush2.msra.mxu0 %v640
    %2823 = vmatprep.subr.mxu0 %v637
    %2824 = vmatpush2.msra.mxu0 %v636
    %2825 = vmatprep.subr.mxu0 %v633
    %2826 = vmatpush2.msra.mxu0 %v632
    %2827 = vmatprep.subr.mxu0 %v629
    %2828 = vmatpush2.msra.mxu0 %v628
    %2829 = vmatprep.subr.mxu0 %v625
    %2830 = vmatpush2.msra.mxu0 %v624
    %2831 = vmatprep.subr.mxu0 %v621
    %2832 = vmatpush2.msra.mxu0 %v620
    %2833 = vmatprep.subr.mxu0 %v617
    %2834 = vmatpush2.msra.mxu0 %v616
    %2835 = vmatprep.subr.mxu0 %v613
    %2836 = vmatpush2.msra.mxu0 %v612
    %2837 = vmatprep.subr.mxu0 %v609
    %2838 = vmatpush2.msra.mxu0 %v608
    %2839 = vmatprep.subr.mxu0 %v605
    %2840 = vmatpush2.msra.mxu0 %v604
    %2841 = vmatprep.subr.mxu0 %v601
    %2842 = vmatpush2.msra.mxu0 %v600
    %2843 = vmatprep.subr.mxu0 %v597
    %2844 = vmatpush2.msra.mxu0 %v596
    %2845 = vmatprep.subr.mxu0 %v593
    %2846 = vmatpush2.msra.mxu0 %v592
    %2847 = vmatprep.mubr.f32.mxu0 %v2597
    %2848 = vmatmul.mubr.f32.gmra.mxu0 %v2431
    %v2849 = vpop.f32.mrf.mxu0
    %v2850 = vadd.f32 %v660, %v2849
    %v2851 = vpop.f32.mrf.mxu0
    %v2852 = vadd.f32 %v664, %v2851
    %2853 = vdwg.mxu0
    %2854 = vmatprep.subr.mxu0 %v591
    %2855 = vmatpush1.msra.mxu0 %v590
    %2856 = vmatprep.subr.mxu0 %v587
    %2857 = vmatpush1.msra.mxu0 %v586
    %2858 = vmatprep.subr.mxu0 %v583
    %2859 = vmatpush1.msra.mxu0 %v582
    %2860 = vmatprep.subr.mxu0 %v579
    %2861 = vmatpush1.msra.mxu0 %v578
    %2862 = vmatprep.subr.mxu0 %v575
    %2863 = vmatpush1.msra.mxu0 %v574
    %2864 = vmatprep.subr.mxu0 %v571
    %2865 = vmatpush1.msra.mxu0 %v570
    %2866 = vmatprep.subr.mxu0 %v567
    %2867 = vmatpush1.msra.mxu0 %v566
    %2868 = vmatprep.subr.mxu0 %v563
    %2869 = vmatpush1.msra.mxu0 %v562
    %2870 = vmatprep.subr.mxu0 %v559
    %2871 = vmatpush1.msra.mxu0 %v558
    %2872 = vmatprep.subr.mxu0 %v555
    %2873 = vmatpush1.msra.mxu0 %v554
    %2874 = vmatprep.subr.mxu0 %v551
    %2875 = vmatpush1.msra.mxu0 %v550
    %2876 = vmatprep.subr.mxu0 %v547
    %2877 = vmatpush1.msra.mxu0 %v546
    %2878 = vmatprep.subr.mxu0 %v543
    %2879 = vmatpush1.msra.mxu0 %v542
    %2880 = vmatprep.subr.mxu0 %v539
    %2881 = vmatpush1.msra.mxu0 %v538
    %2882 = vmatprep.subr.mxu0 %v535
    %2883 = vmatpush1.msra.mxu0 %v534
    %2884 = vmatprep.subr.mxu0 %v531
    %2885 = vmatpush1.msra.mxu0 %v530
    %2886 = vmatprep.subr.mxu0 %v655
    %2887 = vmatpush2.msra.mxu0 %v654
    %2888 = vmatprep.subr.mxu0 %v651
    %2889 = vmatpush2.msra.mxu0 %v650
    %2890 = vmatprep.subr.mxu0 %v647
    %2891 = vmatpush2.msra.mxu0 %v646
    %2892 = vmatprep.subr.mxu0 %v643
    %2893 = vmatpush2.msra.mxu0 %v642
    %2894 = vmatprep.subr.mxu0 %v639
    %2895 = vmatpush2.msra.mxu0 %v638
    %2896 = vmatprep.subr.mxu0 %v635
    %2897 = vmatpush2.msra.mxu0 %v634
    %2898 = vmatprep.subr.mxu0 %v631
    %2899 = vmatpush2.msra.mxu0 %v630
    %2900 = vmatprep.subr.mxu0 %v627
    %2901 = vmatpush2.msra.mxu0 %v626
    %2902 = vmatprep.subr.mxu0 %v623
    %2903 = vmatpush2.msra.mxu0 %v622
    %2904 = vmatprep.subr.mxu0 %v619
    %2905 = vmatpush2.msra.mxu0 %v618
    %2906 = vmatprep.subr.mxu0 %v615
    %2907 = vmatpush2.msra.mxu0 %v614
    %2908 = vmatprep.subr.mxu0 %v611
    %2909 = vmatpush2.msra.mxu0 %v610
    %2910 = vmatprep.subr.mxu0 %v607
    %2911 = vmatpush2.msra.mxu0 %v606
    %2912 = vmatprep.subr.mxu0 %v603
    %2913 = vmatpush2.msra.mxu0 %v602
    %2914 = vmatprep.subr.mxu0 %v599
    %2915 = vmatpush2.msra.mxu0 %v598
    %2916 = vmatprep.subr.mxu0 %v595
    %2917 = vmatpush2.msra.mxu0 %v594
    %2918 = vmatprep.mubr.f32.mxu0 %v2597
    %2919 = vmatmul.mubr.f32.gmra.mxu0 %v2431
    %v2920 = vpop.f32.mrf.mxu0
    %v2921 = vadd.f32 %v668, %v2920
    %v2922 = vpop.f32.mrf.mxu0
    %v2923 = vadd.f32 %v672, %v2922
    %2924 = vdwg.mxu0
    %v2925 = vxor.u32 %v2850, 2147483648
    %v2926 = vxor.u32 %v2852, 2147483648
    %v2927 = vxor.u32 %v2921, 2147483648
    %v2928 = vmul.f32 %v2925, 1.442695
    %v2929 = vpow.pop %v2928
    %v2930 = vmul.f32 %v2926, 1.442695
    %v2931 = vpow.pop %v2930
    %v2932 = vmul.f32 %v2927, 1.442695
    %v2933 = vpow.pop %v2932
    %v2934 = vadd.f32 %v2929, 1.0
    %v2935 = vadd.f32 %v2931, 1.0
    %v2936 = vadd.f32 %v2933, 1.0
    %v2937 = vrcp.pop %v2934
    %v2938 = vmul.f32 1.0, %v2937
    %v2939 = vrcp.pop %v2935
    %v2940 = vmul.f32 1.0, %v2939
    %v2941 = vrcp.pop %v2936
    %v2942 = vmul.f32 1.0, %v2941
    %v2943 = vtanh.pop %v2923
    %v2944 = vmul.f32 %v2940, %v2595
    %v2945 = vmul.f32 %v2938, %v2943
    %v2946 = vadd.f32 %v2944, %v2945
    %v2947 = vtanh.pop %v2946
    %v2948 = vmul.f32 %v2942, %v2947
    %2949 = vmatprep.subr.mxu0 %v589
    %2950 = vmatpush1.msra.mxu0 %v588
    %2951 = vmatprep.subr.mxu0 %v585
    %2952 = vmatpush1.msra.mxu0 %v584
    %2953 = vmatprep.subr.mxu0 %v581
    %2954 = vmatpush1.msra.mxu0 %v580
    %2955 = vmatprep.subr.mxu0 %v577
    %2956 = vmatpush1.msra.mxu0 %v576
    %2957 = vmatprep.subr.mxu0 %v573
    %2958 = vmatpush1.msra.mxu0 %v572
    %2959 = vmatprep.subr.mxu0 %v569
    %2960 = vmatpush1.msra.mxu0 %v568
    %2961 = vmatprep.subr.mxu0 %v565
    %2962 = vmatpush1.msra.mxu0 %v564
    %2963 = vmatprep.subr.mxu0 %v561
    %2964 = vmatpush1.msra.mxu0 %v560
    %2965 = vmatprep.subr.mxu0 %v557
    %2966 = vmatpush1.msra.mxu0 %v556
    %2967 = vmatprep.subr.mxu0 %v553
    %2968 = vmatpush1.msra.mxu0 %v552
    %2969 = vmatprep.subr.mxu0 %v549
    %2970 = vmatpush1.msra.mxu0 %v548
    %2971 = vmatprep.subr.mxu0 %v545
    %2972 = vmatpush1.msra.mxu0 %v544
    %2973 = vmatprep.subr.mxu0 %v541
    %2974 = vmatpush1.msra.mxu0 %v540
    %2975 = vmatprep.subr.mxu0 %v537
    %2976 = vmatpush1.msra.mxu0 %v536
    %2977 = vmatprep.subr.mxu0 %v533
    %2978 = vmatpush1.msra.mxu0 %v532
    %2979 = vmatprep.subr.mxu0 %v529
    %2980 = vmatpush1.msra.mxu0 %v528
    %2981 = vmatprep.subr.mxu0 %v653
    %2982 = vmatpush2.msra.mxu0 %v652
    %2983 = vmatprep.subr.mxu0 %v649
    %2984 = vmatpush2.msra.mxu0 %v648
    %2985 = vmatprep.subr.mxu0 %v645
    %2986 = vmatpush2.msra.mxu0 %v644
    %2987 = vmatprep.subr.mxu0 %v641
    %2988 = vmatpush2.msra.mxu0 %v640
    %2989 = vmatprep.subr.mxu0 %v637
    %2990 = vmatpush2.msra.mxu0 %v636
    %2991 = vmatprep.subr.mxu0 %v633
    %2992 = vmatpush2.msra.mxu0 %v632
    %2993 = vmatprep.subr.mxu0 %v629
    %2994 = vmatpush2.msra.mxu0 %v628
    %2995 = vmatprep.subr.mxu0 %v625
    %2996 = vmatpush2.msra.mxu0 %v624
    %2997 = vmatprep.subr.mxu0 %v621
    %2998 = vmatpush2.msra.mxu0 %v620
    %2999 = vmatprep.subr.mxu0 %v617
    %3000 = vmatpush2.msra.mxu0 %v616
    %3001 = vmatprep.subr.mxu0 %v613
    %3002 = vmatpush2.msra.mxu0 %v612
    %3003 = vmatprep.subr.mxu0 %v609
    %3004 = vmatpush2.msra.mxu0 %v608
    %3005 = vmatprep.subr.mxu0 %v605
    %3006 = vmatpush2.msra.mxu0 %v604
    %3007 = vmatprep.subr.mxu0 %v601
    %3008 = vmatpush2.msra.mxu0 %v600
    %3009 = vmatprep.subr.mxu0 %v597
    %3010 = vmatpush2.msra.mxu0 %v596
    %3011 = vmatprep.subr.mxu0 %v593
    %3012 = vmatpush2.msra.mxu0 %v592
    %3013 = vmatprep.mubr.f32.mxu0 %v2948
    %3014 = vmatmul.mubr.f32.gmra.mxu0 %v2782
    %v3015 = vpop.f32.mrf.mxu0
    %v3016 = vadd.f32 %v660, %v3015
    %v3017 = vpop.f32.mrf.mxu0
    %v3018 = vadd.f32 %v664, %v3017
    %3019 = vdwg.mxu0
    %3020 = vmatprep.subr.mxu0 %v591
    %3021 = vmatpush1.msra.mxu0 %v590
    %3022 = vmatprep.subr.mxu0 %v587
    %3023 = vmatpush1.msra.mxu0 %v586
    %3024 = vmatprep.subr.mxu0 %v583
    %3025 = vmatpush1.msra.mxu0 %v582
    %3026 = vmatprep.subr.mxu0 %v579
    %3027 = vmatpush1.msra.mxu0 %v578
    %3028 = vmatprep.subr.mxu0 %v575
    %3029 = vmatpush1.msra.mxu0 %v574
    %3030 = vmatprep.subr.mxu0 %v571
    %3031 = vmatpush1.msra.mxu0 %v570
    %3032 = vmatprep.subr.mxu0 %v567
    %3033 = vmatpush1.msra.mxu0 %v566
    %3034 = vmatprep.subr.mxu0 %v563
    %3035 = vmatpush1.msra.mxu0 %v562
    %3036 = vmatprep.subr.mxu0 %v559
    %3037 = vmatpush1.msra.mxu0 %v558
    %3038 = vmatprep.subr.mxu0 %v555
    %3039 = vmatpush1.msra.mxu0 %v554
    %3040 = vmatprep.subr.mxu0 %v551
    %3041 = vmatpush1.msra.mxu0 %v550
    %3042 = vmatprep.subr.mxu0 %v547
    %3043 = vmatpush1.msra.mxu0 %v546
    %3044 = vmatprep.subr.mxu0 %v543
    %3045 = vmatpush1.msra.mxu0 %v542
    %3046 = vmatprep.subr.mxu0 %v539
    %3047 = vmatpush1.msra.mxu0 %v538
    %3048 = vmatprep.subr.mxu0 %v535
    %3049 = vmatpush1.msra.mxu0 %v534
    %3050 = vmatprep.subr.mxu0 %v531
    %3051 = vmatpush1.msra.mxu0 %v530
    %3052 = vmatprep.subr.mxu0 %v655
    %3053 = vmatpush2.msra.mxu0 %v654
    %3054 = vmatprep.subr.mxu0 %v651
    %3055 = vmatpush2.msra.mxu0 %v650
    %3056 = vmatprep.subr.mxu0 %v647
    %3057 = vmatpush2.msra.mxu0 %v646
    %3058 = vmatprep.subr.mxu0 %v643
    %3059 = vmatpush2.msra.mxu0 %v642
    %3060 = vmatprep.subr.mxu0 %v639
    %3061 = vmatpush2.msra.mxu0 %v638
    %3062 = vmatprep.subr.mxu0 %v635
    %3063 = vmatpush2.msra.mxu0 %v634
    %3064 = vmatprep.subr.mxu0 %v631
    %3065 = vmatpush2.msra.mxu0 %v630
    %3066 = vmatprep.subr.mxu0 %v627
    %3067 = vmatpush2.msra.mxu0 %v626
    %3068 = vmatprep.subr.mxu0 %v623
    %3069 = vmatpush2.msra.mxu0 %v622
    %3070 = vmatprep.subr.mxu0 %v619
    %3071 = vmatpush2.msra.mxu0 %v618
    %3072 = vmatprep.subr.mxu0 %v615
    %3073 = vmatpush2.msra.mxu0 %v614
    %3074 = vmatprep.subr.mxu0 %v611
    %3075 = vmatpush2.msra.mxu0 %v610
    %3076 = vmatprep.subr.mxu0 %v607
    %3077 = vmatpush2.msra.mxu0 %v606
    %3078 = vmatprep.subr.mxu0 %v603
    %3079 = vmatpush2.msra.mxu0 %v602
    %3080 = vmatprep.subr.mxu0 %v599
    %3081 = vmatpush2.msra.mxu0 %v598
    %3082 = vmatprep.subr.mxu0 %v595
    %3083 = vmatpush2.msra.mxu0 %v594
    %3084 = vmatprep.mubr.f32.mxu0 %v2948
    %3085 = vmatmul.mubr.f32.gmra.mxu0 %v2782
    %v3086 = vpop.f32.mrf.mxu0
    %v3087 = vadd.f32 %v668, %v3086
    %v3088 = vpop.f32.mrf.mxu0
    %v3089 = vadd.f32 %v672, %v3088
    %3090 = vdwg.mxu0
    %v3091 = vxor.u32 %v3016, 2147483648
    %v3092 = vxor.u32 %v3018, 2147483648
    %v3093 = vxor.u32 %v3087, 2147483648
    %v3094 = vmul.f32 %v3091, 1.442695
    %v3095 = vpow.pop %v3094
    %v3096 = vmul.f32 %v3092, 1.442695
    %v3097 = vpow.pop %v3096
    %v3098 = vmul.f32 %v3093, 1.442695
    %v3099 = vpow.pop %v3098
    %v3100 = vadd.f32 %v3095, 1.0
    %v3101 = vadd.f32 %v3097, 1.0
    %v3102 = vadd.f32 %v3099, 1.0
    %v3103 = vrcp.pop %v3100
    %v3104 = vmul.f32 1.0, %v3103
    %v3105 = vrcp.pop %v3101
    %v3106 = vmul.f32 1.0, %v3105
    %v3107 = vrcp.pop %v3102
    %v3108 = vmul.f32 1.0, %v3107
    %v3109 = vtanh.pop %v3089
    %v3110 = vmul.f32 %v3106, %v2946
    %v3111 = vmul.f32 %v3104, %v3109
    %v3112 = vadd.f32 %v3110, %v3111
    %v3113 = vtanh.pop %v3112
    %v3114 = vmul.f32 %v3108, %v3113
    %v3115 = vlaneseq
    %v3116 = vshrl.u32 %v3115, 7
    %vm3117 = vcmp.lt.s32.totalorder %v3116, 2
    %v3118 = vsel %vm3117, 1, 0
    %v3119 = vcvt.s32.f32 %v3118
    %v3120 = vmul.f32 %v3114, %v3119
    %v3121 = vrot.slane %v3120, 4
    %v3122 = vadd.f32 %v3120, %v3121
    %v3123 = vrot.slane %v3122, 2
    %v3124 = vadd.f32 %v3122, %v3123
    %v3125 = vrot.slane %v3124, 1
    %v3126 = vadd.f32 %v3124, %v3125
    %v3127 = vmul.f32 %v3126, 0.5
    %v3128 = vsub.f32 %v3114, %v3127
    %v3129 = vmul.f32 %v3128, %v3119
    %v3130 = vmul.f32 %v3129, %v3129
    %v3131 = vrot.slane %v3130, 4
    %v3132 = vadd.f32 %v3130, %v3131
    %v3133 = vrot.slane %v3132, 2
    %v3134 = vadd.f32 %v3132, %v3133
    %v3135 = vrot.slane %v3134, 1
    %v3136 = vadd.f32 %v3134, %v3135
    %v3137 = vmul.f32 %v3136, 0.5
    %v3138 = vadd.f32 %v3137, 1e-05
    %v3139 = vrsqrt.pop %v3138
    %v3140 = vmul.f32 %v3128, %v3139
    %v3141 = vmul.f32 %v109, %v3140
    %v3142 = vadd.f32 %v3141, %v110
    %v3143 = vmax.f32 %v3142, 0.0
    %v3144 = vmul.f32 %v3143, %v111
    %3145 = vadd.xlane.f32.xlu0 %v3144
    %v3146 = vpop.xlane.xlu0 %3145
    %v3147 = vadd.f32 %v3146, %v112
    %3148 = vst [vmem:[%s4] sm:$0xff] %v3147
    // Predicated region
    $region22: #{battery_lstm_forward.1} parent=1 // pred_check
      _
    $region23: #{battery_lstm_forward.1} parent=1 // pred_check_branch
      %3150 = sbr.rel (0) target = $region25
    $region24: #{battery_lstm_forward.1} parent=1 // pred_region
      _
    $region25: #{battery_lstm_forward.1} parent=1 // pred_fallthru
      _
    // Predicated region
    $region26: #{battery_lstm_forward.1} parent=1 // pred_check
      _
    $region27: #{battery_lstm_forward.1} parent=1 // pred_check_branch
      %3152 = sbr.rel (0) target = $region29
    $region28: #{battery_lstm_forward.1} parent=1 // pred_region
      _
    $region29: #{battery_lstm_forward.1} parent=1 // pred_fallthru
      _
    %3153 = vsyncpa [#allocation5], 1
  %3154 = vsyncmov [#allocation3]
  %s3155 = vpop.sfrf %3154
  %p3156 = scmp.eq.s32.totalorder %s3155, 0
  %p3157 = pneg %p3156
  %3159 = shalt.err (%p3157)

</llo_original>
